<compile_context>
chip_gen: v7x
topology: tpu7x:2x2x1
jax: 0.10.0
libtpu: 0.0.40
codegen_flags: <defaults>
</compile_context>

<pallas_src>
import functools

import jax
import jax.numpy as jnp
from jax.experimental import pallas as pl
from jax.experimental.pallas import tpu as pltpu

KSS = (7, 5, 3)


def _round_up(v, m):
    return (v + m - 1) // m * m


def _pick_bt(b, l, target_m=256, max_m=512):
    """Largest divisor of b whose flattened M = bt*l stays <= max_m, stopping once M >= target_m."""
    bt = 1
    for d in range(1, b + 1):
        if b % d == 0 and d * l <= max_m:
            bt = d
            if d * l >= target_m:
                break
    return bt


# ----------------------------- Pallas kernel ------------------------------- #

def _conv_block(p_ref, w_ref, b_ref, h_bf, *, Bt, L, K, relu):
    """'same' 1D conv (+folded BN bias, optional ReLU) on one (Bt, L, C_in) tile.

    p_ref : (Bt, R, C_in) bf16 VMEM scratch, R = round_up(L+K-1, 8)
    w_ref : (K*C_in, C_out) bf16 weight with BN scale folded in (im2col layout)
    b_ref : (1, C_out) f32 folded BN bias
    h_bf  : (Bt, L, C_in) bf16 input value
    Returns (Bt, L, C_out) f32.
    """
    C_in = p_ref.shape[-1]
    R = p_ref.shape[1]
    pad = K // 2
    M = Bt * L

    # Zero only the halo rows; the interior is fully overwritten each step.
    p_ref[:, :pad, :] = jnp.zeros((Bt, pad, C_in), jnp.bfloat16)
    p_ref[:, pad + L:, :] = jnp.zeros((Bt, R - pad - L, C_in), jnp.bfloat16)
    p_ref[:, pad:pad + L, :] = h_bf

    if C_in >= 16:
        # im2col: one deep matmul (contraction K*C_in) instead of K shallow ones.
        slab = jnp.concatenate([p_ref[:, k:k + L, :] for k in range(K)], axis=-1)
        acc = jnp.dot(slab.reshape(M, K * C_in), w_ref[...],
                      preferred_element_type=jnp.float32)
    else:
        # Tiny C_in (first conv of block 1): K shallow tap matmuls.
        acc = jnp.zeros((M, w_ref.shape[-1]), jnp.float32)
        for k in range(K):
            acc += jnp.dot(p_ref[:, k:k + L, :].reshape(M, C_in),
                           w_ref[k * C_in:(k + 1) * C_in, :],
                           preferred_element_type=jnp.float32)

    acc = acc.reshape(Bt, L, -1) + b_ref[0]
    return jnp.maximum(acc, 0.0) if relu else acc


def _resblock(x, w_refs, p_refs, *, Bt, L, proj):
    """Fused ResBlock (3 convs + shortcut + add + ReLU). x: (Bt, L, C_in) f32 value."""
    w1, b1, w2, b2, w3, b3, sa, sb = w_refs
    p1, p2, p3 = p_refs
    x_bf = x.astype(jnp.bfloat16)

    if proj:   # 1x1 conv (+BN) shortcut — channel counts differ
        sc = jnp.dot(x_bf.reshape(Bt * L, -1), sa[...],
                     preferred_element_type=jnp.float32).reshape(Bt, L, -1) + sb[0]
    else:      # BN-only shortcut folded into a per-channel affine
        sc = x * sa[0] + sb[0]

    h = _conv_block(p1, w1, b1, x_bf, Bt=Bt, L=L, K=KSS[0], relu=True)
    h = _conv_block(p2, w2, b2, h.astype(jnp.bfloat16), Bt=Bt, L=L, K=KSS[1], relu=True)
    h = _conv_block(p3, w3, b3, h.astype(jnp.bfloat16), Bt=Bt, L=L, K=KSS[2], relu=False)
    return jnp.maximum(h + sc, 0.0)


def _resnet_body_kernel(x_ref, *refs, Bt, L, projs):
    """Whole ResNet body (3 ResBlocks) + fused AdaptiveAvgPool1d(1) for one batch tile."""
    n_w = 8 * len(projs)
    w_refs = refs[:n_w]
    o_ref = refs[n_w]
    p_refs = refs[n_w + 1:]

    h = x_ref[...]                                    # (Bt, L, c_in) f32
    for i, proj in enumerate(projs):
        h = _resblock(h, w_refs[8 * i:8 * (i + 1)], p_refs[3 * i:3 * (i + 1)],
                      Bt=Bt, L=L, proj=proj)
    # fused global average pool: only the (Bt, C) mean ever reaches HBM
    o_ref[:, 0, :] = jnp.mean(h, axis=1).astype(o_ref.dtype)


# ------------------------------- wrapper ------------------------------------ #

def resnet_body_fwd(x_ncl, params):
    """x_ncl: PyTorch layout (B, C_in, L). Returns (B, 128)."""
    x = jnp.transpose(x_ncl, (0, 2, 1)).astype(jnp.float32)    # -> (B, L, C)
    B, L, c_in = x.shape
    Bt = _pick_bt(B, L)
    nf_out = params[-1]["conv3"][0].shape[-1]

    full2d = lambda shape: pl.BlockSpec(shape, lambda b: (0, 0))
    flat = [x]
    in_specs = [pl.BlockSpec((Bt, L, c_in), lambda b: (b, 0, 0))]
    scratch_shapes = []
    projs = []

    for blk in params:
        for j, _ in enumerate(KSS):
            w, bias = blk[f"conv{j + 1}"]                       # (K, Ci, Co) bf16, (Co,) f32
            k_, ci, co = w.shape
            w2d = w.reshape(k_ * ci, co)                        # im2col weight layout
            b2d = bias.reshape(1, co)
            flat += [w2d, b2d]
            in_specs += [full2d(w2d.shape), full2d(b2d.shape)]
            scratch_shapes.append(
                pltpu.VMEM((Bt, _round_up(L + k_ - 1, 8), ci), jnp.bfloat16))
        sc = blk["shortcut"]
        co = blk["conv3"][0].shape[-1]
        if "w" in sc:
            sa, sb = sc["w"], sc["b"].reshape(1, co)
            projs.append(True)
        else:
            sa, sb = sc["scale"].reshape(1, co), sc["bias"].reshape(1, co)
            projs.append(False)
        flat += [sa, sb]
        in_specs += [full2d(sa.shape), full2d(sb.shape)]

    kernel = functools.partial(_resnet_body_kernel, Bt=Bt, L=L, projs=tuple(projs))
    out = pl.pallas_call(
        kernel,
        out_shape=jax.ShapeDtypeStruct((B, 1, nf_out), x.dtype),
        grid=(B // Bt,),
        in_specs=in_specs,
        out_specs=pl.BlockSpec((Bt, 1, nf_out), lambda b: (b, 0, 0)),
        scratch_shapes=scratch_shapes,
        compiler_params=pltpu.CompilerParams(dimension_semantics=("parallel",)),
    )(*flat)
    return out[:, 0, :]


# ----------------------------- params / BN folding -------------------------- #

def fold_bn(gamma, beta, mean, var, eps=1e-5):
    scale = gamma / jnp.sqrt(var + eps)
    return scale, beta - mean * scale


def init_params(key, c_in):
    """Random weights + eval-mode BN stats, folded into (bf16 weight, f32 bias)."""
    nf = 64
    cfgs = [(c_in, nf), (nf, 2 * nf), (2 * nf, 2 * nf)]
    params = []
    for i, (ni, no) in enumerate(cfgs):
        bkey = jax.random.fold_in(key, i)
        blk = {}
        chans = [(ni, no), (no, no), (no, no)]
        for j, (ks, (ci, co)) in enumerate(zip(KSS, chans)):
            k0, k1, k2, k3 = jax.random.split(jax.random.fold_in(bkey, j), 4)
            w = jax.random.normal(k0, (ks, ci, co), jnp.float32) / jnp.sqrt(ci * ks)
            gamma = 1.0 + 0.1 * jax.random.normal(k1, (co,), jnp.float32)
            beta = 0.1 * jax.random.normal(k2, (co,), jnp.float32)
            mean = 0.1 * jax.random.normal(k3, (co,), jnp.float32)
            var = jnp.ones((co,), jnp.float32)
            scale, bias = fold_bn(gamma, beta, mean, var)
            blk[f"conv{j + 1}"] = ((w * scale[None, None, :]).astype(jnp.bfloat16), bias)
        s0, s1, s2, s3 = jax.random.split(jax.random.fold_in(bkey, 10), 4)
        gamma = 1.0 + 0.1 * jax.random.normal(s1, (no,), jnp.float32)
        beta = 0.1 * jax.random.normal(s2, (no,), jnp.float32)
        mean = 0.1 * jax.random.normal(s3, (no,), jnp.float32)
        var = jnp.ones((no,), jnp.float32)
        scale, bias = fold_bn(gamma, beta, mean, var)
        if ni == no:
            blk["shortcut"] = {"scale": scale, "bias": bias}     # BN-only shortcut (affine)
        else:
            w_sc = jax.random.normal(s0, (ni, no), jnp.float32) / jnp.sqrt(ni)
            blk["shortcut"] = {"w": (w_sc * scale[None, :]).astype(jnp.bfloat16),
                               "b": bias}                        # 1x1 conv + BN shortcut
        params.append(blk)
    return params


# ---------------------------- pure-JAX reference ----------------------------- #
# Mirrors the kernel math (bf16 matmul operands, f32 accumulation).

def _conv_bn_ref(x, w, b, relu):
    K = w.shape[0]
    pad = K // 2
    B, L, _ = x.shape
    xp = jnp.pad(x.astype(jnp.bfloat16), ((0, 0), (pad, pad), (0, 0)))
    acc = jnp.zeros((B, L, w.shape[-1]), jnp.float32)
    for k in range(K):
        acc = acc + jnp.einsum("blc,cd->bld", xp[:, k:k + L, :], w[k],
                               preferred_element_type=jnp.float32)
    acc = acc + b
    return jnp.maximum(acc, 0.0) if relu else acc


def _resblock_ref(x, blk):
    sc = blk["shortcut"]
    if "w" in sc:
        res = jnp.einsum("blc,cd->bld", x.astype(jnp.bfloat16), sc["w"],
                         preferred_element_type=jnp.float32) + sc["b"]
    else:
        res = x * sc["scale"] + sc["bias"]
    h = _conv_bn_ref(x, *blk["conv1"], True)
    h = _conv_bn_ref(h, *blk["conv2"], True)
    h = _conv_bn_ref(h, *blk["conv3"], False)
    return jnp.maximum(h + res, 0.0)


def resnet_body_ref(x_ncl, params):
    h = jnp.transpose(x_ncl, (0, 2, 1))
    for blk in params:
        h = _resblock_ref(h, blk)
    return jnp.mean(h, axis=1)


# --------------------------------- main -------------------------------------- #

if __name__ == "__main__":
    key = jax.random.PRNGKey(0)
    B, C_in, L = 2, 4, 16  # PyTorch input (B, c_in, seq_len)
    x = jax.random.normal(jax.random.fold_in(key, 999), (B, C_in, L), jnp.float32)
    params = init_params(jax.random.fold_in(key, 1), C_in)

    out = jax.block_until_ready(jax.jit(resnet_body_fwd)(x, params))
    assert out.shape == (B, 128), out.shape

    ref = jax.block_until_ready(resnet_body_ref(x, params))
    err = float(jnp.max(jnp.abs(out - ref)))
    assert jnp.allclose(out, ref, atol=2e-3, rtol=2e-3), err

    print("KERNEL_OK")
</pallas_src>

<mosaic_0001>
module attributes {stable_mosaic.version = 11 : i64} {
  func.func @_resnet_body_kernel(%arg0: i32, %arg1: memref<2x16x4xf32, #tpu.memory_space<vmem>>, %arg2: memref<28x64xbf16, #tpu.memory_space<vmem>>, %arg3: memref<1x64xf32, #tpu.memory_space<vmem>>, %arg4: memref<320x64xbf16, #tpu.memory_space<vmem>>, %arg5: memref<1x64xf32, #tpu.memory_space<vmem>>, %arg6: memref<192x64xbf16, #tpu.memory_space<vmem>>, %arg7: memref<1x64xf32, #tpu.memory_space<vmem>>, %arg8: memref<4x64xbf16, #tpu.memory_space<vmem>>, %arg9: memref<1x64xf32, #tpu.memory_space<vmem>>, %arg10: memref<448x128xbf16, #tpu.memory_space<vmem>>, %arg11: memref<1x128xf32, #tpu.memory_space<vmem>>, %arg12: memref<640x128xbf16, #tpu.memory_space<vmem>>, %arg13: memref<1x128xf32, #tpu.memory_space<vmem>>, %arg14: memref<384x128xbf16, #tpu.memory_space<vmem>>, %arg15: memref<1x128xf32, #tpu.memory_space<vmem>>, %arg16: memref<64x128xbf16, #tpu.memory_space<vmem>>, %arg17: memref<1x128xf32, #tpu.memory_space<vmem>>, %arg18: memref<896x128xbf16, #tpu.memory_space<vmem>>, %arg19: memref<1x128xf32, #tpu.memory_space<vmem>>, %arg20: memref<640x128xbf16, #tpu.memory_space<vmem>>, %arg21: memref<1x128xf32, #tpu.memory_space<vmem>>, %arg22: memref<384x128xbf16, #tpu.memory_space<vmem>>, %arg23: memref<1x128xf32, #tpu.memory_space<vmem>>, %arg24: memref<1x128xf32, #tpu.memory_space<vmem>>, %arg25: memref<1x128xf32, #tpu.memory_space<vmem>>, %arg26: memref<2x1x128xf32, #tpu.memory_space<vmem>>, %arg27: memref<2x24x4xbf16, #tpu.memory_space<vmem>>, %arg28: memref<2x24x64xbf16, #tpu.memory_space<vmem>>, %arg29: memref<2x24x64xbf16, #tpu.memory_space<vmem>>, %arg30: memref<2x24x64xbf16, #tpu.memory_space<vmem>>, %arg31: memref<2x24x128xbf16, #tpu.memory_space<vmem>>, %arg32: memref<2x24x128xbf16, #tpu.memory_space<vmem>>, %arg33: memref<2x24x128xbf16, #tpu.memory_space<vmem>>, %arg34: memref<2x24x128xbf16, #tpu.memory_space<vmem>>, %arg35: memref<2x24x128xbf16, #tpu.memory_space<vmem>>) attributes {dimension_semantics = [#tpu.dimension_semantics<parallel>], iteration_bounds = array<i64: 1>, scalar_prefetch = 0 : i64, scratch_operands = 9 : i64, tpu.core_type = #tpu.core_type<tc>, window_params = [{transform_indices = @transform_0, window_bounds = array<i64: 2, 16, 4>}, {pipeline_mode = #tpu.pipeline_mode<synchronous>, transform_indices = @transform_1, window_bounds = array<i64: 28, 64>}, {pipeline_mode = #tpu.pipeline_mode<synchronous>, transform_indices = @transform_2, window_bounds = array<i64: 1, 64>}, {pipeline_mode = #tpu.pipeline_mode<synchronous>, transform_indices = @transform_3, window_bounds = array<i64: 320, 64>}, {pipeline_mode = #tpu.pipeline_mode<synchronous>, transform_indices = @transform_4, window_bounds = array<i64: 1, 64>}, {pipeline_mode = #tpu.pipeline_mode<synchronous>, transform_indices = @transform_5, window_bounds = array<i64: 192, 64>}, {pipeline_mode = #tpu.pipeline_mode<synchronous>, transform_indices = @transform_6, window_bounds = array<i64: 1, 64>}, {pipeline_mode = #tpu.pipeline_mode<synchronous>, transform_indices = @transform_7, window_bounds = array<i64: 4, 64>}, {pipeline_mode = #tpu.pipeline_mode<synchronous>, transform_indices = @transform_8, window_bounds = array<i64: 1, 64>}, {pipeline_mode = #tpu.pipeline_mode<synchronous>, transform_indices = @transform_9, window_bounds = array<i64: 448, 128>}, {pipeline_mode = #tpu.pipeline_mode<synchronous>, transform_indices = @transform_10, window_bounds = array<i64: 1, 128>}, {pipeline_mode = #tpu.pipeline_mode<synchronous>, transform_indices = @transform_11, window_bounds = array<i64: 640, 128>}, {pipeline_mode = #tpu.pipeline_mode<synchronous>, transform_indices = @transform_12, window_bounds = array<i64: 1, 128>}, {pipeline_mode = #tpu.pipeline_mode<synchronous>, transform_indices = @transform_13, window_bounds = array<i64: 384, 128>}, {pipeline_mode = #tpu.pipeline_mode<synchronous>, transform_indices = @transform_14, window_bounds = array<i64: 1, 128>}, {pipeline_mode = #tpu.pipeline_mode<synchronous>, transform_indices = @transform_15, window_bounds = array<i64: 64, 128>}, {pipeline_mode = #tpu.pipeline_mode<synchronous>, transform_indices = @transform_16, window_bounds = array<i64: 1, 128>}, {pipeline_mode = #tpu.pipeline_mode<synchronous>, transform_indices = @transform_17, window_bounds = array<i64: 896, 128>}, {pipeline_mode = #tpu.pipeline_mode<synchronous>, transform_indices = @transform_18, window_bounds = array<i64: 1, 128>}, {pipeline_mode = #tpu.pipeline_mode<synchronous>, transform_indices = @transform_19, window_bounds = array<i64: 640, 128>}, {pipeline_mode = #tpu.pipeline_mode<synchronous>, transform_indices = @transform_20, window_bounds = array<i64: 1, 128>}, {pipeline_mode = #tpu.pipeline_mode<synchronous>, transform_indices = @transform_21, window_bounds = array<i64: 384, 128>}, {pipeline_mode = #tpu.pipeline_mode<synchronous>, transform_indices = @transform_22, window_bounds = array<i64: 1, 128>}, {pipeline_mode = #tpu.pipeline_mode<synchronous>, transform_indices = @transform_23, window_bounds = array<i64: 1, 128>}, {pipeline_mode = #tpu.pipeline_mode<synchronous>, transform_indices = @transform_24, window_bounds = array<i64: 1, 128>}, {transform_indices = @transform_25, window_bounds = array<i64: 2, 1, 128>}]} {
    %c0 = arith.constant 0 : index
    %c0_0 = arith.constant 0 : index
    %c0_1 = arith.constant 0 : index
    %0 = vector.load %arg1[%c0, %c0_0, %c0_1] : memref<2x16x4xf32, #tpu.memory_space<vmem>>, vector<2x16x4xf32>
    %1 = arith.truncf %0 : vector<2x16x4xf32> to vector<2x16x4xbf16>
    %2 = vector.shape_cast %1 : vector<2x16x4xbf16> to vector<32x4xbf16>
    %c0_2 = arith.constant 0 : index
    %c0_3 = arith.constant 0 : index
    %3 = vector.load %arg8[%c0_2, %c0_3] : memref<4x64xbf16, #tpu.memory_space<vmem>>, vector<4x64xbf16>
    %cst = arith.constant dense<0.000000e+00> : vector<32x64xf32>
    %4 = tpu.matmul %2, %3, %cst {dimension_numbers = #tpu.dot_dimension_numbers<[1], [0], [0], [1], [0, 0, 1, 1], [], []>} : vector<32x4xbf16>, vector<4x64xbf16>, vector<32x64xf32> -> vector<32x64xf32>
    %5 = vector.shape_cast %4 : vector<32x64xf32> to vector<2x16x64xf32>
    %c0_4 = arith.constant 0 : index
    %c0_5 = arith.constant 0 : index
    %6 = vector.load %arg9[%c0_4, %c0_5] : memref<1x64xf32, #tpu.memory_space<vmem>>, vector<1x64xf32>
    %7 = vector.shape_cast %6 : vector<1x64xf32> to vector<64xf32>
    %8 = vector.shape_cast %7 : vector<64xf32> to vector<1x1x64xf32>
    %9 = vector.broadcast %8 : vector<1x1x64xf32> to vector<2x16x64xf32>
    %10 = arith.addf %5, %9 : vector<2x16x64xf32>
    %cst_6 = arith.constant 0.000000e+00 : bf16
    %11 = vector.broadcast %cst_6 : bf16 to vector<2x3x4xbf16>
    %c0_7 = arith.constant 0 : index
    %c0_8 = arith.constant 0 : index
    %c0_9 = arith.constant 0 : index
    %12 = vector.load %arg27[%c0_7, %c0_8, %c0_9] : memref<2x24x4xbf16, #tpu.memory_space<vmem>>, vector<2x3x4xbf16>
    tpu.vector_store %arg27[%c0_7, %c0_8, %c0_9], %11 {strides = array<i32>} : memref<2x24x4xbf16, #tpu.memory_space<vmem>>, vector<2x3x4xbf16>,
    %cst_10 = arith.constant 0.000000e+00 : bf16
    %13 = vector.broadcast %cst_10 : bf16 to vector<2x5x4xbf16>
    %c0_11 = arith.constant 0 : index
    %c19 = arith.constant 19 : index
    %c0_12 = arith.constant 0 : index
    %14 = vector.load %arg27[%c0_11, %c19, %c0_12] : memref<2x24x4xbf16, #tpu.memory_space<vmem>>, vector<2x5x4xbf16>
    tpu.vector_store %arg27[%c0_11, %c19, %c0_12], %13 {strides = array<i32>} : memref<2x24x4xbf16, #tpu.memory_space<vmem>>, vector<2x5x4xbf16>,
    %c0_13 = arith.constant 0 : index
    %c3 = arith.constant 3 : index
    %c0_14 = arith.constant 0 : index
    %15 = vector.load %arg27[%c0_13, %c3, %c0_14] : memref<2x24x4xbf16, #tpu.memory_space<vmem>>, vector<2x16x4xbf16>
    tpu.vector_store %arg27[%c0_13, %c3, %c0_14], %1 {strides = array<i32>} : memref<2x24x4xbf16, #tpu.memory_space<vmem>>, vector<2x16x4xbf16>,
    %cst_15 = arith.constant 0.000000e+00 : f32
    %16 = vector.broadcast %cst_15 : f32 to vector<32x64xf32>
    %c0_16 = arith.constant 0 : index
    %c0_17 = arith.constant 0 : index
    %c0_18 = arith.constant 0 : index
    %17 = vector.load %arg27[%c0_16, %c0_17, %c0_18] : memref<2x24x4xbf16, #tpu.memory_space<vmem>>, vector<2x16x4xbf16>
    %18 = vector.shape_cast %17 : vector<2x16x4xbf16> to vector<32x4xbf16>
    %c0_19 = arith.constant 0 : index
    %c0_20 = arith.constant 0 : index
    %19 = vector.load %arg2[%c0_19, %c0_20] : memref<28x64xbf16, #tpu.memory_space<vmem>>, vector<4x64xbf16>
    %cst_21 = arith.constant dense<0.000000e+00> : vector<32x64xf32>
    %20 = tpu.matmul %18, %19, %cst_21 {dimension_numbers = #tpu.dot_dimension_numbers<[1], [0], [0], [1], [0, 0, 1, 1], [], []>} : vector<32x4xbf16>, vector<4x64xbf16>, vector<32x64xf32> -> vector<32x64xf32>
    %21 = arith.addf %16, %20 : vector<32x64xf32>
    %c0_22 = arith.constant 0 : index
    %c1 = arith.constant 1 : index
    %c0_23 = arith.constant 0 : index
    %22 = vector.load %arg27[%c0_22, %c1, %c0_23] : memref<2x24x4xbf16, #tpu.memory_space<vmem>>, vector<2x16x4xbf16>
    %23 = vector.shape_cast %22 : vector<2x16x4xbf16> to vector<32x4xbf16>
    %c4 = arith.constant 4 : index
    %c0_24 = arith.constant 0 : index
    %24 = vector.load %arg2[%c4, %c0_24] : memref<28x64xbf16, #tpu.memory_space<vmem>>, vector<4x64xbf16>
    %cst_25 = arith.constant dense<0.000000e+00> : vector<32x64xf32>
    %25 = tpu.matmul %23, %24, %cst_25 {dimension_numbers = #tpu.dot_dimension_numbers<[1], [0], [0], [1], [0, 0, 1, 1], [], []>} : vector<32x4xbf16>, vector<4x64xbf16>, vector<32x64xf32> -> vector<32x64xf32>
    %26 = arith.addf %21, %25 : vector<32x64xf32>
    %c0_26 = arith.constant 0 : index
    %c2 = arith.constant 2 : index
    %c0_27 = arith.constant 0 : index
    %27 = vector.load %arg27[%c0_26, %c2, %c0_27] : memref<2x24x4xbf16, #tpu.memory_space<vmem>>, vector<2x16x4xbf16>
    %28 = vector.shape_cast %27 : vector<2x16x4xbf16> to vector<32x4xbf16>
    %c8 = arith.constant 8 : index
    %c0_28 = arith.constant 0 : index
    %29 = vector.load %arg2[%c8, %c0_28] : memref<28x64xbf16, #tpu.memory_space<vmem>>, vector<4x64xbf16>
    %cst_29 = arith.constant dense<0.000000e+00> : vector<32x64xf32>
    %30 = tpu.matmul %28, %29, %cst_29 {dimension_numbers = #tpu.dot_dimension_numbers<[1], [0], [0], [1], [0, 0, 1, 1], [], []>} : vector<32x4xbf16>, vector<4x64xbf16>, vector<32x64xf32> -> vector<32x64xf32>
    %31 = arith.addf %26, %30 : vector<32x64xf32>
    %c0_30 = arith.constant 0 : index
    %c3_31 = arith.constant 3 : index
    %c0_32 = arith.constant 0 : index
    %32 = vector.load %arg27[%c0_30, %c3_31, %c0_32] : memref<2x24x4xbf16, #tpu.memory_space<vmem>>, vector<2x16x4xbf16>
    %33 = vector.shape_cast %32 : vector<2x16x4xbf16> to vector<32x4xbf16>
    %c12 = arith.constant 12 : index
    %c0_33 = arith.constant 0 : index
    %34 = vector.load %arg2[%c12, %c0_33] : memref<28x64xbf16, #tpu.memory_space<vmem>>, vector<4x64xbf16>
    %cst_34 = arith.constant dense<0.000000e+00> : vector<32x64xf32>
    %35 = tpu.matmul %33, %34, %cst_34 {dimension_numbers = #tpu.dot_dimension_numbers<[1], [0], [0], [1], [0, 0, 1, 1], [], []>} : vector<32x4xbf16>, vector<4x64xbf16>, vector<32x64xf32> -> vector<32x64xf32>
    %36 = arith.addf %31, %35 : vector<32x64xf32>
    %c0_35 = arith.constant 0 : index
    %c4_36 = arith.constant 4 : index
    %c0_37 = arith.constant 0 : index
    %37 = vector.load %arg27[%c0_35, %c4_36, %c0_37] : memref<2x24x4xbf16, #tpu.memory_space<vmem>>, vector<2x16x4xbf16>
    %38 = vector.shape_cast %37 : vector<2x16x4xbf16> to vector<32x4xbf16>
    %c16 = arith.constant 16 : index
    %c0_38 = arith.constant 0 : index
    %39 = vector.load %arg2[%c16, %c0_38] : memref<28x64xbf16, #tpu.memory_space<vmem>>, vector<4x64xbf16>
    %cst_39 = arith.constant dense<0.000000e+00> : vector<32x64xf32>
    %40 = tpu.matmul %38, %39, %cst_39 {dimension_numbers = #tpu.dot_dimension_numbers<[1], [0], [0], [1], [0, 0, 1, 1], [], []>} : vector<32x4xbf16>, vector<4x64xbf16>, vector<32x64xf32> -> vector<32x64xf32>
    %41 = arith.addf %36, %40 : vector<32x64xf32>
    %c0_40 = arith.constant 0 : index
    %c5 = arith.constant 5 : index
    %c0_41 = arith.constant 0 : index
    %42 = vector.load %arg27[%c0_40, %c5, %c0_41] : memref<2x24x4xbf16, #tpu.memory_space<vmem>>, vector<2x16x4xbf16>
    %43 = vector.shape_cast %42 : vector<2x16x4xbf16> to vector<32x4xbf16>
    %c20 = arith.constant 20 : index
    %c0_42 = arith.constant 0 : index
    %44 = vector.load %arg2[%c20, %c0_42] : memref<28x64xbf16, #tpu.memory_space<vmem>>, vector<4x64xbf16>
    %cst_43 = arith.constant dense<0.000000e+00> : vector<32x64xf32>
    %45 = tpu.matmul %43, %44, %cst_43 {dimension_numbers = #tpu.dot_dimension_numbers<[1], [0], [0], [1], [0, 0, 1, 1], [], []>} : vector<32x4xbf16>, vector<4x64xbf16>, vector<32x64xf32> -> vector<32x64xf32>
    %46 = arith.addf %41, %45 : vector<32x64xf32>
    %c0_44 = arith.constant 0 : index
    %c6 = arith.constant 6 : index
    %c0_45 = arith.constant 0 : index
    %47 = vector.load %arg27[%c0_44, %c6, %c0_45] : memref<2x24x4xbf16, #tpu.memory_space<vmem>>, vector<2x16x4xbf16>
    %48 = vector.shape_cast %47 : vector<2x16x4xbf16> to vector<32x4xbf16>
    %c24 = arith.constant 24 : index
    %c0_46 = arith.constant 0 : index
    %49 = vector.load %arg2[%c24, %c0_46] : memref<28x64xbf16, #tpu.memory_space<vmem>>, vector<4x64xbf16>
    %cst_47 = arith.constant dense<0.000000e+00> : vector<32x64xf32>
    %50 = tpu.matmul %48, %49, %cst_47 {dimension_numbers = #tpu.dot_dimension_numbers<[1], [0], [0], [1], [0, 0, 1, 1], [], []>} : vector<32x4xbf16>, vector<4x64xbf16>, vector<32x64xf32> -> vector<32x64xf32>
    %51 = arith.addf %46, %50 : vector<32x64xf32>
    %52 = vector.shape_cast %51 : vector<32x64xf32> to vector<2x16x64xf32>
    %c0_48 = arith.constant 0 : index
    %c0_49 = arith.constant 0 : index
    %53 = vector.load %arg3[%c0_48, %c0_49] : memref<1x64xf32, #tpu.memory_space<vmem>>, vector<1x64xf32>
    %54 = vector.shape_cast %53 : vector<1x64xf32> to vector<64xf32>
    %55 = vector.shape_cast %54 : vector<64xf32> to vector<1x1x64xf32>
    %56 = vector.broadcast %55 : vector<1x1x64xf32> to vector<2x16x64xf32>
    %57 = arith.addf %52, %56 : vector<2x16x64xf32>
    %cst_50 = arith.constant 0.000000e+00 : f32
    %58 = vector.broadcast %cst_50 : f32 to vector<2x16x64xf32>
    %59 = arith.maximumf %57, %58 : vector<2x16x64xf32>
    %60 = arith.truncf %59 : vector<2x16x64xf32> to vector<2x16x64xbf16>
    %cst_51 = arith.constant 0.000000e+00 : bf16
    %61 = vector.broadcast %cst_51 : bf16 to vector<2x2x64xbf16>
    %c0_52 = arith.constant 0 : index
    %c0_53 = arith.constant 0 : index
    %c0_54 = arith.constant 0 : index
    %62 = vector.load %arg28[%c0_52, %c0_53, %c0_54] : memref<2x24x64xbf16, #tpu.memory_space<vmem>>, vector<2x2x64xbf16>
    tpu.vector_store %arg28[%c0_52, %c0_53, %c0_54], %61 {strides = array<i32>} : memref<2x24x64xbf16, #tpu.memory_space<vmem>>, vector<2x2x64xbf16>,
    %cst_55 = arith.constant 0.000000e+00 : bf16
    %63 = vector.broadcast %cst_55 : bf16 to vector<2x6x64xbf16>
    %c0_56 = arith.constant 0 : index
    %c18 = arith.constant 18 : index
    %c0_57 = arith.constant 0 : index
    %64 = vector.load %arg28[%c0_56, %c18, %c0_57] : memref<2x24x64xbf16, #tpu.memory_space<vmem>>, vector<2x6x64xbf16>
    tpu.vector_store %arg28[%c0_56, %c18, %c0_57], %63 {strides = array<i32>} : memref<2x24x64xbf16, #tpu.memory_space<vmem>>, vector<2x6x64xbf16>,
    %c0_58 = arith.constant 0 : index
    %c2_59 = arith.constant 2 : index
    %c0_60 = arith.constant 0 : index
    %65 = vector.load %arg28[%c0_58, %c2_59, %c0_60] : memref<2x24x64xbf16, #tpu.memory_space<vmem>>, vector<2x16x64xbf16>
    tpu.vector_store %arg28[%c0_58, %c2_59, %c0_60], %60 {strides = array<i32>} : memref<2x24x64xbf16, #tpu.memory_space<vmem>>, vector<2x16x64xbf16>,
    %c0_61 = arith.constant 0 : index
    %c0_62 = arith.constant 0 : index
    %c0_63 = arith.constant 0 : index
    %66 = vector.load %arg28[%c0_61, %c0_62, %c0_63] : memref<2x24x64xbf16, #tpu.memory_space<vmem>>, vector<2x16x64xbf16>
    %c0_64 = arith.constant 0 : index
    %c1_65 = arith.constant 1 : index
    %c0_66 = arith.constant 0 : index
    %67 = vector.load %arg28[%c0_64, %c1_65, %c0_66] : memref<2x24x64xbf16, #tpu.memory_space<vmem>>, vector<2x16x64xbf16>
    %c0_67 = arith.constant 0 : index
    %c2_68 = arith.constant 2 : index
    %c0_69 = arith.constant 0 : index
    %68 = vector.load %arg28[%c0_67, %c2_68, %c0_69] : memref<2x24x64xbf16, #tpu.memory_space<vmem>>, vector<2x16x64xbf16>
    %c0_70 = arith.constant 0 : index
    %c3_71 = arith.constant 3 : index
    %c0_72 = arith.constant 0 : index
    %69 = vector.load %arg28[%c0_70, %c3_71, %c0_72] : memref<2x24x64xbf16, #tpu.memory_space<vmem>>, vector<2x16x64xbf16>
    %c0_73 = arith.constant 0 : index
    %c4_74 = arith.constant 4 : index
    %c0_75 = arith.constant 0 : index
    %70 = vector.load %arg28[%c0_73, %c4_74, %c0_75] : memref<2x24x64xbf16, #tpu.memory_space<vmem>>, vector<2x16x64xbf16>
    %71 = tpu.concatenate %66, %67, %68, %69, %70 in 2 : vector<2x16x64xbf16>, vector<2x16x64xbf16>, vector<2x16x64xbf16>, vector<2x16x64xbf16>, vector<2x16x64xbf16> -> vector<2x16x320xbf16>
    %72 = vector.shape_cast %71 : vector<2x16x320xbf16> to vector<32x320xbf16>
    %c0_76 = arith.constant 0 : index
    %c0_77 = arith.constant 0 : index
    %73 = vector.load %arg4[%c0_76, %c0_77] : memref<320x64xbf16, #tpu.memory_space<vmem>>, vector<320x64xbf16>
    %cst_78 = arith.constant dense<0.000000e+00> : vector<32x64xf32>
    %74 = tpu.matmul %72, %73, %cst_78 {dimension_numbers = #tpu.dot_dimension_numbers<[1], [0], [0], [1], [0, 0, 1, 1], [], []>} : vector<32x320xbf16>, vector<320x64xbf16>, vector<32x64xf32> -> vector<32x64xf32>
    %75 = vector.shape_cast %74 : vector<32x64xf32> to vector<2x16x64xf32>
    %c0_79 = arith.constant 0 : index
    %c0_80 = arith.constant 0 : index
    %76 = vector.load %arg5[%c0_79, %c0_80] : memref<1x64xf32, #tpu.memory_space<vmem>>, vector<1x64xf32>
    %77 = vector.shape_cast %76 : vector<1x64xf32> to vector<64xf32>
    %78 = vector.shape_cast %77 : vector<64xf32> to vector<1x1x64xf32>
    %79 = vector.broadcast %78 : vector<1x1x64xf32> to vector<2x16x64xf32>
    %80 = arith.addf %75, %79 : vector<2x16x64xf32>
    %cst_81 = arith.constant 0.000000e+00 : f32
    %81 = vector.broadcast %cst_81 : f32 to vector<2x16x64xf32>
    %82 = arith.maximumf %80, %81 : vector<2x16x64xf32>
    %83 = arith.truncf %82 : vector<2x16x64xf32> to vector<2x16x64xbf16>
    %cst_82 = arith.constant 0.000000e+00 : bf16
    %84 = vector.broadcast %cst_82 : bf16 to vector<2x1x64xbf16>
    %c0_83 = arith.constant 0 : index
    %c0_84 = arith.constant 0 : index
    %c0_85 = arith.constant 0 : index
    %85 = vector.load %arg29[%c0_83, %c0_84, %c0_85] : memref<2x24x64xbf16, #tpu.memory_space<vmem>>, vector<2x1x64xbf16>
    tpu.vector_store %arg29[%c0_83, %c0_84, %c0_85], %84 {strides = array<i32>} : memref<2x24x64xbf16, #tpu.memory_space<vmem>>, vector<2x1x64xbf16>,
    %cst_86 = arith.constant 0.000000e+00 : bf16
    %86 = vector.broadcast %cst_86 : bf16 to vector<2x7x64xbf16>
    %c0_87 = arith.constant 0 : index
    %c17 = arith.constant 17 : index
    %c0_88 = arith.constant 0 : index
    %87 = vector.load %arg29[%c0_87, %c17, %c0_88] : memref<2x24x64xbf16, #tpu.memory_space<vmem>>, vector<2x7x64xbf16>
    tpu.vector_store %arg29[%c0_87, %c17, %c0_88], %86 {strides = array<i32>} : memref<2x24x64xbf16, #tpu.memory_space<vmem>>, vector<2x7x64xbf16>,
    %c0_89 = arith.constant 0 : index
    %c1_90 = arith.constant 1 : index
    %c0_91 = arith.constant 0 : index
    %88 = vector.load %arg29[%c0_89, %c1_90, %c0_91] : memref<2x24x64xbf16, #tpu.memory_space<vmem>>, vector<2x16x64xbf16>
    tpu.vector_store %arg29[%c0_89, %c1_90, %c0_91], %83 {strides = array<i32>} : memref<2x24x64xbf16, #tpu.memory_space<vmem>>, vector<2x16x64xbf16>,
    %c0_92 = arith.constant 0 : index
    %c0_93 = arith.constant 0 : index
    %c0_94 = arith.constant 0 : index
    %89 = vector.load %arg29[%c0_92, %c0_93, %c0_94] : memref<2x24x64xbf16, #tpu.memory_space<vmem>>, vector<2x16x64xbf16>
    %c0_95 = arith.constant 0 : index
    %c1_96 = arith.constant 1 : index
    %c0_97 = arith.constant 0 : index
    %90 = vector.load %arg29[%c0_95, %c1_96, %c0_97] : memref<2x24x64xbf16, #tpu.memory_space<vmem>>, vector<2x16x64xbf16>
    %c0_98 = arith.constant 0 : index
    %c2_99 = arith.constant 2 : index
    %c0_100 = arith.constant 0 : index
    %91 = vector.load %arg29[%c0_98, %c2_99, %c0_100] : memref<2x24x64xbf16, #tpu.memory_space<vmem>>, vector<2x16x64xbf16>
    %92 = tpu.concatenate %89, %90, %91 in 2 : vector<2x16x64xbf16>, vector<2x16x64xbf16>, vector<2x16x64xbf16> -> vector<2x16x192xbf16>
    %93 = vector.shape_cast %92 : vector<2x16x192xbf16> to vector<32x192xbf16>
    %c0_101 = arith.constant 0 : index
    %c0_102 = arith.constant 0 : index
    %94 = vector.load %arg6[%c0_101, %c0_102] : memref<192x64xbf16, #tpu.memory_space<vmem>>, vector<192x64xbf16>
    %cst_103 = arith.constant dense<0.000000e+00> : vector<32x64xf32>
    %95 = tpu.matmul %93, %94, %cst_103 {dimension_numbers = #tpu.dot_dimension_numbers<[1], [0], [0], [1], [0, 0, 1, 1], [], []>} : vector<32x192xbf16>, vector<192x64xbf16>, vector<32x64xf32> -> vector<32x64xf32>
    %96 = vector.shape_cast %95 : vector<32x64xf32> to vector<2x16x64xf32>
    %c0_104 = arith.constant 0 : index
    %c0_105 = arith.constant 0 : index
    %97 = vector.load %arg7[%c0_104, %c0_105] : memref<1x64xf32, #tpu.memory_space<vmem>>, vector<1x64xf32>
    %98 = vector.shape_cast %97 : vector<1x64xf32> to vector<64xf32>
    %99 = vector.shape_cast %98 : vector<64xf32> to vector<1x1x64xf32>
    %100 = vector.broadcast %99 : vector<1x1x64xf32> to vector<2x16x64xf32>
    %101 = arith.addf %96, %100 : vector<2x16x64xf32>
    %102 = arith.addf %101, %10 : vector<2x16x64xf32>
    %cst_106 = arith.constant 0.000000e+00 : f32
    %103 = vector.broadcast %cst_106 : f32 to vector<2x16x64xf32>
    %104 = arith.maximumf %102, %103 : vector<2x16x64xf32>
    %105 = arith.truncf %104 : vector<2x16x64xf32> to vector<2x16x64xbf16>
    %106 = vector.shape_cast %105 : vector<2x16x64xbf16> to vector<32x64xbf16>
    %c0_107 = arith.constant 0 : index
    %c0_108 = arith.constant 0 : index
    %107 = vector.load %arg16[%c0_107, %c0_108] : memref<64x128xbf16, #tpu.memory_space<vmem>>, vector<64x128xbf16>
    %cst_109 = arith.constant dense<0.000000e+00> : vector<32x128xf32>
    %108 = tpu.matmul %106, %107, %cst_109 {dimension_numbers = #tpu.dot_dimension_numbers<[1], [0], [0], [1], [0, 0, 1, 1], [], []>} : vector<32x64xbf16>, vector<64x128xbf16>, vector<32x128xf32> -> vector<32x128xf32>
    %109 = vector.shape_cast %108 : vector<32x128xf32> to vector<2x16x128xf32>
    %c0_110 = arith.constant 0 : index
    %c0_111 = arith.constant 0 : index
    %110 = vector.load %arg17[%c0_110, %c0_111] : memref<1x128xf32, #tpu.memory_space<vmem>>, vector<1x128xf32>
    %111 = vector.shape_cast %110 : vector<1x128xf32> to vector<128xf32>
    %112 = vector.shape_cast %111 : vector<128xf32> to vector<1x1x128xf32>
    %113 = vector.broadcast %112 : vector<1x1x128xf32> to vector<2x16x128xf32>
    %114 = arith.addf %109, %113 : vector<2x16x128xf32>
    %cst_112 = arith.constant 0.000000e+00 : bf16
    %115 = vector.broadcast %cst_112 : bf16 to vector<2x3x64xbf16>
    %c0_113 = arith.constant 0 : index
    %c0_114 = arith.constant 0 : index
    %c0_115 = arith.constant 0 : index
    %116 = vector.load %arg30[%c0_113, %c0_114, %c0_115] : memref<2x24x64xbf16, #tpu.memory_space<vmem>>, vector<2x3x64xbf16>
    tpu.vector_store %arg30[%c0_113, %c0_114, %c0_115], %115 {strides = array<i32>} : memref<2x24x64xbf16, #tpu.memory_space<vmem>>, vector<2x3x64xbf16>,
    %cst_116 = arith.constant 0.000000e+00 : bf16
    %117 = vector.broadcast %cst_116 : bf16 to vector<2x5x64xbf16>
    %c0_117 = arith.constant 0 : index
    %c19_118 = arith.constant 19 : index
    %c0_119 = arith.constant 0 : index
    %118 = vector.load %arg30[%c0_117, %c19_118, %c0_119] : memref<2x24x64xbf16, #tpu.memory_space<vmem>>, vector<2x5x64xbf16>
    tpu.vector_store %arg30[%c0_117, %c19_118, %c0_119], %117 {strides = array<i32>} : memref<2x24x64xbf16, #tpu.memory_space<vmem>>, vector<2x5x64xbf16>,
    %c0_120 = arith.constant 0 : index
    %c3_121 = arith.constant 3 : index
    %c0_122 = arith.constant 0 : index
    %119 = vector.load %arg30[%c0_120, %c3_121, %c0_122] : memref<2x24x64xbf16, #tpu.memory_space<vmem>>, vector<2x16x64xbf16>
    tpu.vector_store %arg30[%c0_120, %c3_121, %c0_122], %105 {strides = array<i32>} : memref<2x24x64xbf16, #tpu.memory_space<vmem>>, vector<2x16x64xbf16>,
    %c0_123 = arith.constant 0 : index
    %c0_124 = arith.constant 0 : index
    %c0_125 = arith.constant 0 : index
    %120 = vector.load %arg30[%c0_123, %c0_124, %c0_125] : memref<2x24x64xbf16, #tpu.memory_space<vmem>>, vector<2x16x64xbf16>
    %c0_126 = arith.constant 0 : index
    %c1_127 = arith.constant 1 : index
    %c0_128 = arith.constant 0 : index
    %121 = vector.load %arg30[%c0_126, %c1_127, %c0_128] : memref<2x24x64xbf16, #tpu.memory_space<vmem>>, vector<2x16x64xbf16>
    %c0_129 = arith.constant 0 : index
    %c2_130 = arith.constant 2 : index
    %c0_131 = arith.constant 0 : index
    %122 = vector.load %arg30[%c0_129, %c2_130, %c0_131] : memref<2x24x64xbf16, #tpu.memory_space<vmem>>, vector<2x16x64xbf16>
    %c0_132 = arith.constant 0 : index
    %c3_133 = arith.constant 3 : index
    %c0_134 = arith.constant 0 : index
    %123 = vector.load %arg30[%c0_132, %c3_133, %c0_134] : memref<2x24x64xbf16, #tpu.memory_space<vmem>>, vector<2x16x64xbf16>
    %c0_135 = arith.constant 0 : index
    %c4_136 = arith.constant 4 : index
    %c0_137 = arith.constant 0 : index
    %124 = vector.load %arg30[%c0_135, %c4_136, %c0_137] : memref<2x24x64xbf16, #tpu.memory_space<vmem>>, vector<2x16x64xbf16>
    %c0_138 = arith.constant 0 : index
    %c5_139 = arith.constant 5 : index
    %c0_140 = arith.constant 0 : index
    %125 = vector.load %arg30[%c0_138, %c5_139, %c0_140] : memref<2x24x64xbf16, #tpu.memory_space<vmem>>, vector<2x16x64xbf16>
    %c0_141 = arith.constant 0 : index
    %c6_142 = arith.constant 6 : index
    %c0_143 = arith.constant 0 : index
    %126 = vector.load %arg30[%c0_141, %c6_142, %c0_143] : memref<2x24x64xbf16, #tpu.memory_space<vmem>>, vector<2x16x64xbf16>
    %127 = tpu.concatenate %120, %121, %122, %123, %124, %125, %126 in 2 : vector<2x16x64xbf16>, vector<2x16x64xbf16>, vector<2x16x64xbf16>, vector<2x16x64xbf16>, vector<2x16x64xbf16>, vector<2x16x64xbf16>, vector<2x16x64xbf16> -> vector<2x16x448xbf16>
    %128 = vector.shape_cast %127 : vector<2x16x448xbf16> to vector<32x448xbf16>
    %c0_144 = arith.constant 0 : index
    %c0_145 = arith.constant 0 : index
    %129 = vector.load %arg10[%c0_144, %c0_145] : memref<448x128xbf16, #tpu.memory_space<vmem>>, vector<448x128xbf16>
    %cst_146 = arith.constant dense<0.000000e+00> : vector<32x128xf32>
    %130 = tpu.matmul %128, %129, %cst_146 {dimension_numbers = #tpu.dot_dimension_numbers<[1], [0], [0], [1], [0, 0, 1, 1], [], []>} : vector<32x448xbf16>, vector<448x128xbf16>, vector<32x128xf32> -> vector<32x128xf32>
    %131 = vector.shape_cast %130 : vector<32x128xf32> to vector<2x16x128xf32>
    %c0_147 = arith.constant 0 : index
    %c0_148 = arith.constant 0 : index
    %132 = vector.load %arg11[%c0_147, %c0_148] : memref<1x128xf32, #tpu.memory_space<vmem>>, vector<1x128xf32>
    %133 = vector.shape_cast %132 : vector<1x128xf32> to vector<128xf32>
    %134 = vector.shape_cast %133 : vector<128xf32> to vector<1x1x128xf32>
    %135 = vector.broadcast %134 : vector<1x1x128xf32> to vector<2x16x128xf32>
    %136 = arith.addf %131, %135 : vector<2x16x128xf32>
    %cst_149 = arith.constant 0.000000e+00 : f32
    %137 = vector.broadcast %cst_149 : f32 to vector<2x16x128xf32>
    %138 = arith.maximumf %136, %137 : vector<2x16x128xf32>
    %139 = arith.truncf %138 : vector<2x16x128xf32> to vector<2x16x128xbf16>
    %cst_150 = arith.constant 0.000000e+00 : bf16
    %140 = vector.broadcast %cst_150 : bf16 to vector<2x2x128xbf16>
    %c0_151 = arith.constant 0 : index
    %c0_152 = arith.constant 0 : index
    %c0_153 = arith.constant 0 : index
    %141 = vector.load %arg31[%c0_151, %c0_152, %c0_153] : memref<2x24x128xbf16, #tpu.memory_space<vmem>>, vector<2x2x128xbf16>
    tpu.vector_store %arg31[%c0_151, %c0_152, %c0_153], %140 {strides = array<i32>} : memref<2x24x128xbf16, #tpu.memory_space<vmem>>, vector<2x2x128xbf16>,
    %cst_154 = arith.constant 0.000000e+00 : bf16
    %142 = vector.broadcast %cst_154 : bf16 to vector<2x6x128xbf16>
    %c0_155 = arith.constant 0 : index
    %c18_156 = arith.constant 18 : index
    %c0_157 = arith.constant 0 : index
    %143 = vector.load %arg31[%c0_155, %c18_156, %c0_157] : memref<2x24x128xbf16, #tpu.memory_space<vmem>>, vector<2x6x128xbf16>
    tpu.vector_store %arg31[%c0_155, %c18_156, %c0_157], %142 {strides = array<i32>} : memref<2x24x128xbf16, #tpu.memory_space<vmem>>, vector<2x6x128xbf16>,
    %c0_158 = arith.constant 0 : index
    %c2_159 = arith.constant 2 : index
    %c0_160 = arith.constant 0 : index
    %144 = vector.load %arg31[%c0_158, %c2_159, %c0_160] : memref<2x24x128xbf16, #tpu.memory_space<vmem>>, vector<2x16x128xbf16>
    tpu.vector_store %arg31[%c0_158, %c2_159, %c0_160], %139 {strides = array<i32>} : memref<2x24x128xbf16, #tpu.memory_space<vmem>>, vector<2x16x128xbf16>,
    %c0_161 = arith.constant 0 : index
    %c0_162 = arith.constant 0 : index
    %c0_163 = arith.constant 0 : index
    %145 = vector.load %arg31[%c0_161, %c0_162, %c0_163] : memref<2x24x128xbf16, #tpu.memory_space<vmem>>, vector<2x16x128xbf16>
    %c0_164 = arith.constant 0 : index
    %c1_165 = arith.constant 1 : index
    %c0_166 = arith.constant 0 : index
    %146 = vector.load %arg31[%c0_164, %c1_165, %c0_166] : memref<2x24x128xbf16, #tpu.memory_space<vmem>>, vector<2x16x128xbf16>
    %c0_167 = arith.constant 0 : index
    %c2_168 = arith.constant 2 : index
    %c0_169 = arith.constant 0 : index
    %147 = vector.load %arg31[%c0_167, %c2_168, %c0_169] : memref<2x24x128xbf16, #tpu.memory_space<vmem>>, vector<2x16x128xbf16>
    %c0_170 = arith.constant 0 : index
    %c3_171 = arith.constant 3 : index
    %c0_172 = arith.constant 0 : index
    %148 = vector.load %arg31[%c0_170, %c3_171, %c0_172] : memref<2x24x128xbf16, #tpu.memory_space<vmem>>, vector<2x16x128xbf16>
    %c0_173 = arith.constant 0 : index
    %c4_174 = arith.constant 4 : index
    %c0_175 = arith.constant 0 : index
    %149 = vector.load %arg31[%c0_173, %c4_174, %c0_175] : memref<2x24x128xbf16, #tpu.memory_space<vmem>>, vector<2x16x128xbf16>
    %150 = tpu.concatenate %145, %146, %147, %148, %149 in 2 : vector<2x16x128xbf16>, vector<2x16x128xbf16>, vector<2x16x128xbf16>, vector<2x16x128xbf16>, vector<2x16x128xbf16> -> vector<2x16x640xbf16>
    %151 = vector.shape_cast %150 : vector<2x16x640xbf16> to vector<32x640xbf16>
    %c0_176 = arith.constant 0 : index
    %c0_177 = arith.constant 0 : index
    %152 = vector.load %arg12[%c0_176, %c0_177] : memref<640x128xbf16, #tpu.memory_space<vmem>>, vector<640x128xbf16>
    %cst_178 = arith.constant dense<0.000000e+00> : vector<32x128xf32>
    %153 = tpu.matmul %151, %152, %cst_178 {dimension_numbers = #tpu.dot_dimension_numbers<[1], [0], [0], [1], [0, 0, 1, 1], [], []>} : vector<32x640xbf16>, vector<640x128xbf16>, vector<32x128xf32> -> vector<32x128xf32>
    %154 = vector.shape_cast %153 : vector<32x128xf32> to vector<2x16x128xf32>
    %c0_179 = arith.constant 0 : index
    %c0_180 = arith.constant 0 : index
    %155 = vector.load %arg13[%c0_179, %c0_180] : memref<1x128xf32, #tpu.memory_space<vmem>>, vector<1x128xf32>
    %156 = vector.shape_cast %155 : vector<1x128xf32> to vector<128xf32>
    %157 = vector.shape_cast %156 : vector<128xf32> to vector<1x1x128xf32>
    %158 = vector.broadcast %157 : vector<1x1x128xf32> to vector<2x16x128xf32>
    %159 = arith.addf %154, %158 : vector<2x16x128xf32>
    %cst_181 = arith.constant 0.000000e+00 : f32
    %160 = vector.broadcast %cst_181 : f32 to vector<2x16x128xf32>
    %161 = arith.maximumf %159, %160 : vector<2x16x128xf32>
    %162 = arith.truncf %161 : vector<2x16x128xf32> to vector<2x16x128xbf16>
    %cst_182 = arith.constant 0.000000e+00 : bf16
    %163 = vector.broadcast %cst_182 : bf16 to vector<2x1x128xbf16>
    %c0_183 = arith.constant 0 : index
    %c0_184 = arith.constant 0 : index
    %c0_185 = arith.constant 0 : index
    %164 = vector.load %arg32[%c0_183, %c0_184, %c0_185] : memref<2x24x128xbf16, #tpu.memory_space<vmem>>, vector<2x1x128xbf16>
    tpu.vector_store %arg32[%c0_183, %c0_184, %c0_185], %163 {strides = array<i32>} : memref<2x24x128xbf16, #tpu.memory_space<vmem>>, vector<2x1x128xbf16>,
    %cst_186 = arith.constant 0.000000e+00 : bf16
    %165 = vector.broadcast %cst_186 : bf16 to vector<2x7x128xbf16>
    %c0_187 = arith.constant 0 : index
    %c17_188 = arith.constant 17 : index
    %c0_189 = arith.constant 0 : index
    %166 = vector.load %arg32[%c0_187, %c17_188, %c0_189] : memref<2x24x128xbf16, #tpu.memory_space<vmem>>, vector<2x7x128xbf16>
    tpu.vector_store %arg32[%c0_187, %c17_188, %c0_189], %165 {strides = array<i32>} : memref<2x24x128xbf16, #tpu.memory_space<vmem>>, vector<2x7x128xbf16>,
    %c0_190 = arith.constant 0 : index
    %c1_191 = arith.constant 1 : index
    %c0_192 = arith.constant 0 : index
    %167 = vector.load %arg32[%c0_190, %c1_191, %c0_192] : memref<2x24x128xbf16, #tpu.memory_space<vmem>>, vector<2x16x128xbf16>
    tpu.vector_store %arg32[%c0_190, %c1_191, %c0_192], %162 {strides = array<i32>} : memref<2x24x128xbf16, #tpu.memory_space<vmem>>, vector<2x16x128xbf16>,
    %c0_193 = arith.constant 0 : index
    %c0_194 = arith.constant 0 : index
    %c0_195 = arith.constant 0 : index
    %168 = vector.load %arg32[%c0_193, %c0_194, %c0_195] : memref<2x24x128xbf16, #tpu.memory_space<vmem>>, vector<2x16x128xbf16>
    %c0_196 = arith.constant 0 : index
    %c1_197 = arith.constant 1 : index
    %c0_198 = arith.constant 0 : index
    %169 = vector.load %arg32[%c0_196, %c1_197, %c0_198] : memref<2x24x128xbf16, #tpu.memory_space<vmem>>, vector<2x16x128xbf16>
    %c0_199 = arith.constant 0 : index
    %c2_200 = arith.constant 2 : index
    %c0_201 = arith.constant 0 : index
    %170 = vector.load %arg32[%c0_199, %c2_200, %c0_201] : memref<2x24x128xbf16, #tpu.memory_space<vmem>>, vector<2x16x128xbf16>
    %171 = tpu.concatenate %168, %169, %170 in 2 : vector<2x16x128xbf16>, vector<2x16x128xbf16>, vector<2x16x128xbf16> -> vector<2x16x384xbf16>
    %172 = vector.shape_cast %171 : vector<2x16x384xbf16> to vector<32x384xbf16>
    %c0_202 = arith.constant 0 : index
    %c0_203 = arith.constant 0 : index
    %173 = vector.load %arg14[%c0_202, %c0_203] : memref<384x128xbf16, #tpu.memory_space<vmem>>, vector<384x128xbf16>
    %cst_204 = arith.constant dense<0.000000e+00> : vector<32x128xf32>
    %174 = tpu.matmul %172, %173, %cst_204 {dimension_numbers = #tpu.dot_dimension_numbers<[1], [0], [0], [1], [0, 0, 1, 1], [], []>} : vector<32x384xbf16>, vector<384x128xbf16>, vector<32x128xf32> -> vector<32x128xf32>
    %175 = vector.shape_cast %174 : vector<32x128xf32> to vector<2x16x128xf32>
    %c0_205 = arith.constant 0 : index
    %c0_206 = arith.constant 0 : index
    %176 = vector.load %arg15[%c0_205, %c0_206] : memref<1x128xf32, #tpu.memory_space<vmem>>, vector<1x128xf32>
    %177 = vector.shape_cast %176 : vector<1x128xf32> to vector<128xf32>
    %178 = vector.shape_cast %177 : vector<128xf32> to vector<1x1x128xf32>
    %179 = vector.broadcast %178 : vector<1x1x128xf32> to vector<2x16x128xf32>
    %180 = arith.addf %175, %179 : vector<2x16x128xf32>
    %181 = arith.addf %180, %114 : vector<2x16x128xf32>
    %cst_207 = arith.constant 0.000000e+00 : f32
    %182 = vector.broadcast %cst_207 : f32 to vector<2x16x128xf32>
    %183 = arith.maximumf %181, %182 : vector<2x16x128xf32>
    %184 = arith.truncf %183 : vector<2x16x128xf32> to vector<2x16x128xbf16>
    %c0_208 = arith.constant 0 : index
    %c0_209 = arith.constant 0 : index
    %185 = vector.load %arg24[%c0_208, %c0_209] : memref<1x128xf32, #tpu.memory_space<vmem>>, vector<1x128xf32>
    %186 = vector.shape_cast %185 : vector<1x128xf32> to vector<128xf32>
    %187 = vector.shape_cast %186 : vector<128xf32> to vector<1x1x128xf32>
    %188 = vector.broadcast %187 : vector<1x1x128xf32> to vector<2x16x128xf32>
    %189 = arith.mulf %183, %188 : vector<2x16x128xf32>
    %c0_210 = arith.constant 0 : index
    %c0_211 = arith.constant 0 : index
    %190 = vector.load %arg25[%c0_210, %c0_211] : memref<1x128xf32, #tpu.memory_space<vmem>>, vector<1x128xf32>
    %191 = vector.shape_cast %190 : vector<1x128xf32> to vector<128xf32>
    %192 = vector.shape_cast %191 : vector<128xf32> to vector<1x1x128xf32>
    %193 = vector.broadcast %192 : vector<1x1x128xf32> to vector<2x16x128xf32>
    %194 = arith.addf %189, %193 : vector<2x16x128xf32>
    %cst_212 = arith.constant 0.000000e+00 : bf16
    %195 = vector.broadcast %cst_212 : bf16 to vector<2x3x128xbf16>
    %c0_213 = arith.constant 0 : index
    %c0_214 = arith.constant 0 : index
    %c0_215 = arith.constant 0 : index
    %196 = vector.load %arg33[%c0_213, %c0_214, %c0_215] : memref<2x24x128xbf16, #tpu.memory_space<vmem>>, vector<2x3x128xbf16>
    tpu.vector_store %arg33[%c0_213, %c0_214, %c0_215], %195 {strides = array<i32>} : memref<2x24x128xbf16, #tpu.memory_space<vmem>>, vector<2x3x128xbf16>,
    %cst_216 = arith.constant 0.000000e+00 : bf16
    %197 = vector.broadcast %cst_216 : bf16 to vector<2x5x128xbf16>
    %c0_217 = arith.constant 0 : index
    %c19_218 = arith.constant 19 : index
    %c0_219 = arith.constant 0 : index
    %198 = vector.load %arg33[%c0_217, %c19_218, %c0_219] : memref<2x24x128xbf16, #tpu.memory_space<vmem>>, vector<2x5x128xbf16>
    tpu.vector_store %arg33[%c0_217, %c19_218, %c0_219], %197 {strides = array<i32>} : memref<2x24x128xbf16, #tpu.memory_space<vmem>>, vector<2x5x128xbf16>,
    %c0_220 = arith.constant 0 : index
    %c3_221 = arith.constant 3 : index
    %c0_222 = arith.constant 0 : index
    %199 = vector.load %arg33[%c0_220, %c3_221, %c0_222] : memref<2x24x128xbf16, #tpu.memory_space<vmem>>, vector<2x16x128xbf16>
    tpu.vector_store %arg33[%c0_220, %c3_221, %c0_222], %184 {strides = array<i32>} : memref<2x24x128xbf16, #tpu.memory_space<vmem>>, vector<2x16x128xbf16>,
    %c0_223 = arith.constant 0 : index
    %c0_224 = arith.constant 0 : index
    %c0_225 = arith.constant 0 : index
    %200 = vector.load %arg33[%c0_223, %c0_224, %c0_225] : memref<2x24x128xbf16, #tpu.memory_space<vmem>>, vector<2x16x128xbf16>
    %c0_226 = arith.constant 0 : index
    %c1_227 = arith.constant 1 : index
    %c0_228 = arith.constant 0 : index
    %201 = vector.load %arg33[%c0_226, %c1_227, %c0_228] : memref<2x24x128xbf16, #tpu.memory_space<vmem>>, vector<2x16x128xbf16>
    %c0_229 = arith.constant 0 : index
    %c2_230 = arith.constant 2 : index
    %c0_231 = arith.constant 0 : index
    %202 = vector.load %arg33[%c0_229, %c2_230, %c0_231] : memref<2x24x128xbf16, #tpu.memory_space<vmem>>, vector<2x16x128xbf16>
    %c0_232 = arith.constant 0 : index
    %c3_233 = arith.constant 3 : index
    %c0_234 = arith.constant 0 : index
    %203 = vector.load %arg33[%c0_232, %c3_233, %c0_234] : memref<2x24x128xbf16, #tpu.memory_space<vmem>>, vector<2x16x128xbf16>
    %c0_235 = arith.constant 0 : index
    %c4_236 = arith.constant 4 : index
    %c0_237 = arith.constant 0 : index
    %204 = vector.load %arg33[%c0_235, %c4_236, %c0_237] : memref<2x24x128xbf16, #tpu.memory_space<vmem>>, vector<2x16x128xbf16>
    %c0_238 = arith.constant 0 : index
    %c5_239 = arith.constant 5 : index
    %c0_240 = arith.constant 0 : index
    %205 = vector.load %arg33[%c0_238, %c5_239, %c0_240] : memref<2x24x128xbf16, #tpu.memory_space<vmem>>, vector<2x16x128xbf16>
    %c0_241 = arith.constant 0 : index
    %c6_242 = arith.constant 6 : index
    %c0_243 = arith.constant 0 : index
    %206 = vector.load %arg33[%c0_241, %c6_242, %c0_243] : memref<2x24x128xbf16, #tpu.memory_space<vmem>>, vector<2x16x128xbf16>
    %207 = tpu.concatenate %200, %201, %202, %203, %204, %205, %206 in 2 : vector<2x16x128xbf16>, vector<2x16x128xbf16>, vector<2x16x128xbf16>, vector<2x16x128xbf16>, vector<2x16x128xbf16>, vector<2x16x128xbf16>, vector<2x16x128xbf16> -> vector<2x16x896xbf16>
    %208 = vector.shape_cast %207 : vector<2x16x896xbf16> to vector<32x896xbf16>
    %c0_244 = arith.constant 0 : index
    %c0_245 = arith.constant 0 : index
    %209 = vector.load %arg18[%c0_244, %c0_245] : memref<896x128xbf16, #tpu.memory_space<vmem>>, vector<896x128xbf16>
    %cst_246 = arith.constant dense<0.000000e+00> : vector<32x128xf32>
    %210 = tpu.matmul %208, %209, %cst_246 {dimension_numbers = #tpu.dot_dimension_numbers<[1], [0], [0], [1], [0, 0, 1, 1], [], []>} : vector<32x896xbf16>, vector<896x128xbf16>, vector<32x128xf32> -> vector<32x128xf32>
    %211 = vector.shape_cast %210 : vector<32x128xf32> to vector<2x16x128xf32>
    %c0_247 = arith.constant 0 : index
    %c0_248 = arith.constant 0 : index
    %212 = vector.load %arg19[%c0_247, %c0_248] : memref<1x128xf32, #tpu.memory_space<vmem>>, vector<1x128xf32>
    %213 = vector.shape_cast %212 : vector<1x128xf32> to vector<128xf32>
    %214 = vector.shape_cast %213 : vector<128xf32> to vector<1x1x128xf32>
    %215 = vector.broadcast %214 : vector<1x1x128xf32> to vector<2x16x128xf32>
    %216 = arith.addf %211, %215 : vector<2x16x128xf32>
    %cst_249 = arith.constant 0.000000e+00 : f32
    %217 = vector.broadcast %cst_249 : f32 to vector<2x16x128xf32>
    %218 = arith.maximumf %216, %217 : vector<2x16x128xf32>
    %219 = arith.truncf %218 : vector<2x16x128xf32> to vector<2x16x128xbf16>
    %cst_250 = arith.constant 0.000000e+00 : bf16
    %220 = vector.broadcast %cst_250 : bf16 to vector<2x2x128xbf16>
    %c0_251 = arith.constant 0 : index
    %c0_252 = arith.constant 0 : index
    %c0_253 = arith.constant 0 : index
    %221 = vector.load %arg34[%c0_251, %c0_252, %c0_253] : memref<2x24x128xbf16, #tpu.memory_space<vmem>>, vector<2x2x128xbf16>
    tpu.vector_store %arg34[%c0_251, %c0_252, %c0_253], %220 {strides = array<i32>} : memref<2x24x128xbf16, #tpu.memory_space<vmem>>, vector<2x2x128xbf16>,
    %cst_254 = arith.constant 0.000000e+00 : bf16
    %222 = vector.broadcast %cst_254 : bf16 to vector<2x6x128xbf16>
    %c0_255 = arith.constant 0 : index
    %c18_256 = arith.constant 18 : index
    %c0_257 = arith.constant 0 : index
    %223 = vector.load %arg34[%c0_255, %c18_256, %c0_257] : memref<2x24x128xbf16, #tpu.memory_space<vmem>>, vector<2x6x128xbf16>
    tpu.vector_store %arg34[%c0_255, %c18_256, %c0_257], %222 {strides = array<i32>} : memref<2x24x128xbf16, #tpu.memory_space<vmem>>, vector<2x6x128xbf16>,
    %c0_258 = arith.constant 0 : index
    %c2_259 = arith.constant 2 : index
    %c0_260 = arith.constant 0 : index
    %224 = vector.load %arg34[%c0_258, %c2_259, %c0_260] : memref<2x24x128xbf16, #tpu.memory_space<vmem>>, vector<2x16x128xbf16>
    tpu.vector_store %arg34[%c0_258, %c2_259, %c0_260], %219 {strides = array<i32>} : memref<2x24x128xbf16, #tpu.memory_space<vmem>>, vector<2x16x128xbf16>,
    %c0_261 = arith.constant 0 : index
    %c0_262 = arith.constant 0 : index
    %c0_263 = arith.constant 0 : index
    %225 = vector.load %arg34[%c0_261, %c0_262, %c0_263] : memref<2x24x128xbf16, #tpu.memory_space<vmem>>, vector<2x16x128xbf16>
    %c0_264 = arith.constant 0 : index
    %c1_265 = arith.constant 1 : index
    %c0_266 = arith.constant 0 : index
    %226 = vector.load %arg34[%c0_264, %c1_265, %c0_266] : memref<2x24x128xbf16, #tpu.memory_space<vmem>>, vector<2x16x128xbf16>
    %c0_267 = arith.constant 0 : index
    %c2_268 = arith.constant 2 : index
    %c0_269 = arith.constant 0 : index
    %227 = vector.load %arg34[%c0_267, %c2_268, %c0_269] : memref<2x24x128xbf16, #tpu.memory_space<vmem>>, vector<2x16x128xbf16>
    %c0_270 = arith.constant 0 : index
    %c3_271 = arith.constant 3 : index
    %c0_272 = arith.constant 0 : index
    %228 = vector.load %arg34[%c0_270, %c3_271, %c0_272] : memref<2x24x128xbf16, #tpu.memory_space<vmem>>, vector<2x16x128xbf16>
    %c0_273 = arith.constant 0 : index
    %c4_274 = arith.constant 4 : index
    %c0_275 = arith.constant 0 : index
    %229 = vector.load %arg34[%c0_273, %c4_274, %c0_275] : memref<2x24x128xbf16, #tpu.memory_space<vmem>>, vector<2x16x128xbf16>
    %230 = tpu.concatenate %225, %226, %227, %228, %229 in 2 : vector<2x16x128xbf16>, vector<2x16x128xbf16>, vector<2x16x128xbf16>, vector<2x16x128xbf16>, vector<2x16x128xbf16> -> vector<2x16x640xbf16>
    %231 = vector.shape_cast %230 : vector<2x16x640xbf16> to vector<32x640xbf16>
    %c0_276 = arith.constant 0 : index
    %c0_277 = arith.constant 0 : index
    %232 = vector.load %arg20[%c0_276, %c0_277] : memref<640x128xbf16, #tpu.memory_space<vmem>>, vector<640x128xbf16>
    %cst_278 = arith.constant dense<0.000000e+00> : vector<32x128xf32>
    %233 = tpu.matmul %231, %232, %cst_278 {dimension_numbers = #tpu.dot_dimension_numbers<[1], [0], [0], [1], [0, 0, 1, 1], [], []>} : vector<32x640xbf16>, vector<640x128xbf16>, vector<32x128xf32> -> vector<32x128xf32>
    %234 = vector.shape_cast %233 : vector<32x128xf32> to vector<2x16x128xf32>
    %c0_279 = arith.constant 0 : index
    %c0_280 = arith.constant 0 : index
    %235 = vector.load %arg21[%c0_279, %c0_280] : memref<1x128xf32, #tpu.memory_space<vmem>>, vector<1x128xf32>
    %236 = vector.shape_cast %235 : vector<1x128xf32> to vector<128xf32>
    %237 = vector.shape_cast %236 : vector<128xf32> to vector<1x1x128xf32>
    %238 = vector.broadcast %237 : vector<1x1x128xf32> to vector<2x16x128xf32>
    %239 = arith.addf %234, %238 : vector<2x16x128xf32>
    %cst_281 = arith.constant 0.000000e+00 : f32
    %240 = vector.broadcast %cst_281 : f32 to vector<2x16x128xf32>
    %241 = arith.maximumf %239, %240 : vector<2x16x128xf32>
    %242 = arith.truncf %241 : vector<2x16x128xf32> to vector<2x16x128xbf16>
    %cst_282 = arith.constant 0.000000e+00 : bf16
    %243 = vector.broadcast %cst_282 : bf16 to vector<2x1x128xbf16>
    %c0_283 = arith.constant 0 : index
    %c0_284 = arith.constant 0 : index
    %c0_285 = arith.constant 0 : index
    %244 = vector.load %arg35[%c0_283, %c0_284, %c0_285] : memref<2x24x128xbf16, #tpu.memory_space<vmem>>, vector<2x1x128xbf16>
    tpu.vector_store %arg35[%c0_283, %c0_284, %c0_285], %243 {strides = array<i32>} : memref<2x24x128xbf16, #tpu.memory_space<vmem>>, vector<2x1x128xbf16>,
    %cst_286 = arith.constant 0.000000e+00 : bf16
    %245 = vector.broadcast %cst_286 : bf16 to vector<2x7x128xbf16>
    %c0_287 = arith.constant 0 : index
    %c17_288 = arith.constant 17 : index
    %c0_289 = arith.constant 0 : index
    %246 = vector.load %arg35[%c0_287, %c17_288, %c0_289] : memref<2x24x128xbf16, #tpu.memory_space<vmem>>, vector<2x7x128xbf16>
    tpu.vector_store %arg35[%c0_287, %c17_288, %c0_289], %245 {strides = array<i32>} : memref<2x24x128xbf16, #tpu.memory_space<vmem>>, vector<2x7x128xbf16>,
    %c0_290 = arith.constant 0 : index
    %c1_291 = arith.constant 1 : index
    %c0_292 = arith.constant 0 : index
    %247 = vector.load %arg35[%c0_290, %c1_291, %c0_292] : memref<2x24x128xbf16, #tpu.memory_space<vmem>>, vector<2x16x128xbf16>
    tpu.vector_store %arg35[%c0_290, %c1_291, %c0_292], %242 {strides = array<i32>} : memref<2x24x128xbf16, #tpu.memory_space<vmem>>, vector<2x16x128xbf16>,
    %c0_293 = arith.constant 0 : index
    %c0_294 = arith.constant 0 : index
    %c0_295 = arith.constant 0 : index
    %248 = vector.load %arg35[%c0_293, %c0_294, %c0_295] : memref<2x24x128xbf16, #tpu.memory_space<vmem>>, vector<2x16x128xbf16>
    %c0_296 = arith.constant 0 : index
    %c1_297 = arith.constant 1 : index
    %c0_298 = arith.constant 0 : index
    %249 = vector.load %arg35[%c0_296, %c1_297, %c0_298] : memref<2x24x128xbf16, #tpu.memory_space<vmem>>, vector<2x16x128xbf16>
    %c0_299 = arith.constant 0 : index
    %c2_300 = arith.constant 2 : index
    %c0_301 = arith.constant 0 : index
    %250 = vector.load %arg35[%c0_299, %c2_300, %c0_301] : memref<2x24x128xbf16, #tpu.memory_space<vmem>>, vector<2x16x128xbf16>
    %251 = tpu.concatenate %248, %249, %250 in 2 : vector<2x16x128xbf16>, vector<2x16x128xbf16>, vector<2x16x128xbf16> -> vector<2x16x384xbf16>
    %252 = vector.shape_cast %251 : vector<2x16x384xbf16> to vector<32x384xbf16>
    %c0_302 = arith.constant 0 : index
    %c0_303 = arith.constant 0 : index
    %253 = vector.load %arg22[%c0_302, %c0_303] : memref<384x128xbf16, #tpu.memory_space<vmem>>, vector<384x128xbf16>
    %cst_304 = arith.constant dense<0.000000e+00> : vector<32x128xf32>
    %254 = tpu.matmul %252, %253, %cst_304 {dimension_numbers = #tpu.dot_dimension_numbers<[1], [0], [0], [1], [0, 0, 1, 1], [], []>} : vector<32x384xbf16>, vector<384x128xbf16>, vector<32x128xf32> -> vector<32x128xf32>
    %255 = vector.shape_cast %254 : vector<32x128xf32> to vector<2x16x128xf32>
    %c0_305 = arith.constant 0 : index
    %c0_306 = arith.constant 0 : index
    %256 = vector.load %arg23[%c0_305, %c0_306] : memref<1x128xf32, #tpu.memory_space<vmem>>, vector<1x128xf32>
    %257 = vector.shape_cast %256 : vector<1x128xf32> to vector<128xf32>
    %258 = vector.shape_cast %257 : vector<128xf32> to vector<1x1x128xf32>
    %259 = vector.broadcast %258 : vector<1x1x128xf32> to vector<2x16x128xf32>
    %260 = arith.addf %255, %259 : vector<2x16x128xf32>
    %261 = arith.addf %260, %194 : vector<2x16x128xf32>
    %cst_307 = arith.constant 0.000000e+00 : f32
    %262 = vector.broadcast %cst_307 : f32 to vector<2x16x128xf32>
    %263 = arith.maximumf %261, %262 : vector<2x16x128xf32>
    %cst_308 = arith.constant dense<0.000000e+00> : vector<2x128xf32>
    %264 = vector.multi_reduction <add>, %263, %cst_308 [1] : vector<2x16x128xf32> to vector<2x128xf32>
    %cst_309 = arith.constant 1.600000e+01 : f32
    %265 = vector.broadcast %cst_309 : f32 to vector<2x128xf32>
    %266 = arith.divf %264, %265 : vector<2x128xf32>
    %c0_310 = arith.constant 0 : index
    %c0_311 = arith.constant 0 : index
    %c0_312 = arith.constant 0 : index
    %267 = vector.load %arg26[%c0_310, %c0_311, %c0_312] : memref<2x1x128xf32, #tpu.memory_space<vmem>>, vector<2x1x128xf32>
    %268 = vector.shape_cast %267 : vector<2x1x128xf32> to vector<2x128xf32>
    %269 = vector.shape_cast %266 : vector<2x128xf32> to vector<2x1x128xf32>
    tpu.vector_store %arg26[%c0_310, %c0_311, %c0_312], %269 {strides = array<i32>} : memref<2x1x128xf32, #tpu.memory_space<vmem>>, vector<2x1x128xf32>,
    return
  }
  func.func @transform_0(%arg0: i32) -> (i32, i32, i32) {
    %c0_i32 = arith.constant 0 : i32
    %c0_i32_0 = arith.constant 0 : i32
    %c0_i32_1 = arith.constant 0 : i32
    return %arg0, %c0_i32, %c0_i32_0 : i32, i32, i32
  }
  func.func @transform_1(%arg0: i32) -> (i32, i32) {
    %c0_i32 = arith.constant 0 : i32
    %c0_i32_0 = arith.constant 0 : i32
    %c0_i32_1 = arith.constant 0 : i32
    return %c0_i32, %c0_i32_0 : i32, i32
  }
  func.func @transform_2(%arg0: i32) -> (i32, i32) {
    %c0_i32 = arith.constant 0 : i32
    %c0_i32_0 = arith.constant 0 : i32
    %c0_i32_1 = arith.constant 0 : i32
    return %c0_i32, %c0_i32_0 : i32, i32
  }
  func.func @transform_3(%arg0: i32) -> (i32, i32) {
    %c0_i32 = arith.constant 0 : i32
    %c0_i32_0 = arith.constant 0 : i32
    %c0_i32_1 = arith.constant 0 : i32
    return %c0_i32, %c0_i32_0 : i32, i32
  }
  func.func @transform_4(%arg0: i32) -> (i32, i32) {
    %c0_i32 = arith.constant 0 : i32
    %c0_i32_0 = arith.constant 0 : i32
    %c0_i32_1 = arith.constant 0 : i32
    return %c0_i32, %c0_i32_0 : i32, i32
  }
  func.func @transform_5(%arg0: i32) -> (i32, i32) {
    %c0_i32 = arith.constant 0 : i32
    %c0_i32_0 = arith.constant 0 : i32
    %c0_i32_1 = arith.constant 0 : i32
    return %c0_i32, %c0_i32_0 : i32, i32
  }
  func.func @transform_6(%arg0: i32) -> (i32, i32) {
    %c0_i32 = arith.constant 0 : i32
    %c0_i32_0 = arith.constant 0 : i32
    %c0_i32_1 = arith.constant 0 : i32
    return %c0_i32, %c0_i32_0 : i32, i32
  }
  func.func @transform_7(%arg0: i32) -> (i32, i32) {
    %c0_i32 = arith.constant 0 : i32
    %c0_i32_0 = arith.constant 0 : i32
    %c0_i32_1 = arith.constant 0 : i32
    return %c0_i32, %c0_i32_0 : i32, i32
  }
  func.func @transform_8(%arg0: i32) -> (i32, i32) {
    %c0_i32 = arith.constant 0 : i32
    %c0_i32_0 = arith.constant 0 : i32
    %c0_i32_1 = arith.constant 0 : i32
    return %c0_i32, %c0_i32_0 : i32, i32
  }
  func.func @transform_9(%arg0: i32) -> (i32, i32) {
    %c0_i32 = arith.constant 0 : i32
    %c0_i32_0 = arith.constant 0 : i32
    %c0_i32_1 = arith.constant 0 : i32
    return %c0_i32, %c0_i32_0 : i32, i32
  }
  func.func @transform_10(%arg0: i32) -> (i32, i32) {
    %c0_i32 = arith.constant 0 : i32
    %c0_i32_0 = arith.constant 0 : i32
    %c0_i32_1 = arith.constant 0 : i32
    return %c0_i32, %c0_i32_0 : i32, i32
  }
  func.func @transform_11(%arg0: i32) -> (i32, i32) {
    %c0_i32 = arith.constant 0 : i32
    %c0_i32_0 = arith.constant 0 : i32
    %c0_i32_1 = arith.constant 0 : i32
    return %c0_i32, %c0_i32_0 : i32, i32
  }
  func.func @transform_12(%arg0: i32) -> (i32, i32) {
    %c0_i32 = arith.constant 0 : i32
    %c0_i32_0 = arith.constant 0 : i32
    %c0_i32_1 = arith.constant 0 : i32
    return %c0_i32, %c0_i32_0 : i32, i32
  }
  func.func @transform_13(%arg0: i32) -> (i32, i32) {
    %c0_i32 = arith.constant 0 : i32
    %c0_i32_0 = arith.constant 0 : i32
    %c0_i32_1 = arith.constant 0 : i32
    return %c0_i32, %c0_i32_0 : i32, i32
  }
  func.func @transform_14(%arg0: i32) -> (i32, i32) {
    %c0_i32 = arith.constant 0 : i32
    %c0_i32_0 = arith.constant 0 : i32
    %c0_i32_1 = arith.constant 0 : i32
    return %c0_i32, %c0_i32_0 : i32, i32
  }
  func.func @transform_15(%arg0: i32) -> (i32, i32) {
    %c0_i32 = arith.constant 0 : i32
    %c0_i32_0 = arith.constant 0 : i32
    %c0_i32_1 = arith.constant 0 : i32
    return %c0_i32, %c0_i32_0 : i32, i32
  }
  func.func @transform_16(%arg0: i32) -> (i32, i32) {
    %c0_i32 = arith.constant 0 : i32
    %c0_i32_0 = arith.constant 0 : i32
    %c0_i32_1 = arith.constant 0 : i32
    return %c0_i32, %c0_i32_0 : i32, i32
  }
  func.func @transform_17(%arg0: i32) -> (i32, i32) {
    %c0_i32 = arith.constant 0 : i32
    %c0_i32_0 = arith.constant 0 : i32
    %c0_i32_1 = arith.constant 0 : i32
    return %c0_i32, %c0_i32_0 : i32, i32
  }
  func.func @transform_18(%arg0: i32) -> (i32, i32) {
    %c0_i32 = arith.constant 0 : i32
    %c0_i32_0 = arith.constant 0 : i32
    %c0_i32_1 = arith.constant 0 : i32
    return %c0_i32, %c0_i32_0 : i32, i32
  }
  func.func @transform_19(%arg0: i32) -> (i32, i32) {
    %c0_i32 = arith.constant 0 : i32
    %c0_i32_0 = arith.constant 0 : i32
    %c0_i32_1 = arith.constant 0 : i32
    return %c0_i32, %c0_i32_0 : i32, i32
  }
  func.func @transform_20(%arg0: i32) -> (i32, i32) {
    %c0_i32 = arith.constant 0 : i32
    %c0_i32_0 = arith.constant 0 : i32
    %c0_i32_1 = arith.constant 0 : i32
    return %c0_i32, %c0_i32_0 : i32, i32
  }
  func.func @transform_21(%arg0: i32) -> (i32, i32) {
    %c0_i32 = arith.constant 0 : i32
    %c0_i32_0 = arith.constant 0 : i32
    %c0_i32_1 = arith.constant 0 : i32
    return %c0_i32, %c0_i32_0 : i32, i32
  }
  func.func @transform_22(%arg0: i32) -> (i32, i32) {
    %c0_i32 = arith.constant 0 : i32
    %c0_i32_0 = arith.constant 0 : i32
    %c0_i32_1 = arith.constant 0 : i32
    return %c0_i32, %c0_i32_0 : i32, i32
  }
  func.func @transform_23(%arg0: i32) -> (i32, i32) {
    %c0_i32 = arith.constant 0 : i32
    %c0_i32_0 = arith.constant 0 : i32
    %c0_i32_1 = arith.constant 0 : i32
    return %c0_i32, %c0_i32_0 : i32, i32
  }
  func.func @transform_24(%arg0: i32) -> (i32, i32) {
    %c0_i32 = arith.constant 0 : i32
    %c0_i32_0 = arith.constant 0 : i32
    %c0_i32_1 = arith.constant 0 : i32
    return %c0_i32, %c0_i32_0 : i32, i32
  }
  func.func @transform_25(%arg0: i32) -> (i32, i32, i32) {
    %c0_i32 = arith.constant 0 : i32
    %c0_i32_0 = arith.constant 0 : i32
    %c0_i32_1 = arith.constant 0 : i32
    return %arg0, %c0_i32, %c0_i32_0 : i32, i32, i32
  }
}

</mosaic_0001>

<llo_original>
// kernel: resnet_body_fwd.1
$region0: #{resnet_body_fwd.1}
  #allocation0 [shape = 'u32[]', space=smem, size = 0x4, offset = 0x4, fixed_abs, tag = 'smem constant byte address 0x4 - core index']
  #allocation1 [shape = 'u32[144,128]{1,0:T(1,128)}', space=vmem, size = 0x12000, scoped, tag = 'internal scratch']
  #allocation2 [shape = 'bf16[2,24,4]{2,1,0:T(8,128)(2,1)}', space=vmem, size = 0x3000, scoped, tag = 'scratch operand']
  #allocation3 [shape = 'bf16[2,24,64]{2,1,0:T(8,128)(2,1)}', space=vmem, size = 0x3000, scoped, tag = 'scratch operand']
  #allocation4 [shape = 'bf16[2,24,64]{2,1,0:T(8,128)(2,1)}', space=vmem, size = 0x3000, scoped, tag = 'scratch operand']
  #allocation5 [shape = 'bf16[2,24,64]{2,1,0:T(8,128)(2,1)}', space=vmem, size = 0x3000, scoped, tag = 'scratch operand']
  #allocation6 [shape = 'bf16[2,24,128]{2,1,0:T(8,128)(2,1)}', space=vmem, size = 0x3000, scoped, tag = 'scratch operand']
  #allocation7 [shape = 'bf16[2,24,128]{2,1,0:T(8,128)(2,1)}', space=vmem, size = 0x3000, scoped, tag = 'scratch operand']
  #allocation8 [shape = 'bf16[2,24,128]{2,1,0:T(8,128)(2,1)}', space=vmem, size = 0x3000, scoped, tag = 'scratch operand']
  #allocation9 [shape = 'bf16[2,24,128]{2,1,0:T(8,128)(2,1)}', space=vmem, size = 0x3000, scoped, tag = 'scratch operand']
  #allocation10 [shape = 'bf16[2,24,128]{2,1,0:T(8,128)(2,1)}', space=vmem, size = 0x3000, scoped, tag = 'scratch operand']
  %s0 = inlined_call_operand.vmem [shape: f32[2,16,4], index: 0, kind: input, shape index: {}]
  %s1 = inlined_call_operand.vmem [shape: bf16[28,64], index: 1, kind: input, shape index: {}]
  %s2 = inlined_call_operand.vmem [shape: f32[1,64], index: 2, kind: input, shape index: {}]
  %s3 = inlined_call_operand.hbm [shape: bf16[320,64], index: 3, kind: input, shape index: {}]
  %s4 = inlined_call_operand.vmem [shape: f32[1,64], index: 4, kind: input, shape index: {}]
  %s5 = inlined_call_operand.hbm [shape: bf16[192,64], index: 5, kind: input, shape index: {}]
  %s6 = inlined_call_operand.vmem [shape: f32[1,64], index: 6, kind: input, shape index: {}]
  %s7 = inlined_call_operand.vmem [shape: bf16[4,64], index: 7, kind: input, shape index: {}]
  %s8 = inlined_call_operand.vmem [shape: f32[1,64], index: 8, kind: input, shape index: {}]
  %s9 = inlined_call_operand.hbm [shape: bf16[448,128], index: 9, kind: input, shape index: {}]
  %s10 = inlined_call_operand.vmem [shape: f32[1,128], index: 10, kind: input, shape index: {}]
  %s11 = inlined_call_operand.hbm [shape: bf16[640,128], index: 11, kind: input, shape index: {}]
  %s12 = inlined_call_operand.vmem [shape: f32[1,128], index: 12, kind: input, shape index: {}]
  %s13 = inlined_call_operand.vmem [shape: bf16[384,128], index: 13, kind: input, shape index: {}]
  %s14 = inlined_call_operand.vmem [shape: f32[1,128], index: 14, kind: input, shape index: {}]
  %s15 = inlined_call_operand.hbm [shape: bf16[64,128], index: 15, kind: input, shape index: {}]
  %s16 = inlined_call_operand.vmem [shape: f32[1,128], index: 16, kind: input, shape index: {}]
  %s17 = inlined_call_operand.hbm [shape: bf16[896,128], index: 17, kind: input, shape index: {}]
  %s18 = inlined_call_operand.vmem [shape: f32[1,128], index: 18, kind: input, shape index: {}]
  %s19 = inlined_call_operand.hbm [shape: bf16[640,128], index: 19, kind: input, shape index: {}]
  %s20 = inlined_call_operand.vmem [shape: f32[1,128], index: 20, kind: input, shape index: {}]
  %s21 = inlined_call_operand.hbm [shape: bf16[384,128], index: 21, kind: input, shape index: {}]
  %s22 = inlined_call_operand.vmem [shape: f32[1,128], index: 22, kind: input, shape index: {}]
  %s23 = inlined_call_operand.vmem [shape: f32[1,128], index: 23, kind: input, shape index: {}]
  %s24 = inlined_call_operand.vmem [shape: f32[1,128], index: 24, kind: input, shape index: {}]
  %s25 = inlined_call_operand.hbm [shape: f32[2,1,128], index: 25, kind: output, shape index: {}]
  %s26 = sld [smem:[#allocation0]]
  $region142: #{resnet_body_fwd.1} parent=0
    _
  %s28 = ssub.s32 1, %s26
  %s29 = scalar_select 0, %s28, %s26
  $region1: #{resnet_body_fwd.1} parent=0
    #allocation11 [shape = 'u8[81920]{0}', space=vmem, size = 0x14000, scoped, tag = 'input window, operand 3, single buffered']
    #allocation12 [shape = 's32[1]{0}', space=sflag, size = 0x4, scoped, tag = 'scoped memory for resnet_body_fwd.1']
    #allocation13 [shape = 's32[1]{0}', space=sflag, size = 0x4, scoped, tag = 'scoped memory for resnet_body_fwd.1']
    #allocation14 [shape = 'u8[49152]{0}', space=vmem, size = 0xc000, scoped, tag = 'input window, operand 5, single buffered']
    #allocation15 [shape = 's32[1]{0}', space=sflag, size = 0x4, scoped, tag = 'scoped memory for resnet_body_fwd.1']
    #allocation16 [shape = 'u8[114688]{0}', space=vmem, size = 0x1c000, scoped, tag = 'input window, operand 9, single buffered']
    #allocation17 [shape = 'u8[163840]{0}', space=vmem, size = 0x28000, scoped, tag = 'input window, operand 11, single buffered']
    #allocation18 [shape = 's32[1]{0}', space=sflag, size = 0x4, scoped, tag = 'scoped memory for resnet_body_fwd.1']
    #allocation19 [shape = 'u8[16384]{0}', space=vmem, size = 0x4000, scoped, tag = 'input window, operand 15, single buffered']
    #allocation20 [shape = 'u8[229376]{0}', space=vmem, size = 0x38000, scoped, tag = 'input window, operand 17, single buffered']
    #allocation21 [shape = 's32[1]{0}', space=sflag, size = 0x4, scoped, tag = 'scoped memory for resnet_body_fwd.1']
    #allocation22 [shape = 'u8[163840]{0}', space=vmem, size = 0x28000, scoped, tag = 'input window, operand 19, single buffered']
    #allocation23 [shape = 'u8[98304]{0}', space=vmem, size = 0x18000, scoped, tag = 'input window, operand 21, single buffered']
    #allocation24 [shape = 's32[1]{0}', space=sflag, size = 0x4, scoped, tag = 'scoped memory for resnet_body_fwd.1']
    #allocation25 [shape = 'u8[1024]{0}', space=vmem, size = 0x400, scoped, tag = 'output window, operand 0, single buffered']
    %30 = vsyncpa [#allocation12], 0
    %31 = vsyncpa [#allocation15], 0
    %32 = vsyncpa [#allocation18], 0
    %33 = vsyncpa [#allocation21], 0
    %34 = vsyncpa [#allocation24], 0
    %35 = vsyncpa [#allocation13], 0
    // Predicated region
    $region2: #{resnet_body_fwd.1} parent=1 // pred_check
      _
    $region3: #{resnet_body_fwd.1} parent=1 // pred_check_branch
      %37 = sbr.rel (0) target = $region5
    $region4: #{resnet_body_fwd.1} parent=1 // pred_region
      _
    $region5: #{resnet_body_fwd.1} parent=1 // pred_fallthru
      _
    // Predicated region
    $region6: #{resnet_body_fwd.1} parent=1 // pred_check
      _
    $region7: #{resnet_body_fwd.1} parent=1 // pred_check_branch
      %39 = sbr.rel (0) target = $region9
    $region8: #{resnet_body_fwd.1} parent=1 // pred_region
      _
    $region9: #{resnet_body_fwd.1} parent=1 // pred_fallthru
      _
    // Predicated region
    $region10: #{resnet_body_fwd.1} parent=1 // pred_check
      _
    $region11: #{resnet_body_fwd.1} parent=1 // pred_check_branch
      %41 = sbr.rel (0) target = $region13
    $region12: #{resnet_body_fwd.1} parent=1 // pred_region
      _
    $region13: #{resnet_body_fwd.1} parent=1 // pred_fallthru
      _
    // Predicated region
    $region14: #{resnet_body_fwd.1} parent=1 // pred_check
      _
    $region15: #{resnet_body_fwd.1} parent=1 // pred_check_branch
      %43 = sbr.rel (0) target = $region17
    $region16: #{resnet_body_fwd.1} parent=1 // pred_region
      %s45 = ssub.s32 2560, 2560
      %46 = vsyncadd [#allocation12], %s45
      %s47 = sshll.u32 [#allocation11], 4
      %s48 = int_to_ptr.vmem [resolvable:$true] %s47
      %53 = dma.hbm_to_vmem [thread:$0]  %s3, 2560, %s48, [#allocation12], 64, 64, 4
    $region17: #{resnet_body_fwd.1} parent=1 // pred_fallthru
      _
    // Predicated region
    $region18: #{resnet_body_fwd.1} parent=1 // pred_check
      _
    $region19: #{resnet_body_fwd.1} parent=1 // pred_check_branch
      %55 = sbr.rel (0) target = $region21
    $region20: #{resnet_body_fwd.1} parent=1 // pred_region
      _
    $region21: #{resnet_body_fwd.1} parent=1 // pred_fallthru
      _
    // Predicated region
    $region22: #{resnet_body_fwd.1} parent=1 // pred_check
      _
    $region23: #{resnet_body_fwd.1} parent=1 // pred_check_branch
      %57 = sbr.rel (0) target = $region25
    $region24: #{resnet_body_fwd.1} parent=1 // pred_region
      %s59 = ssub.s32 1536, 1536
      %60 = vsyncadd [#allocation15], %s59
      %s61 = sshll.u32 [#allocation14], 4
      %s62 = int_to_ptr.vmem [resolvable:$true] %s61
      %67 = dma.hbm_to_vmem [thread:$0]  %s5, 1536, %s62, [#allocation15], 64, 64, 4
    $region25: #{resnet_body_fwd.1} parent=1 // pred_fallthru
      _
    // Predicated region
    $region26: #{resnet_body_fwd.1} parent=1 // pred_check
      _
    $region27: #{resnet_body_fwd.1} parent=1 // pred_check_branch
      %69 = sbr.rel (0) target = $region29
    $region28: #{resnet_body_fwd.1} parent=1 // pred_region
      _
    $region29: #{resnet_body_fwd.1} parent=1 // pred_fallthru
      _
    // Predicated region
    $region30: #{resnet_body_fwd.1} parent=1 // pred_check
      _
    $region31: #{resnet_body_fwd.1} parent=1 // pred_check_branch
      %71 = sbr.rel (0) target = $region33
    $region32: #{resnet_body_fwd.1} parent=1 // pred_region
      _
    $region33: #{resnet_body_fwd.1} parent=1 // pred_fallthru
      _
    // Predicated region
    $region34: #{resnet_body_fwd.1} parent=1 // pred_check
      _
    $region35: #{resnet_body_fwd.1} parent=1 // pred_check_branch
      %73 = sbr.rel (0) target = $region37
    $region36: #{resnet_body_fwd.1} parent=1 // pred_region
      _
    $region37: #{resnet_body_fwd.1} parent=1 // pred_fallthru
      _
    // Predicated region
    $region38: #{resnet_body_fwd.1} parent=1 // pred_check
      _
    $region39: #{resnet_body_fwd.1} parent=1 // pred_check_branch
      %75 = sbr.rel (0) target = $region41
    $region40: #{resnet_body_fwd.1} parent=1 // pred_region
      %s77 = ssub.s32 3584, 3584
      %78 = vsyncadd [#allocation15], %s77
      %s79 = sshll.u32 [#allocation16], 4
      %s80 = int_to_ptr.vmem [resolvable:$true] %s79
      %85 = dma.hbm_to_vmem [thread:$0]  %s9, 3584, %s80, [#allocation15], 64, 64, 4
    $region41: #{resnet_body_fwd.1} parent=1 // pred_fallthru
      _
    // Predicated region
    $region42: #{resnet_body_fwd.1} parent=1 // pred_check
      _
    $region43: #{resnet_body_fwd.1} parent=1 // pred_check_branch
      %87 = sbr.rel (0) target = $region45
    $region44: #{resnet_body_fwd.1} parent=1 // pred_region
      _
    $region45: #{resnet_body_fwd.1} parent=1 // pred_fallthru
      _
    // Predicated region
    $region46: #{resnet_body_fwd.1} parent=1 // pred_check
      _
    $region47: #{resnet_body_fwd.1} parent=1 // pred_check_branch
      %89 = sbr.rel (0) target = $region49
    $region48: #{resnet_body_fwd.1} parent=1 // pred_region
      %s91 = ssub.s32 5120, 5120
      %92 = vsyncadd [#allocation18], %s91
      %s93 = sshll.u32 [#allocation17], 4
      %s94 = int_to_ptr.vmem [resolvable:$true] %s93
      %99 = dma.hbm_to_vmem [thread:$0]  %s11, 5120, %s94, [#allocation18], 64, 64, 4
    $region49: #{resnet_body_fwd.1} parent=1 // pred_fallthru
      _
    // Predicated region
    $region50: #{resnet_body_fwd.1} parent=1 // pred_check
      _
    $region51: #{resnet_body_fwd.1} parent=1 // pred_check_branch
      %101 = sbr.rel (0) target = $region53
    $region52: #{resnet_body_fwd.1} parent=1 // pred_region
      _
    $region53: #{resnet_body_fwd.1} parent=1 // pred_fallthru
      _
    // Predicated region
    $region54: #{resnet_body_fwd.1} parent=1 // pred_check
      _
    $region55: #{resnet_body_fwd.1} parent=1 // pred_check_branch
      %103 = sbr.rel (0) target = $region57
    $region56: #{resnet_body_fwd.1} parent=1 // pred_region
      _
    $region57: #{resnet_body_fwd.1} parent=1 // pred_fallthru
      _
    // Predicated region
    $region58: #{resnet_body_fwd.1} parent=1 // pred_check
      _
    $region59: #{resnet_body_fwd.1} parent=1 // pred_check_branch
      %105 = sbr.rel (0) target = $region61
    $region60: #{resnet_body_fwd.1} parent=1 // pred_region
      _
    $region61: #{resnet_body_fwd.1} parent=1 // pred_fallthru
      _
    // Predicated region
    $region62: #{resnet_body_fwd.1} parent=1 // pred_check
      _
    $region63: #{resnet_body_fwd.1} parent=1 // pred_check_branch
      %107 = sbr.rel (0) target = $region65
    $region64: #{resnet_body_fwd.1} parent=1 // pred_region
      %s109 = ssub.s32 512, 512
      %110 = vsyncadd [#allocation18], %s109
      %s111 = sshll.u32 [#allocation19], 4
      %s112 = int_to_ptr.vmem [resolvable:$true] %s111
      %117 = dma.hbm_to_vmem [thread:$0]  %s15, 512, %s112, [#allocation18], 64, 64, 4
    $region65: #{resnet_body_fwd.1} parent=1 // pred_fallthru
      _
    // Predicated region
    $region66: #{resnet_body_fwd.1} parent=1 // pred_check
      _
    $region67: #{resnet_body_fwd.1} parent=1 // pred_check_branch
      %119 = sbr.rel (0) target = $region69
    $region68: #{resnet_body_fwd.1} parent=1 // pred_region
      _
    $region69: #{resnet_body_fwd.1} parent=1 // pred_fallthru
      _
    // Predicated region
    $region70: #{resnet_body_fwd.1} parent=1 // pred_check
      _
    $region71: #{resnet_body_fwd.1} parent=1 // pred_check_branch
      %121 = sbr.rel (0) target = $region73
    $region72: #{resnet_body_fwd.1} parent=1 // pred_region
      %s123 = ssub.s32 7168, 7168
      %124 = vsyncadd [#allocation21], %s123
      %s125 = sshll.u32 [#allocation20], 4
      %s126 = int_to_ptr.vmem [resolvable:$true] %s125
      %131 = dma.hbm_to_vmem [thread:$0]  %s17, 7168, %s126, [#allocation21], 64, 64, 4
    $region73: #{resnet_body_fwd.1} parent=1 // pred_fallthru
      _
    // Predicated region
    $region74: #{resnet_body_fwd.1} parent=1 // pred_check
      _
    $region75: #{resnet_body_fwd.1} parent=1 // pred_check_branch
      %133 = sbr.rel (0) target = $region77
    $region76: #{resnet_body_fwd.1} parent=1 // pred_region
      _
    $region77: #{resnet_body_fwd.1} parent=1 // pred_fallthru
      _
    // Predicated region
    $region78: #{resnet_body_fwd.1} parent=1 // pred_check
      _
    $region79: #{resnet_body_fwd.1} parent=1 // pred_check_branch
      %135 = sbr.rel (0) target = $region81
    $region80: #{resnet_body_fwd.1} parent=1 // pred_region
      %s137 = ssub.s32 5120, 5120
      %138 = vsyncadd [#allocation21], %s137
      %s139 = sshll.u32 [#allocation22], 4
      %s140 = int_to_ptr.vmem [resolvable:$true] %s139
      %145 = dma.hbm_to_vmem [thread:$0]  %s19, 5120, %s140, [#allocation21], 64, 64, 4
    $region81: #{resnet_body_fwd.1} parent=1 // pred_fallthru
      _
    // Predicated region
    $region82: #{resnet_body_fwd.1} parent=1 // pred_check
      _
    $region83: #{resnet_body_fwd.1} parent=1 // pred_check_branch
      %147 = sbr.rel (0) target = $region85
    $region84: #{resnet_body_fwd.1} parent=1 // pred_region
      _
    $region85: #{resnet_body_fwd.1} parent=1 // pred_fallthru
      _
    // Predicated region
    $region86: #{resnet_body_fwd.1} parent=1 // pred_check
      _
    $region87: #{resnet_body_fwd.1} parent=1 // pred_check_branch
      %149 = sbr.rel (0) target = $region89
    $region88: #{resnet_body_fwd.1} parent=1 // pred_region
      %s151 = ssub.s32 3072, 3072
      %152 = vsyncadd [#allocation24], %s151
      %s153 = sshll.u32 [#allocation23], 4
      %s154 = int_to_ptr.vmem [resolvable:$true] %s153
      %159 = dma.hbm_to_vmem [thread:$0]  %s21, 3072, %s154, [#allocation24], 64, 64, 4
    $region89: #{resnet_body_fwd.1} parent=1 // pred_fallthru
      _
    // Predicated region
    $region90: #{resnet_body_fwd.1} parent=1 // pred_check
      _
    $region91: #{resnet_body_fwd.1} parent=1 // pred_check_branch
      %161 = sbr.rel (0) target = $region93
    $region92: #{resnet_body_fwd.1} parent=1 // pred_region
      _
    $region93: #{resnet_body_fwd.1} parent=1 // pred_fallthru
      _
    // Predicated region
    $region94: #{resnet_body_fwd.1} parent=1 // pred_check
      _
    $region95: #{resnet_body_fwd.1} parent=1 // pred_check_branch
      %163 = sbr.rel (0) target = $region97
    $region96: #{resnet_body_fwd.1} parent=1 // pred_region
      _
    $region97: #{resnet_body_fwd.1} parent=1 // pred_fallthru
      _
    // Predicated region
    $region98: #{resnet_body_fwd.1} parent=1 // pred_check
      _
    $region99: #{resnet_body_fwd.1} parent=1 // pred_check_branch
      %165 = sbr.rel (0) target = $region101
    $region100: #{resnet_body_fwd.1} parent=1 // pred_region
      _
    $region101: #{resnet_body_fwd.1} parent=1 // pred_fallthru
      _
    // Predicated region
    $region102: #{resnet_body_fwd.1} parent=1 // pred_check
      _
    $region103: #{resnet_body_fwd.1} parent=1 // pred_check_branch
      %167 = sbr.rel (0) target = $region105
    $region104: #{resnet_body_fwd.1} parent=1 // pred_region
      %168 = dma.done [#allocation12], 2560
    $region105: #{resnet_body_fwd.1} parent=1 // pred_fallthru
      _
    // Predicated region
    $region106: #{resnet_body_fwd.1} parent=1 // pred_check
      _
    $region107: #{resnet_body_fwd.1} parent=1 // pred_check_branch
      %170 = sbr.rel (0) target = $region109
    $region108: #{resnet_body_fwd.1} parent=1 // pred_region
      %171 = dma.done [#allocation15], 1536
    $region109: #{resnet_body_fwd.1} parent=1 // pred_fallthru
      _
    // Predicated region
    $region110: #{resnet_body_fwd.1} parent=1 // pred_check
      _
    $region111: #{resnet_body_fwd.1} parent=1 // pred_check_branch
      %173 = sbr.rel (0) target = $region113
    $region112: #{resnet_body_fwd.1} parent=1 // pred_region
      %174 = dma.done [#allocation15], 3584
    $region113: #{resnet_body_fwd.1} parent=1 // pred_fallthru
      _
    // Predicated region
    $region114: #{resnet_body_fwd.1} parent=1 // pred_check
      _
    $region115: #{resnet_body_fwd.1} parent=1 // pred_check_branch
      %176 = sbr.rel (0) target = $region117
    $region116: #{resnet_body_fwd.1} parent=1 // pred_region
      %177 = dma.done [#allocation18], 5120
    $region117: #{resnet_body_fwd.1} parent=1 // pred_fallthru
      _
    // Predicated region
    $region118: #{resnet_body_fwd.1} parent=1 // pred_check
      _
    $region119: #{resnet_body_fwd.1} parent=1 // pred_check_branch
      %179 = sbr.rel (0) target = $region121
    $region120: #{resnet_body_fwd.1} parent=1 // pred_region
      %180 = dma.done [#allocation18], 512
    $region121: #{resnet_body_fwd.1} parent=1 // pred_fallthru
      _
    // Predicated region
    $region122: #{resnet_body_fwd.1} parent=1 // pred_check
      _
    $region123: #{resnet_body_fwd.1} parent=1 // pred_check_branch
      %182 = sbr.rel (0) target = $region125
    $region124: #{resnet_body_fwd.1} parent=1 // pred_region
      %183 = dma.done [#allocation21], 7168
    $region125: #{resnet_body_fwd.1} parent=1 // pred_fallthru
      _
    // Predicated region
    $region126: #{resnet_body_fwd.1} parent=1 // pred_check
      _
    $region127: #{resnet_body_fwd.1} parent=1 // pred_check_branch
      %185 = sbr.rel (0) target = $region129
    $region128: #{resnet_body_fwd.1} parent=1 // pred_region
      %186 = dma.done [#allocation21], 5120
    $region129: #{resnet_body_fwd.1} parent=1 // pred_fallthru
      _
    // Predicated region
    $region130: #{resnet_body_fwd.1} parent=1 // pred_check
      _
    $region131: #{resnet_body_fwd.1} parent=1 // pred_check_branch
      %188 = sbr.rel (0) target = $region133
    $region132: #{resnet_body_fwd.1} parent=1 // pred_region
      %189 = dma.done [#allocation24], 3072
    $region133: #{resnet_body_fwd.1} parent=1 // pred_fallthru
      _
    %v191 = vld [vmem:[%s0] sm:$0xff]
    %v192 = vld [vmem:[%s0 + $0x8] sm:$0xff]
    %v193 = vld [vmem:[%s0 + $0x10] sm:$0xff]
    %v194 = vld [vmem:[%s0 + $0x18] sm:$0xff]
    %v195 = vpack.c.bf16 %v192, %v191
    %v196 = vpack.c.bf16 %v194, %v193
    %v197 = vld [vmem:[%s7] sm:$0x3]
    %vm198 = vcmask 31744
    %v200 = vsel %vm198, %v195, 0
    %v203 = vsel %vm198, %v196, 0
    %vm205 = vcmask 1041408
    %v207 = vsel %vm205, %v197, 0
    %209 = vmatprep.subr.bf16.mxu0 0
    %210 = vmatpush1.bf16.msra.mxu0 %v207
    %211 = vmatprep.subr.bf16.mxu0 0
    %212 = vmatpush1.bf16.msra.mxu0 0
    %213 = vmatprep.subr.bf16.mxu0 0
    %214 = vmatpush1.bf16.msra.mxu0 0
    %215 = vmatprep.subr.bf16.mxu0 0
    %216 = vmatpush1.bf16.msra.mxu0 0
    %217 = vmatprep.subr.bf16.mxu0 0
    %218 = vmatpush1.bf16.msra.mxu0 0
    %219 = vmatprep.subr.bf16.mxu0 0
    %220 = vmatpush1.bf16.msra.mxu0 0
    %221 = vmatprep.subr.bf16.mxu0 0
    %222 = vmatpush1.bf16.msra.mxu0 0
    %223 = vmatprep.subr.bf16.mxu0 0
    %224 = vmatpush1.bf16.msra.mxu0 0
    %225 = vmatprep.subr.bf16.mxu0 0
    %226 = vmatpush1.bf16.msra.mxu0 0
    %227 = vmatprep.subr.bf16.mxu0 0
    %228 = vmatpush1.bf16.msra.mxu0 0
    %229 = vmatprep.subr.bf16.mxu0 0
    %230 = vmatpush1.bf16.msra.mxu0 0
    %231 = vmatprep.subr.bf16.mxu0 0
    %232 = vmatpush1.bf16.msra.mxu0 0
    %233 = vmatprep.subr.bf16.mxu0 0
    %234 = vmatpush1.bf16.msra.mxu0 0
    %235 = vmatprep.subr.bf16.mxu0 0
    %236 = vmatpush1.bf16.msra.mxu0 0
    %237 = vmatprep.subr.bf16.mxu0 0
    %238 = vmatpush1.bf16.msra.mxu0 0
    %239 = vmatprep.subr.bf16.mxu0 0
    %240 = vmatpush1.bf16.msra.mxu0 0
    %241 = vmatprep.mubr.bf16.mxu0 0
    %242 = vmatmul.mubr.bf16.gmra.mrb[0].mxu0 %v200
    %v243 = vpop.f32.mrb[0].mxu0
    %v244 = vadd.f32 0.0, %v243
    %v245 = vpop.f32.mrb[0].mxu0
    %v246 = vpop.f32.mrb[0].mxu0
    %v247 = vadd.f32 0.0, %v246
    %v248 = vpop.f32.mrb[0].mxu0
    %249 = vmatprep.mubr.bf16.mxu0 0
    %250 = vmatmul.mubr.bf16.gmra.mrb[0].mxu0 %v203
    %v251 = vpop.f32.mrb[0].mxu0
    %v252 = vadd.f32 0.0, %v251
    %v253 = vpop.f32.mrb[0].mxu0
    %v254 = vpop.f32.mrb[0].mxu0
    %v255 = vadd.f32 0.0, %v254
    %v256 = vpop.f32.mrb[0].mxu0
    %257 = vdwg.mxu0
    %v258 = vld [vmem:[%s8] sm:$0x1]
    %v260 = vlaneseq
    %v261 = vshrl.u32 %v260, 7
    %v262 = vsub.s32 0, %v261
    %v263 = vrot.slane %v258, %v262
    %v265 = vadd.f32 %v244, %v263
    %v266 = vadd.f32 %v247, %v263
    %v267 = vadd.f32 %v252, %v263
    %v268 = vadd.f32 %v255, %v263
    %vm269 = vcmask 25600
    %vm270 = vsmask.f32 1280
    %vm271 = vmand %vm269, %vm270
    %v272 = vld [vmem:[#allocation2] sm:$0x3]
    %v273 = vsel %vm271, 0, %v272
    %274 = vst [vmem:[#allocation2] sm:$0x3] %v273
    %v275 = vld [vmem:[#allocation2 + $0xc] sm:$0x3]
    %v276 = vsel %vm271, 0, %v275
    %277 = vst [vmem:[#allocation2 + $0xc] sm:$0x3] %v276
    %vm278 = vcmask 27649
    %vm279 = vsmask.f32 7942
    %vm280 = vmand %vm278, %vm279
    %v281 = vld [vmem:[#allocation2 + $0x8] sm:$0xe]
    %v282 = vsel %vm280, 0, %v281
    %283 = vst [vmem:[#allocation2 + $0x8] sm:$0xe] %v282
    %v284 = vld [vmem:[#allocation2 + $0x14] sm:$0xe]
    %v285 = vsel %vm280, 0, %v284
    %286 = vst [vmem:[#allocation2 + $0x14] sm:$0xe] %v285
    %v289 = vunpack.c.l.b16 %v195
    %v290 = vunpack.c.h.b16 %v195
    %v291 = vunpack.c.l.b16 %v196
    %v292 = vunpack.c.h.b16 %v196
    %v293 = vpack.c.b16 %v289, %v289
    %v294 = vpack.c.b16 %v290, %v290
    %v295 = vpack.c.b16 %v291, %v291
    %v296 = vpack.c.b16 %v292, %v292
    %vm297 = vsmask.f32 5392
    %vm298 = vmor %vm270, %vm297
    %v300 = vshrl.u32 %v293, 16
    %v302 = vrot.slane %v300, 6
    %v303 = vshll.u32 %v293, 16
    %v305 = vrot.slane %v303, 7
    %v306 = vor.u32 %v302, %v305
    %v307 = vrot.slane %v306, 4
    %v309 = vshrl.u32 %v294, 16
    %v311 = vrot.slane %v309, 6
    %v312 = vshll.u32 %v294, 16
    %v314 = vrot.slane %v312, 7
    %v315 = vor.u32 %v311, %v314
    %v316 = vsel %vm298, %v307, %v315
    %v317 = vrot.slane %v315, 4
    %v319 = vshrl.u32 %v295, 16
    %v321 = vrot.slane %v319, 6
    %v322 = vshll.u32 %v295, 16
    %v324 = vrot.slane %v322, 7
    %v325 = vor.u32 %v321, %v324
    %v326 = vrot.slane %v325, 4
    %v328 = vshrl.u32 %v296, 16
    %v330 = vrot.slane %v328, 6
    %v331 = vshll.u32 %v296, 16
    %v333 = vrot.slane %v331, 7
    %v334 = vor.u32 %v330, %v333
    %v335 = vsel %vm298, %v326, %v334
    %v336 = vrot.slane %v334, 4
    %v343 = vld [vmem:[#allocation2] sm:$0xe]
    %v344 = vsel %vm280, %v306, %v343
    %345 = vst [vmem:[#allocation2] sm:$0xe] %v344
    %vm346 = vcmask 27648
    %347 = vst.msk [vmem:[#allocation2 + $0x4] sm:$0xf] %vm346, %v316
    %v348 = vld [vmem:[#allocation2 + $0x8] sm:$0x3]
    %v349 = vsel %vm271, %v317, %v348
    %350 = vst [vmem:[#allocation2 + $0x8] sm:$0x3] %v349
    %v351 = vld [vmem:[#allocation2 + $0xc] sm:$0xe]
    %v352 = vsel %vm280, %v325, %v351
    %353 = vst [vmem:[#allocation2 + $0xc] sm:$0xe] %v352
    %354 = vst.msk [vmem:[#allocation2 + $0x10] sm:$0xf] %vm346, %v335
    %v355 = vld [vmem:[#allocation2 + $0x14] sm:$0x3]
    %v356 = vsel %vm271, %v336, %v355
    %357 = vst [vmem:[#allocation2 + $0x14] sm:$0x3] %v356
    %v358 = vld [vmem:[#allocation2] sm:$0xf]
    %v359 = vld [vmem:[#allocation2 + $0x4] sm:$0xf]
    %v360 = vld [vmem:[#allocation2 + $0xc] sm:$0xf]
    %v361 = vld [vmem:[#allocation2 + $0x10] sm:$0xf]
    %v362 = vld [vmem:[%s1] sm:$0x3]
    %v363 = vld [vmem:[#allocation2 + $0x8] sm:$0x1]
    %v364 = vld [vmem:[#allocation2 + $0x14] sm:$0x1]
    %vm365 = vsmask.f32 3328
    %vm366 = vsmask.f32 7440
    %vm367 = vmor %vm365, %vm366
    %v369 = vshrl.u32 %v358, 16
    %v371 = vrot.slane %v369, 4
    %v372 = vshll.u32 %v358, 16
    %v374 = vrot.slane %v372, 5
    %v375 = vor.u32 %v371, %v374
    %v376 = vrot.slane %v375, 4
    %v378 = vshll.u32 %v359, 16
    %v380 = vrot.slane %v378, 5
    %v381 = vsel %vm367, %v376, %v380
    %v382 = vshrl.u32 %v359, 16
    %v384 = vrot.slane %v382, 4
    %v385 = vor.u32 %v384, %v380
    %v386 = vrot.slane %v385, 4
    %v388 = vshll.u32 %v363, 16
    %v390 = vrot.slane %v388, 5
    %v391 = vsel %vm367, %v386, %v390
    %v393 = vshrl.u32 %v360, 16
    %v395 = vrot.slane %v393, 4
    %v396 = vshll.u32 %v360, 16
    %v398 = vrot.slane %v396, 5
    %v399 = vor.u32 %v395, %v398
    %v400 = vrot.slane %v399, 4
    %v402 = vshll.u32 %v361, 16
    %v404 = vrot.slane %v402, 5
    %v405 = vsel %vm367, %v400, %v404
    %v406 = vshrl.u32 %v361, 16
    %v408 = vrot.slane %v406, 4
    %v409 = vor.u32 %v408, %v404
    %v410 = vrot.slane %v409, 4
    %v412 = vshll.u32 %v364, 16
    %v414 = vrot.slane %v412, 5
    %v415 = vsel %vm367, %v410, %v414
    %v416 = vld [vmem:[%s1] sm:$0xc]
    %v417 = vunpack.c.l.b16 %v381
    %v418 = vunpack.c.l.b16 %v391
    %v419 = vunpack.c.l.b16 %v405
    %v420 = vunpack.c.l.b16 %v415
    %v421 = vpack.c.b16 %v418, %v417
    %v422 = vpack.c.b16 %v420, %v419
    %v424 = vunpack.c.l.b16 %v416
    %v425 = vpack.c.b16 %v424, %v424
    %v426 = vrot.slane %v425, 2
    %v428 = vsel %vm198, %v421, 0
    %v431 = vsel %vm198, %v422, 0
    %v434 = vsel %vm205, %v426, 0
    %436 = vmatprep.subr.bf16.mxu0 0
    %437 = vmatpush1.bf16.msra.mxu0 %v434
    %438 = vmatprep.subr.bf16.mxu0 0
    %439 = vmatpush1.bf16.msra.mxu0 0
    %440 = vmatprep.subr.bf16.mxu0 0
    %441 = vmatpush1.bf16.msra.mxu0 0
    %442 = vmatprep.subr.bf16.mxu0 0
    %443 = vmatpush1.bf16.msra.mxu0 0
    %444 = vmatprep.subr.bf16.mxu0 0
    %445 = vmatpush1.bf16.msra.mxu0 0
    %446 = vmatprep.subr.bf16.mxu0 0
    %447 = vmatpush1.bf16.msra.mxu0 0
    %448 = vmatprep.subr.bf16.mxu0 0
    %449 = vmatpush1.bf16.msra.mxu0 0
    %450 = vmatprep.subr.bf16.mxu0 0
    %451 = vmatpush1.bf16.msra.mxu0 0
    %452 = vmatprep.subr.bf16.mxu0 0
    %453 = vmatpush1.bf16.msra.mxu0 0
    %454 = vmatprep.subr.bf16.mxu0 0
    %455 = vmatpush1.bf16.msra.mxu0 0
    %456 = vmatprep.subr.bf16.mxu0 0
    %457 = vmatpush1.bf16.msra.mxu0 0
    %458 = vmatprep.subr.bf16.mxu0 0
    %459 = vmatpush1.bf16.msra.mxu0 0
    %460 = vmatprep.subr.bf16.mxu0 0
    %461 = vmatpush1.bf16.msra.mxu0 0
    %462 = vmatprep.subr.bf16.mxu0 0
    %463 = vmatpush1.bf16.msra.mxu0 0
    %464 = vmatprep.subr.bf16.mxu0 0
    %465 = vmatpush1.bf16.msra.mxu0 0
    %466 = vmatprep.subr.bf16.mxu0 0
    %467 = vmatpush1.bf16.msra.mxu0 0
    %468 = vmatprep.mubr.bf16.mxu0 0
    %469 = vmatmul.mubr.bf16.gmra.mrb[0].mxu0 %v428
    %v470 = vpop.f32.mrb[0].mxu0
    %v471 = vadd.f32 0.0, %v470
    %v472 = vpop.f32.mrb[0].mxu0
    %v473 = vpop.f32.mrb[0].mxu0
    %v474 = vadd.f32 0.0, %v473
    %v475 = vpop.f32.mrb[0].mxu0
    %476 = vmatprep.mubr.bf16.mxu0 0
    %477 = vmatmul.mubr.bf16.gmra.mrb[0].mxu0 %v431
    %v478 = vpop.f32.mrb[0].mxu0
    %v479 = vadd.f32 0.0, %v478
    %v480 = vpop.f32.mrb[0].mxu0
    %v481 = vpop.f32.mrb[0].mxu0
    %v482 = vadd.f32 0.0, %v481
    %v483 = vpop.f32.mrb[0].mxu0
    %484 = vdwg.mxu0
    %v489 = vunpack.c.l.b16 %v358
    %v490 = vunpack.c.l.b16 %v359
    %v491 = vunpack.c.l.b16 %v360
    %v492 = vunpack.c.l.b16 %v361
    %v493 = vpack.c.b16 %v490, %v489
    %v494 = vpack.c.b16 %v492, %v491
    %v496 = vsel %vm198, %v493, 0
    %v499 = vsel %vm198, %v494, 0
    %v502 = vsel %vm205, %v362, 0
    %504 = vmatprep.subr.bf16.mxu0 0
    %505 = vmatpush1.bf16.msra.mxu0 %v502
    %506 = vmatprep.subr.bf16.mxu0 0
    %507 = vmatpush1.bf16.msra.mxu0 0
    %508 = vmatprep.subr.bf16.mxu0 0
    %509 = vmatpush1.bf16.msra.mxu0 0
    %510 = vmatprep.subr.bf16.mxu0 0
    %511 = vmatpush1.bf16.msra.mxu0 0
    %512 = vmatprep.subr.bf16.mxu0 0
    %513 = vmatpush1.bf16.msra.mxu0 0
    %514 = vmatprep.subr.bf16.mxu0 0
    %515 = vmatpush1.bf16.msra.mxu0 0
    %516 = vmatprep.subr.bf16.mxu0 0
    %517 = vmatpush1.bf16.msra.mxu0 0
    %518 = vmatprep.subr.bf16.mxu0 0
    %519 = vmatpush1.bf16.msra.mxu0 0
    %520 = vmatprep.subr.bf16.mxu0 0
    %521 = vmatpush1.bf16.msra.mxu0 0
    %522 = vmatprep.subr.bf16.mxu0 0
    %523 = vmatpush1.bf16.msra.mxu0 0
    %524 = vmatprep.subr.bf16.mxu0 0
    %525 = vmatpush1.bf16.msra.mxu0 0
    %526 = vmatprep.subr.bf16.mxu0 0
    %527 = vmatpush1.bf16.msra.mxu0 0
    %528 = vmatprep.subr.bf16.mxu0 0
    %529 = vmatpush1.bf16.msra.mxu0 0
    %530 = vmatprep.subr.bf16.mxu0 0
    %531 = vmatpush1.bf16.msra.mxu0 0
    %532 = vmatprep.subr.bf16.mxu0 0
    %533 = vmatpush1.bf16.msra.mxu0 0
    %534 = vmatprep.subr.bf16.mxu0 0
    %535 = vmatpush1.bf16.msra.mxu0 0
    %536 = vmatprep.mubr.bf16.mxu0 0
    %537 = vmatmul.mubr.bf16.gmra.mrb[0].mxu0 %v496
    %v538 = vpop.f32.mrb[0].mxu0
    %v539 = vadd.f32 %v471, %v538
    %v540 = vpop.f32.mrb[0].mxu0
    %v541 = vpop.f32.mrb[0].mxu0
    %v542 = vadd.f32 %v474, %v541
    %v543 = vpop.f32.mrb[0].mxu0
    %544 = vmatprep.mubr.bf16.mxu0 0
    %545 = vmatmul.mubr.bf16.gmra.mrb[0].mxu0 %v499
    %v546 = vpop.f32.mrb[0].mxu0
    %v547 = vadd.f32 %v479, %v546
    %v548 = vpop.f32.mrb[0].mxu0
    %v549 = vpop.f32.mrb[0].mxu0
    %v550 = vadd.f32 %v482, %v549
    %v551 = vpop.f32.mrb[0].mxu0
    %552 = vdwg.mxu0
    %v553 = vld [vmem:[#allocation2] sm:$0xe]
    %v554 = vld [vmem:[#allocation2 + $0xc] sm:$0xe]
    %vm559 = vcmask 1042432
    %vm560 = vcmask 1046532
    %vm561 = vmor %vm559, %vm560
    %v562 = vrot.slane %v553, 5
    %v563 = vrot.slane %v562, 4
    %v564 = vrot.slane %v359, 5
    %v565 = vsel %vm561, %v563, %v564
    %v566 = vrot.slane %v564, 4
    %v567 = vrot.slane %v363, 5
    %v568 = vsel %vm561, %v566, %v567
    %v569 = vrot.slane %v554, 5
    %v570 = vrot.slane %v569, 4
    %v571 = vrot.slane %v361, 5
    %v572 = vsel %vm561, %v570, %v571
    %v573 = vrot.slane %v571, 4
    %v574 = vrot.slane %v364, 5
    %v575 = vsel %vm561, %v573, %v574
    %v576 = vld [vmem:[%s1 + $0x4] sm:$0x3]
    %v577 = vunpack.c.l.b16 %v565
    %v578 = vunpack.c.l.b16 %v568
    %v579 = vunpack.c.l.b16 %v572
    %v580 = vunpack.c.l.b16 %v575
    %v581 = vpack.c.b16 %v578, %v577
    %v582 = vpack.c.b16 %v580, %v579
    %v584 = vsel %vm198, %v581, 0
    %v587 = vsel %vm198, %v582, 0
    %v590 = vsel %vm205, %v576, 0
    %592 = vmatprep.subr.bf16.mxu0 0
    %593 = vmatpush1.bf16.msra.mxu0 %v590
    %594 = vmatprep.subr.bf16.mxu0 0
    %595 = vmatpush1.bf16.msra.mxu0 0
    %596 = vmatprep.subr.bf16.mxu0 0
    %597 = vmatpush1.bf16.msra.mxu0 0
    %598 = vmatprep.subr.bf16.mxu0 0
    %599 = vmatpush1.bf16.msra.mxu0 0
    %600 = vmatprep.subr.bf16.mxu0 0
    %601 = vmatpush1.bf16.msra.mxu0 0
    %602 = vmatprep.subr.bf16.mxu0 0
    %603 = vmatpush1.bf16.msra.mxu0 0
    %604 = vmatprep.subr.bf16.mxu0 0
    %605 = vmatpush1.bf16.msra.mxu0 0
    %606 = vmatprep.subr.bf16.mxu0 0
    %607 = vmatpush1.bf16.msra.mxu0 0
    %608 = vmatprep.subr.bf16.mxu0 0
    %609 = vmatpush1.bf16.msra.mxu0 0
    %610 = vmatprep.subr.bf16.mxu0 0
    %611 = vmatpush1.bf16.msra.mxu0 0
    %612 = vmatprep.subr.bf16.mxu0 0
    %613 = vmatpush1.bf16.msra.mxu0 0
    %614 = vmatprep.subr.bf16.mxu0 0
    %615 = vmatpush1.bf16.msra.mxu0 0
    %616 = vmatprep.subr.bf16.mxu0 0
    %617 = vmatpush1.bf16.msra.mxu0 0
    %618 = vmatprep.subr.bf16.mxu0 0
    %619 = vmatpush1.bf16.msra.mxu0 0
    %620 = vmatprep.subr.bf16.mxu0 0
    %621 = vmatpush1.bf16.msra.mxu0 0
    %622 = vmatprep.subr.bf16.mxu0 0
    %623 = vmatpush1.bf16.msra.mxu0 0
    %624 = vmatprep.mubr.bf16.mxu0 0
    %625 = vmatmul.mubr.bf16.gmra.mrb[0].mxu0 %v584
    %v626 = vpop.f32.mrb[0].mxu0
    %v627 = vadd.f32 0.0, %v626
    %v628 = vpop.f32.mrb[0].mxu0
    %v629 = vpop.f32.mrb[0].mxu0
    %v630 = vadd.f32 0.0, %v629
    %v631 = vpop.f32.mrb[0].mxu0
    %632 = vmatprep.mubr.bf16.mxu0 0
    %633 = vmatmul.mubr.bf16.gmra.mrb[0].mxu0 %v587
    %v634 = vpop.f32.mrb[0].mxu0
    %v635 = vadd.f32 0.0, %v634
    %v636 = vpop.f32.mrb[0].mxu0
    %v637 = vpop.f32.mrb[0].mxu0
    %v638 = vadd.f32 0.0, %v637
    %v639 = vpop.f32.mrb[0].mxu0
    %640 = vdwg.mxu0
    %v641 = vadd.f32 %v539, %v627
    %v642 = vadd.f32 %v542, %v630
    %v643 = vadd.f32 %v547, %v635
    %v644 = vadd.f32 %v550, %v638
    %v645 = vld [vmem:[#allocation2 + $0x8] sm:$0x3]
    %v646 = vld [vmem:[#allocation2 + $0x14] sm:$0x3]
    %vm647 = vsmask.f32 2304
    %vm648 = vsmask.f32 6416
    %vm649 = vmor %vm647, %vm648
    %v651 = vshrl.u32 %v553, 16
    %v653 = vrot.slane %v651, 5
    %v654 = vshll.u32 %v553, 16
    %v656 = vrot.slane %v654, 6
    %v657 = vor.u32 %v653, %v656
    %v658 = vrot.slane %v657, 4
    %v659 = vrot.slane %v382, 5
    %v660 = vrot.slane %v378, 6
    %v661 = vor.u32 %v659, %v660
    %v662 = vsel %vm649, %v658, %v661
    %v663 = vrot.slane %v661, 4
    %v665 = vshrl.u32 %v645, 16
    %v667 = vrot.slane %v665, 5
    %v668 = vshll.u32 %v645, 16
    %v670 = vrot.slane %v668, 6
    %v671 = vor.u32 %v667, %v670
    %v672 = vsel %vm649, %v663, %v671
    %v674 = vshrl.u32 %v554, 16
    %v676 = vrot.slane %v674, 5
    %v677 = vshll.u32 %v554, 16
    %v679 = vrot.slane %v677, 6
    %v680 = vor.u32 %v676, %v679
    %v681 = vrot.slane %v680, 4
    %v682 = vrot.slane %v406, 5
    %v683 = vrot.slane %v402, 6
    %v684 = vor.u32 %v682, %v683
    %v685 = vsel %vm649, %v681, %v684
    %v686 = vrot.slane %v684, 4
    %v688 = vshrl.u32 %v646, 16
    %v690 = vrot.slane %v688, 5
    %v691 = vshll.u32 %v646, 16
    %v693 = vrot.slane %v691, 6
    %v694 = vor.u32 %v690, %v693
    %v695 = vsel %vm649, %v686, %v694
    %v696 = vld [vmem:[%s1 + $0x4] sm:$0xc]
    %v697 = vunpack.c.l.b16 %v662
    %v698 = vunpack.c.l.b16 %v672
    %v699 = vunpack.c.l.b16 %v685
    %v700 = vunpack.c.l.b16 %v695
    %v701 = vpack.c.b16 %v698, %v697
    %v702 = vpack.c.b16 %v700, %v699
    %v704 = vunpack.c.l.b16 %v696
    %v705 = vpack.c.b16 %v704, %v704
    %v706 = vrot.slane %v705, 2
    %v708 = vsel %vm198, %v701, 0
    %v711 = vsel %vm198, %v702, 0
    %v714 = vsel %vm205, %v706, 0
    %716 = vmatprep.subr.bf16.mxu0 0
    %717 = vmatpush1.bf16.msra.mxu0 %v714
    %718 = vmatprep.subr.bf16.mxu0 0
    %719 = vmatpush1.bf16.msra.mxu0 0
    %720 = vmatprep.subr.bf16.mxu0 0
    %721 = vmatpush1.bf16.msra.mxu0 0
    %722 = vmatprep.subr.bf16.mxu0 0
    %723 = vmatpush1.bf16.msra.mxu0 0
    %724 = vmatprep.subr.bf16.mxu0 0
    %725 = vmatpush1.bf16.msra.mxu0 0
    %726 = vmatprep.subr.bf16.mxu0 0
    %727 = vmatpush1.bf16.msra.mxu0 0
    %728 = vmatprep.subr.bf16.mxu0 0
    %729 = vmatpush1.bf16.msra.mxu0 0
    %730 = vmatprep.subr.bf16.mxu0 0
    %731 = vmatpush1.bf16.msra.mxu0 0
    %732 = vmatprep.subr.bf16.mxu0 0
    %733 = vmatpush1.bf16.msra.mxu0 0
    %734 = vmatprep.subr.bf16.mxu0 0
    %735 = vmatpush1.bf16.msra.mxu0 0
    %736 = vmatprep.subr.bf16.mxu0 0
    %737 = vmatpush1.bf16.msra.mxu0 0
    %738 = vmatprep.subr.bf16.mxu0 0
    %739 = vmatpush1.bf16.msra.mxu0 0
    %740 = vmatprep.subr.bf16.mxu0 0
    %741 = vmatpush1.bf16.msra.mxu0 0
    %742 = vmatprep.subr.bf16.mxu0 0
    %743 = vmatpush1.bf16.msra.mxu0 0
    %744 = vmatprep.subr.bf16.mxu0 0
    %745 = vmatpush1.bf16.msra.mxu0 0
    %746 = vmatprep.subr.bf16.mxu0 0
    %747 = vmatpush1.bf16.msra.mxu0 0
    %748 = vmatprep.mubr.bf16.mxu0 0
    %749 = vmatmul.mubr.bf16.gmra.mrb[0].mxu0 %v708
    %v750 = vpop.f32.mrb[0].mxu0
    %v751 = vadd.f32 0.0, %v750
    %v752 = vpop.f32.mrb[0].mxu0
    %v753 = vpop.f32.mrb[0].mxu0
    %v754 = vadd.f32 0.0, %v753
    %v755 = vpop.f32.mrb[0].mxu0
    %756 = vmatprep.mubr.bf16.mxu0 0
    %757 = vmatmul.mubr.bf16.gmra.mrb[0].mxu0 %v711
    %v758 = vpop.f32.mrb[0].mxu0
    %v759 = vadd.f32 0.0, %v758
    %v760 = vpop.f32.mrb[0].mxu0
    %v761 = vpop.f32.mrb[0].mxu0
    %v762 = vadd.f32 0.0, %v761
    %v763 = vpop.f32.mrb[0].mxu0
    %764 = vdwg.mxu0
    %v765 = vadd.f32 %v641, %v751
    %v766 = vadd.f32 %v642, %v754
    %v767 = vadd.f32 %v643, %v759
    %v768 = vadd.f32 %v644, %v762
    %v769 = vld [vmem:[#allocation2] sm:$0xc]
    %v770 = vld [vmem:[#allocation2 + $0xc] sm:$0xc]
    %vm775 = vcmask 1041408
    %vm776 = vcmask 1045508
    %vm777 = vmor %vm775, %vm776
    %v778 = vrot.slane %v769, 6
    %v779 = vrot.slane %v778, 4
    %v780 = vrot.slane %v359, 6
    %v781 = vsel %vm777, %v779, %v780
    %v782 = vrot.slane %v780, 4
    %v783 = vrot.slane %v645, 6
    %v784 = vsel %vm777, %v782, %v783
    %v785 = vrot.slane %v770, 6
    %v786 = vrot.slane %v785, 4
    %v787 = vrot.slane %v361, 6
    %v788 = vsel %vm777, %v786, %v787
    %v789 = vrot.slane %v787, 4
    %v790 = vrot.slane %v646, 6
    %v791 = vsel %vm777, %v789, %v790
    %v792 = vld [vmem:[%s1 + $0x8] sm:$0x3]
    %v793 = vunpack.c.l.b16 %v781
    %v794 = vunpack.c.l.b16 %v784
    %v795 = vunpack.c.l.b16 %v788
    %v796 = vunpack.c.l.b16 %v791
    %v797 = vpack.c.b16 %v794, %v793
    %v798 = vpack.c.b16 %v796, %v795
    %v800 = vsel %vm198, %v797, 0
    %v803 = vsel %vm198, %v798, 0
    %v806 = vsel %vm205, %v792, 0
    %808 = vmatprep.subr.bf16.mxu0 0
    %809 = vmatpush1.bf16.msra.mxu0 %v806
    %810 = vmatprep.subr.bf16.mxu0 0
    %811 = vmatpush1.bf16.msra.mxu0 0
    %812 = vmatprep.subr.bf16.mxu0 0
    %813 = vmatpush1.bf16.msra.mxu0 0
    %814 = vmatprep.subr.bf16.mxu0 0
    %815 = vmatpush1.bf16.msra.mxu0 0
    %816 = vmatprep.subr.bf16.mxu0 0
    %817 = vmatpush1.bf16.msra.mxu0 0
    %818 = vmatprep.subr.bf16.mxu0 0
    %819 = vmatpush1.bf16.msra.mxu0 0
    %820 = vmatprep.subr.bf16.mxu0 0
    %821 = vmatpush1.bf16.msra.mxu0 0
    %822 = vmatprep.subr.bf16.mxu0 0
    %823 = vmatpush1.bf16.msra.mxu0 0
    %824 = vmatprep.subr.bf16.mxu0 0
    %825 = vmatpush1.bf16.msra.mxu0 0
    %826 = vmatprep.subr.bf16.mxu0 0
    %827 = vmatpush1.bf16.msra.mxu0 0
    %828 = vmatprep.subr.bf16.mxu0 0
    %829 = vmatpush1.bf16.msra.mxu0 0
    %830 = vmatprep.subr.bf16.mxu0 0
    %831 = vmatpush1.bf16.msra.mxu0 0
    %832 = vmatprep.subr.bf16.mxu0 0
    %833 = vmatpush1.bf16.msra.mxu0 0
    %834 = vmatprep.subr.bf16.mxu0 0
    %835 = vmatpush1.bf16.msra.mxu0 0
    %836 = vmatprep.subr.bf16.mxu0 0
    %837 = vmatpush1.bf16.msra.mxu0 0
    %838 = vmatprep.subr.bf16.mxu0 0
    %839 = vmatpush1.bf16.msra.mxu0 0
    %840 = vmatprep.mubr.bf16.mxu0 0
    %841 = vmatmul.mubr.bf16.gmra.mrb[0].mxu0 %v800
    %v842 = vpop.f32.mrb[0].mxu0
    %v843 = vadd.f32 0.0, %v842
    %v844 = vpop.f32.mrb[0].mxu0
    %v845 = vpop.f32.mrb[0].mxu0
    %v846 = vadd.f32 0.0, %v845
    %v847 = vpop.f32.mrb[0].mxu0
    %848 = vmatprep.mubr.bf16.mxu0 0
    %849 = vmatmul.mubr.bf16.gmra.mrb[0].mxu0 %v803
    %v850 = vpop.f32.mrb[0].mxu0
    %v851 = vadd.f32 0.0, %v850
    %v852 = vpop.f32.mrb[0].mxu0
    %v853 = vpop.f32.mrb[0].mxu0
    %v854 = vadd.f32 0.0, %v853
    %v855 = vpop.f32.mrb[0].mxu0
    %856 = vdwg.mxu0
    %v857 = vadd.f32 %v765, %v843
    %v858 = vadd.f32 %v766, %v846
    %v859 = vadd.f32 %v767, %v851
    %v860 = vadd.f32 %v768, %v854
    %v861 = vld [vmem:[#allocation2 + $0x8] sm:$0x7]
    %v862 = vld [vmem:[#allocation2 + $0x14] sm:$0x7]
    %v864 = vshrl.u32 %v769, 16
    %v866 = vrot.slane %v864, 6
    %v867 = vshll.u32 %v769, 16
    %v869 = vrot.slane %v867, 7
    %v870 = vor.u32 %v866, %v869
    %v871 = vrot.slane %v870, 4
    %v872 = vrot.slane %v382, 6
    %v873 = vrot.slane %v378, 7
    %v874 = vor.u32 %v872, %v873
    %v875 = vsel %vm298, %v871, %v874
    %v876 = vrot.slane %v874, 4
    %v878 = vshrl.u32 %v861, 16
    %v880 = vrot.slane %v878, 6
    %v881 = vshll.u32 %v861, 16
    %v883 = vrot.slane %v881, 7
    %v884 = vor.u32 %v880, %v883
    %v885 = vsel %vm298, %v876, %v884
    %v887 = vshrl.u32 %v770, 16
    %v889 = vrot.slane %v887, 6
    %v890 = vshll.u32 %v770, 16
    %v892 = vrot.slane %v890, 7
    %v893 = vor.u32 %v889, %v892
    %v894 = vrot.slane %v893, 4
    %v895 = vrot.slane %v406, 6
    %v896 = vrot.slane %v402, 7
    %v897 = vor.u32 %v895, %v896
    %v898 = vsel %vm298, %v894, %v897
    %v899 = vrot.slane %v897, 4
    %v901 = vshrl.u32 %v862, 16
    %v903 = vrot.slane %v901, 6
    %v904 = vshll.u32 %v862, 16
    %v906 = vrot.slane %v904, 7
    %v907 = vor.u32 %v903, %v906
    %v908 = vsel %vm298, %v899, %v907
    %v909 = vld [vmem:[%s1 + $0x8] sm:$0xc]
    %v910 = vunpack.c.l.b16 %v875
    %v911 = vunpack.c.l.b16 %v885
    %v912 = vunpack.c.l.b16 %v898
    %v913 = vunpack.c.l.b16 %v908
    %v914 = vpack.c.b16 %v911, %v910
    %v915 = vpack.c.b16 %v913, %v912
    %v917 = vunpack.c.l.b16 %v909
    %v918 = vpack.c.b16 %v917, %v917
    %v919 = vrot.slane %v918, 2
    %v921 = vsel %vm198, %v914, 0
    %v924 = vsel %vm198, %v915, 0
    %v927 = vsel %vm205, %v919, 0
    %929 = vmatprep.subr.bf16.mxu0 0
    %930 = vmatpush1.bf16.msra.mxu0 %v927
    %931 = vmatprep.subr.bf16.mxu0 0
    %932 = vmatpush1.bf16.msra.mxu0 0
    %933 = vmatprep.subr.bf16.mxu0 0
    %934 = vmatpush1.bf16.msra.mxu0 0
    %935 = vmatprep.subr.bf16.mxu0 0
    %936 = vmatpush1.bf16.msra.mxu0 0
    %937 = vmatprep.subr.bf16.mxu0 0
    %938 = vmatpush1.bf16.msra.mxu0 0
    %939 = vmatprep.subr.bf16.mxu0 0
    %940 = vmatpush1.bf16.msra.mxu0 0
    %941 = vmatprep.subr.bf16.mxu0 0
    %942 = vmatpush1.bf16.msra.mxu0 0
    %943 = vmatprep.subr.bf16.mxu0 0
    %944 = vmatpush1.bf16.msra.mxu0 0
    %945 = vmatprep.subr.bf16.mxu0 0
    %946 = vmatpush1.bf16.msra.mxu0 0
    %947 = vmatprep.subr.bf16.mxu0 0
    %948 = vmatpush1.bf16.msra.mxu0 0
    %949 = vmatprep.subr.bf16.mxu0 0
    %950 = vmatpush1.bf16.msra.mxu0 0
    %951 = vmatprep.subr.bf16.mxu0 0
    %952 = vmatpush1.bf16.msra.mxu0 0
    %953 = vmatprep.subr.bf16.mxu0 0
    %954 = vmatpush1.bf16.msra.mxu0 0
    %955 = vmatprep.subr.bf16.mxu0 0
    %956 = vmatpush1.bf16.msra.mxu0 0
    %957 = vmatprep.subr.bf16.mxu0 0
    %958 = vmatpush1.bf16.msra.mxu0 0
    %959 = vmatprep.subr.bf16.mxu0 0
    %960 = vmatpush1.bf16.msra.mxu0 0
    %961 = vmatprep.mubr.bf16.mxu0 0
    %962 = vmatmul.mubr.bf16.gmra.mrb[0].mxu0 %v921
    %v963 = vpop.f32.mrb[0].mxu0
    %v964 = vadd.f32 0.0, %v963
    %v965 = vpop.f32.mrb[0].mxu0
    %v966 = vpop.f32.mrb[0].mxu0
    %v967 = vadd.f32 0.0, %v966
    %v968 = vpop.f32.mrb[0].mxu0
    %969 = vmatprep.mubr.bf16.mxu0 0
    %970 = vmatmul.mubr.bf16.gmra.mrb[0].mxu0 %v924
    %v971 = vpop.f32.mrb[0].mxu0
    %v972 = vadd.f32 0.0, %v971
    %v973 = vpop.f32.mrb[0].mxu0
    %v974 = vpop.f32.mrb[0].mxu0
    %v975 = vadd.f32 0.0, %v974
    %v976 = vpop.f32.mrb[0].mxu0
    %977 = vdwg.mxu0
    %v978 = vadd.f32 %v857, %v964
    %v979 = vadd.f32 %v858, %v967
    %v980 = vadd.f32 %v859, %v972
    %v981 = vadd.f32 %v860, %v975
    %v982 = vld [vmem:[#allocation2] sm:$0x8]
    %v983 = vld [vmem:[#allocation2 + $0xc] sm:$0x8]
    %vm988 = vcmask 1040384
    %vm989 = vcmask 1044484
    %vm990 = vmor %vm988, %vm989
    %v991 = vrot.slane %v982, 7
    %v992 = vrot.slane %v991, 4
    %v993 = vrot.slane %v359, 7
    %v994 = vsel %vm990, %v992, %v993
    %v995 = vrot.slane %v993, 4
    %v996 = vrot.slane %v861, 7
    %v997 = vsel %vm990, %v995, %v996
    %v998 = vrot.slane %v983, 7
    %v999 = vrot.slane %v998, 4
    %v1000 = vrot.slane %v361, 7
    %v1001 = vsel %vm990, %v999, %v1000
    %v1002 = vrot.slane %v1000, 4
    %v1003 = vrot.slane %v862, 7
    %v1004 = vsel %vm990, %v1002, %v1003
    %v1005 = vld [vmem:[%s1 + $0xc] sm:$0x3]
    %v1006 = vunpack.c.l.b16 %v994
    %v1007 = vunpack.c.l.b16 %v997
    %v1008 = vunpack.c.l.b16 %v1001
    %v1009 = vunpack.c.l.b16 %v1004
    %v1010 = vpack.c.b16 %v1007, %v1006
    %v1011 = vpack.c.b16 %v1009, %v1008
    %v1013 = vsel %vm198, %v1010, 0
    %v1016 = vsel %vm198, %v1011, 0
    %v1019 = vsel %vm205, %v1005, 0
    %1021 = vmatprep.subr.bf16.mxu0 0
    %1022 = vmatpush1.bf16.msra.mxu0 %v1019
    %1023 = vmatprep.subr.bf16.mxu0 0
    %1024 = vmatpush1.bf16.msra.mxu0 0
    %1025 = vmatprep.subr.bf16.mxu0 0
    %1026 = vmatpush1.bf16.msra.mxu0 0
    %1027 = vmatprep.subr.bf16.mxu0 0
    %1028 = vmatpush1.bf16.msra.mxu0 0
    %1029 = vmatprep.subr.bf16.mxu0 0
    %1030 = vmatpush1.bf16.msra.mxu0 0
    %1031 = vmatprep.subr.bf16.mxu0 0
    %1032 = vmatpush1.bf16.msra.mxu0 0
    %1033 = vmatprep.subr.bf16.mxu0 0
    %1034 = vmatpush1.bf16.msra.mxu0 0
    %1035 = vmatprep.subr.bf16.mxu0 0
    %1036 = vmatpush1.bf16.msra.mxu0 0
    %1037 = vmatprep.subr.bf16.mxu0 0
    %1038 = vmatpush1.bf16.msra.mxu0 0
    %1039 = vmatprep.subr.bf16.mxu0 0
    %1040 = vmatpush1.bf16.msra.mxu0 0
    %1041 = vmatprep.subr.bf16.mxu0 0
    %1042 = vmatpush1.bf16.msra.mxu0 0
    %1043 = vmatprep.subr.bf16.mxu0 0
    %1044 = vmatpush1.bf16.msra.mxu0 0
    %1045 = vmatprep.subr.bf16.mxu0 0
    %1046 = vmatpush1.bf16.msra.mxu0 0
    %1047 = vmatprep.subr.bf16.mxu0 0
    %1048 = vmatpush1.bf16.msra.mxu0 0
    %1049 = vmatprep.subr.bf16.mxu0 0
    %1050 = vmatpush1.bf16.msra.mxu0 0
    %1051 = vmatprep.subr.bf16.mxu0 0
    %1052 = vmatpush1.bf16.msra.mxu0 0
    %1053 = vmatprep.mubr.bf16.mxu0 0
    %1054 = vmatmul.mubr.bf16.gmra.mrb[0].mxu0 %v1013
    %v1055 = vpop.f32.mrb[0].mxu0
    %v1056 = vadd.f32 0.0, %v1055
    %v1057 = vpop.f32.mrb[0].mxu0
    %v1058 = vpop.f32.mrb[0].mxu0
    %v1059 = vadd.f32 0.0, %v1058
    %v1060 = vpop.f32.mrb[0].mxu0
    %1061 = vmatprep.mubr.bf16.mxu0 0
    %1062 = vmatmul.mubr.bf16.gmra.mrb[0].mxu0 %v1016
    %v1063 = vpop.f32.mrb[0].mxu0
    %v1064 = vadd.f32 0.0, %v1063
    %v1065 = vpop.f32.mrb[0].mxu0
    %v1066 = vpop.f32.mrb[0].mxu0
    %v1067 = vadd.f32 0.0, %v1066
    %v1068 = vpop.f32.mrb[0].mxu0
    %1069 = vdwg.mxu0
    %v1070 = vadd.f32 %v978, %v1056
    %v1071 = vadd.f32 %v979, %v1059
    %v1072 = vadd.f32 %v980, %v1064
    %v1073 = vadd.f32 %v981, %v1067
    %v1074 = vld [vmem:[%s2] sm:$0x1]
    %v1076 = vlaneseq
    %v1077 = vshrl.u32 %v1076, 7
    %v1078 = vsub.s32 0, %v1077
    %v1079 = vrot.slane %v1074, %v1078
    %v1081 = vadd.f32 %v1070, %v1079
    %v1082 = vadd.f32 %v1071, %v1079
    %v1083 = vadd.f32 %v1072, %v1079
    %v1084 = vadd.f32 %v1073, %v1079
    %v1085 = vmax.f32 %v1081, 0.0
    %v1086 = vmax.f32 %v1082, 0.0
    %v1087 = vmax.f32 %v1083, 0.0
    %v1088 = vmax.f32 %v1084, 0.0
    %v1089 = vpack.c.bf16 %v1086, %v1085
    %v1090 = vpack.c.bf16 %v1088, %v1087
    %vm1091 = vcmask 516096
    %1092 = vst.msk [vmem:[#allocation3] sm:$0x1] %vm1091, 0
    %1093 = vst.msk [vmem:[#allocation3 + $0xc] sm:$0x1] %vm1091, 0
    %vm1094 = vcmask 519169
    %1095 = vst.msk [vmem:[#allocation3 + $0x8] sm:$0xe] %vm1094, 0
    %1096 = vst.msk [vmem:[#allocation3 + $0x14] sm:$0xe] %vm1094, 0
    %v1099 = vunpack.c.l.b16 %v1089
    %v1100 = vunpack.c.h.b16 %v1089
    %v1101 = vunpack.c.l.b16 %v1090
    %v1102 = vunpack.c.h.b16 %v1090
    %v1103 = vpack.c.b16 %v1099, %v1099
    %v1104 = vpack.c.b16 %v1100, %v1100
    %v1105 = vpack.c.b16 %v1101, %v1101
    %v1106 = vpack.c.b16 %v1102, %v1102
    %v1107 = vrot.slane %v1103, 7
    %v1108 = vrot.slane %v1107, 4
    %v1109 = vrot.slane %v1104, 7
    %v1110 = vsel %vm990, %v1108, %v1109
    %v1111 = vrot.slane %v1109, 4
    %v1112 = vrot.slane %v1105, 7
    %v1113 = vrot.slane %v1112, 4
    %v1114 = vrot.slane %v1106, 7
    %v1115 = vsel %vm990, %v1113, %v1114
    %v1116 = vrot.slane %v1114, 4
    %1123 = vst.msk [vmem:[#allocation3] sm:$0xe] %vm1094, %v1107
    %vm1124 = vcmask 519168
    %1125 = vst.msk [vmem:[#allocation3 + $0x4] sm:$0xf] %vm1124, %v1110
    %1126 = vst.msk [vmem:[#allocation3 + $0x8] sm:$0x1] %vm1091, %v1111
    %1127 = vst.msk [vmem:[#allocation3 + $0xc] sm:$0xe] %vm1094, %v1112
    %1128 = vst.msk [vmem:[#allocation3 + $0x10] sm:$0xf] %vm1124, %v1115
    %1129 = vst.msk [vmem:[#allocation3 + $0x14] sm:$0x1] %vm1091, %v1116
    %v1130 = vld [vmem:[#allocation3] sm:$0xf]
    %v1131 = vld [vmem:[#allocation3 + $0x4] sm:$0xf]
    %v1132 = vld [vmem:[#allocation3 + $0xc] sm:$0xf]
    %v1133 = vld [vmem:[#allocation3 + $0x10] sm:$0xf]
    %v1134 = vld [vmem:[#allocation3 + $0x8] sm:$0x1]
    %v1135 = vld [vmem:[#allocation3 + $0x14] sm:$0x1]
    %v1136 = vld [vmem:[#allocation3] sm:$0xe]
    %v1137 = vld [vmem:[#allocation3 + $0xc] sm:$0xe]
    %v1138 = vld [vmem:[#allocation3 + $0x8] sm:$0x3]
    %v1139 = vld [vmem:[#allocation3 + $0x14] sm:$0x3]
    %v1140 = vld [vmem:[#allocation3] sm:$0xc]
    %v1141 = vld [vmem:[#allocation3 + $0xc] sm:$0xc]
    %v1146 = vunpack.c.l.b16 %v1130
    %v1147 = vunpack.c.l.b16 %v1131
    %v1148 = vunpack.c.l.b16 %v1132
    %v1149 = vunpack.c.l.b16 %v1133
    %v1150 = vpack.c.b16 %v1147, %v1146
    %v1151 = vpack.c.b16 %v1149, %v1148
    %v1154 = vunpack.c.l.b16 %v1134
    %v1155 = vunpack.c.l.b16 %v1135
    %v1156 = vpack.c.b16 %v1154, %v1154
    %v1157 = vpack.c.b16 %v1155, %v1155
    %vm1158 = vsmask.f32 7424
    %v1160 = vshrl.u32 %v1150, 16
    %v1162 = vshll.u32 %v1150, 16
    %v1164 = vrot.slane %v1162, 1
    %v1165 = vor.u32 %v1160, %v1164
    %v1167 = vshll.u32 %v1156, 16
    %v1169 = vrot.slane %v1167, 1
    %v1170 = vsel %vm1158, %v1165, %v1169
    %v1172 = vshrl.u32 %v1151, 16
    %v1174 = vshll.u32 %v1151, 16
    %v1176 = vrot.slane %v1174, 1
    %v1177 = vor.u32 %v1172, %v1176
    %v1179 = vshll.u32 %v1157, 16
    %v1181 = vrot.slane %v1179, 1
    %v1182 = vsel %vm1158, %v1177, %v1181
    %1183 = vrot.lane.b32.xlu0 %v1170, 64
    %v1184 = vpop.permute.xlu0 %1183
    %1185 = vrot.lane.b32.xlu0 %v1182, 64
    %v1186 = vpop.permute.xlu0 %1185
    %v1189 = vunpack.c.l.b16 %v1136
    %v1190 = vunpack.c.l.b16 %v1137
    %v1191 = vpack.c.b16 %v1147, %v1189
    %v1192 = vpack.c.b16 %v1149, %v1190
    %vm1193 = vcmask 1046528
    %v1194 = vrot.slane %v1191, 1
    %v1195 = vrot.slane %v1156, 1
    %v1196 = vsel %vm1193, %v1194, %v1195
    %v1197 = vrot.slane %v1192, 1
    %v1198 = vrot.slane %v1157, 1
    %v1199 = vsel %vm1193, %v1197, %v1198
    %v1202 = vunpack.c.l.b16 %v1138
    %v1203 = vunpack.c.l.b16 %v1139
    %v1204 = vpack.c.b16 %v1202, %v1202
    %v1205 = vpack.c.b16 %v1203, %v1203
    %vm1206 = vsmask.f32 6400
    %v1208 = vshrl.u32 %v1191, 16
    %v1210 = vrot.slane %v1208, 1
    %v1211 = vshll.u32 %v1191, 16
    %v1213 = vrot.slane %v1211, 2
    %v1214 = vor.u32 %v1210, %v1213
    %v1216 = vshrl.u32 %v1204, 16
    %v1218 = vrot.slane %v1216, 1
    %v1219 = vshll.u32 %v1204, 16
    %v1221 = vrot.slane %v1219, 2
    %v1222 = vor.u32 %v1218, %v1221
    %v1223 = vsel %vm1206, %v1214, %v1222
    %v1225 = vshrl.u32 %v1192, 16
    %v1227 = vrot.slane %v1225, 1
    %v1228 = vshll.u32 %v1192, 16
    %v1230 = vrot.slane %v1228, 2
    %v1231 = vor.u32 %v1227, %v1230
    %v1233 = vshrl.u32 %v1205, 16
    %v1235 = vrot.slane %v1233, 1
    %v1236 = vshll.u32 %v1205, 16
    %v1238 = vrot.slane %v1236, 2
    %v1239 = vor.u32 %v1235, %v1238
    %v1240 = vsel %vm1206, %v1231, %v1239
    %1241 = vrot.lane.b32.xlu0 %v1223, 64
    %v1242 = vpop.permute.xlu0 %1241
    %1243 = vrot.lane.b32.xlu0 %v1240, 64
    %v1244 = vpop.permute.xlu0 %1243
    %v1247 = vunpack.c.l.b16 %v1140
    %v1248 = vunpack.c.l.b16 %v1141
    %v1249 = vpack.c.b16 %v1147, %v1247
    %v1250 = vpack.c.b16 %v1149, %v1248
    %vm1251 = vcmask 1045504
    %v1252 = vrot.slane %v1249, 2
    %v1253 = vrot.slane %v1204, 2
    %v1254 = vsel %vm1251, %v1252, %v1253
    %v1255 = vrot.slane %v1250, 2
    %v1256 = vrot.slane %v1205, 2
    %v1257 = vsel %vm1251, %v1255, %v1256
    %vm1258 = vcmask 523264
    %v1260 = vsel %vm1258, %v1150, %v1184
    %v1263 = vsel %vm1258, %v1151, %v1186
    %v1267 = vsel %vm1258, %v1196, %v1242
    %v1271 = vsel %vm1258, %v1199, %v1244
    %v1273 = vld [vmem:[#allocation11] sm:$0xf]
    %v1274 = vld [vmem:[#allocation11 + $0x4] sm:$0xf]
    %v1275 = vld [vmem:[#allocation11 + $0x8] sm:$0xf]
    %v1276 = vld [vmem:[#allocation11 + $0xc] sm:$0xf]
    %v1277 = vld [vmem:[#allocation11 + $0x10] sm:$0xf]
    %v1278 = vld [vmem:[#allocation11 + $0x14] sm:$0xf]
    %v1279 = vld [vmem:[#allocation11 + $0x18] sm:$0xf]
    %v1280 = vld [vmem:[#allocation11 + $0x1c] sm:$0xf]
    %v1281 = vld [vmem:[#allocation11 + $0x20] sm:$0xf]
    %v1282 = vld [vmem:[#allocation11 + $0x24] sm:$0xf]
    %v1283 = vld [vmem:[#allocation11 + $0x28] sm:$0xf]
    %v1284 = vld [vmem:[#allocation11 + $0x2c] sm:$0xf]
    %v1285 = vld [vmem:[#allocation11 + $0x30] sm:$0xf]
    %v1286 = vld [vmem:[#allocation11 + $0x34] sm:$0xf]
    %v1287 = vld [vmem:[#allocation11 + $0x38] sm:$0xf]
    %v1288 = vld [vmem:[#allocation11 + $0x3c] sm:$0xf]
    %v1289 = vld [vmem:[#allocation11 + $0x40] sm:$0xf]
    %v1290 = vld [vmem:[#allocation11 + $0x44] sm:$0xf]
    %v1291 = vld [vmem:[#allocation11 + $0x48] sm:$0xf]
    %v1292 = vld [vmem:[#allocation11 + $0x4c] sm:$0xf]
    %v1293 = vld [vmem:[#allocation11 + $0x50] sm:$0xf]
    %v1294 = vld [vmem:[#allocation11 + $0x54] sm:$0xf]
    %v1295 = vld [vmem:[#allocation11 + $0x58] sm:$0xf]
    %v1296 = vld [vmem:[#allocation11 + $0x5c] sm:$0xf]
    %v1297 = vld [vmem:[#allocation11 + $0x60] sm:$0xf]
    %v1298 = vld [vmem:[#allocation11 + $0x64] sm:$0xf]
    %v1299 = vld [vmem:[#allocation11 + $0x68] sm:$0xf]
    %v1300 = vld [vmem:[#allocation11 + $0x6c] sm:$0xf]
    %v1301 = vld [vmem:[#allocation11 + $0x70] sm:$0xf]
    %v1302 = vld [vmem:[#allocation11 + $0x74] sm:$0xf]
    %v1303 = vld [vmem:[#allocation11 + $0x78] sm:$0xf]
    %v1304 = vld [vmem:[#allocation11 + $0x7c] sm:$0xf]
    %v1305 = vld [vmem:[#allocation11 + $0x80] sm:$0xf]
    %v1306 = vld [vmem:[#allocation11 + $0x84] sm:$0xf]
    %v1307 = vld [vmem:[#allocation11 + $0x88] sm:$0xf]
    %v1308 = vld [vmem:[#allocation11 + $0x8c] sm:$0xf]
    %v1309 = vld [vmem:[#allocation11 + $0x90] sm:$0xf]
    %v1310 = vld [vmem:[#allocation11 + $0x94] sm:$0xf]
    %v1311 = vld [vmem:[#allocation11 + $0x98] sm:$0xf]
    %v1312 = vld [vmem:[#allocation11 + $0x9c] sm:$0xf]
    %v1353 = vunpack.c.l.b16 %v1273
    %v1354 = vunpack.c.l.b16 %v1274
    %v1355 = vunpack.c.l.b16 %v1275
    %v1356 = vunpack.c.l.b16 %v1276
    %v1357 = vunpack.c.l.b16 %v1277
    %v1358 = vunpack.c.l.b16 %v1278
    %v1359 = vunpack.c.l.b16 %v1279
    %v1360 = vunpack.c.l.b16 %v1280
    %v1361 = vunpack.c.l.b16 %v1281
    %v1362 = vunpack.c.l.b16 %v1282
    %v1363 = vunpack.c.l.b16 %v1283
    %v1364 = vunpack.c.l.b16 %v1284
    %v1365 = vunpack.c.l.b16 %v1285
    %v1366 = vunpack.c.l.b16 %v1286
    %v1367 = vunpack.c.l.b16 %v1287
    %v1368 = vunpack.c.l.b16 %v1288
    %v1369 = vunpack.c.l.b16 %v1289
    %v1370 = vunpack.c.l.b16 %v1290
    %v1371 = vunpack.c.l.b16 %v1291
    %v1372 = vunpack.c.l.b16 %v1292
    %v1373 = vunpack.c.l.b16 %v1293
    %v1374 = vunpack.c.l.b16 %v1294
    %v1375 = vunpack.c.l.b16 %v1295
    %v1376 = vunpack.c.l.b16 %v1296
    %v1377 = vunpack.c.l.b16 %v1297
    %v1378 = vunpack.c.l.b16 %v1298
    %v1379 = vunpack.c.l.b16 %v1299
    %v1380 = vunpack.c.l.b16 %v1300
    %v1381 = vunpack.c.l.b16 %v1301
    %v1382 = vunpack.c.l.b16 %v1302
    %v1383 = vunpack.c.l.b16 %v1303
    %v1384 = vunpack.c.l.b16 %v1304
    %v1385 = vunpack.c.l.b16 %v1305
    %v1386 = vunpack.c.l.b16 %v1306
    %v1387 = vunpack.c.l.b16 %v1307
    %v1388 = vunpack.c.l.b16 %v1308
    %v1389 = vunpack.c.l.b16 %v1309
    %v1390 = vunpack.c.l.b16 %v1310
    %v1391 = vunpack.c.l.b16 %v1311
    %v1392 = vunpack.c.l.b16 %v1312
    %v1393 = vpack.c.b16 %v1354, %v1353
    %v1394 = vpack.c.b16 %v1356, %v1355
    %v1395 = vpack.c.b16 %v1358, %v1357
    %v1396 = vpack.c.b16 %v1360, %v1359
    %v1397 = vpack.c.b16 %v1362, %v1361
    %v1398 = vpack.c.b16 %v1364, %v1363
    %v1399 = vpack.c.b16 %v1366, %v1365
    %v1400 = vpack.c.b16 %v1368, %v1367
    %v1401 = vpack.c.b16 %v1370, %v1369
    %v1402 = vpack.c.b16 %v1372, %v1371
    %v1403 = vpack.c.b16 %v1374, %v1373
    %v1404 = vpack.c.b16 %v1376, %v1375
    %v1405 = vpack.c.b16 %v1378, %v1377
    %v1406 = vpack.c.b16 %v1380, %v1379
    %v1407 = vpack.c.b16 %v1382, %v1381
    %v1408 = vpack.c.b16 %v1384, %v1383
    %v1409 = vpack.c.b16 %v1386, %v1385
    %v1410 = vpack.c.b16 %v1388, %v1387
    %v1411 = vpack.c.b16 %v1390, %v1389
    %v1412 = vpack.c.b16 %v1392, %v1391
    %v1434 = vsel %vm1258, %v1254, 0
    %v1437 = vsel %vm1258, %v1257, 0
    %1439 = vmatprep.subr.bf16.mxu0 0
    %1440 = vmatpush1.bf16.msra.mxu0 %v1393
    %1441 = vmatprep.subr.bf16.mxu0 0
    %1442 = vmatpush1.bf16.msra.mxu0 %v1394
    %1443 = vmatprep.subr.bf16.mxu0 0
    %1444 = vmatpush1.bf16.msra.mxu0 %v1395
    %1445 = vmatprep.subr.bf16.mxu0 0
    %1446 = vmatpush1.bf16.msra.mxu0 %v1396
    %1447 = vmatprep.subr.bf16.mxu0 0
    %1448 = vmatpush1.bf16.msra.mxu0 %v1397
    %1449 = vmatprep.subr.bf16.mxu0 0
    %1450 = vmatpush1.bf16.msra.mxu0 %v1398
    %1451 = vmatprep.subr.bf16.mxu0 0
    %1452 = vmatpush1.bf16.msra.mxu0 %v1399
    %1453 = vmatprep.subr.bf16.mxu0 0
    %1454 = vmatpush1.bf16.msra.mxu0 %v1400
    %1455 = vmatprep.subr.bf16.mxu0 0
    %1456 = vmatpush1.bf16.msra.mxu0 %v1401
    %1457 = vmatprep.subr.bf16.mxu0 0
    %1458 = vmatpush1.bf16.msra.mxu0 %v1402
    %1459 = vmatprep.subr.bf16.mxu0 0
    %1460 = vmatpush1.bf16.msra.mxu0 %v1403
    %1461 = vmatprep.subr.bf16.mxu0 0
    %1462 = vmatpush1.bf16.msra.mxu0 %v1404
    %1463 = vmatprep.subr.bf16.mxu0 0
    %1464 = vmatpush1.bf16.msra.mxu0 %v1405
    %1465 = vmatprep.subr.bf16.mxu0 0
    %1466 = vmatpush1.bf16.msra.mxu0 %v1406
    %1467 = vmatprep.subr.bf16.mxu0 0
    %1468 = vmatpush1.bf16.msra.mxu0 %v1407
    %1469 = vmatprep.subr.bf16.mxu0 0
    %1470 = vmatpush1.bf16.msra.mxu0 %v1408
    %1471 = vmatprep.mubr.bf16.mxu0 %v1267
    %1472 = vmatmul.mubr.bf16.gmra.mrb[0].mxu0 %v1260
    %v1473 = vpop.f32.mrb[0].mxu0
    %v1474 = vadd.f32 0.0, %v1473
    %v1475 = vpop.f32.mrb[0].mxu0
    %v1476 = vpop.f32.mrb[0].mxu0
    %v1477 = vadd.f32 0.0, %v1476
    %v1478 = vpop.f32.mrb[0].mxu0
    %1479 = vmatprep.mubr.bf16.mxu0 %v1271
    %1480 = vmatmul.mubr.bf16.gmra.mrb[0].mxu0 %v1263
    %v1481 = vpop.f32.mrb[0].mxu0
    %v1482 = vadd.f32 0.0, %v1481
    %v1483 = vpop.f32.mrb[0].mxu0
    %v1484 = vpop.f32.mrb[0].mxu0
    %v1485 = vadd.f32 0.0, %v1484
    %v1486 = vpop.f32.mrb[0].mxu0
    %1487 = vdwg.mxu0
    %1488 = vmatprep.subr.bf16.mxu0 0
    %1489 = vmatpush1.bf16.msra.mxu0 %v1409
    %1490 = vmatprep.subr.bf16.mxu0 0
    %1491 = vmatpush1.bf16.msra.mxu0 %v1410
    %1492 = vmatprep.subr.bf16.mxu0 0
    %1493 = vmatpush1.bf16.msra.mxu0 %v1411
    %1494 = vmatprep.subr.bf16.mxu0 0
    %1495 = vmatpush1.bf16.msra.mxu0 %v1412
    %1496 = vmatprep.subr.bf16.mxu0 0
    %1497 = vmatpush1.bf16.msra.mxu0 0
    %1498 = vmatprep.subr.bf16.mxu0 0
    %1499 = vmatpush1.bf16.msra.mxu0 0
    %1500 = vmatprep.subr.bf16.mxu0 0
    %1501 = vmatpush1.bf16.msra.mxu0 0
    %1502 = vmatprep.subr.bf16.mxu0 0
    %1503 = vmatpush1.bf16.msra.mxu0 0
    %1504 = vmatprep.subr.bf16.mxu0 0
    %1505 = vmatpush1.bf16.msra.mxu0 0
    %1506 = vmatprep.subr.bf16.mxu0 0
    %1507 = vmatpush1.bf16.msra.mxu0 0
    %1508 = vmatprep.subr.bf16.mxu0 0
    %1509 = vmatpush1.bf16.msra.mxu0 0
    %1510 = vmatprep.subr.bf16.mxu0 0
    %1511 = vmatpush1.bf16.msra.mxu0 0
    %1512 = vmatprep.subr.bf16.mxu0 0
    %1513 = vmatpush1.bf16.msra.mxu0 0
    %1514 = vmatprep.subr.bf16.mxu0 0
    %1515 = vmatpush1.bf16.msra.mxu0 0
    %1516 = vmatprep.subr.bf16.mxu0 0
    %1517 = vmatpush1.bf16.msra.mxu0 0
    %1518 = vmatprep.subr.bf16.mxu0 0
    %1519 = vmatpush1.bf16.msra.mxu0 0
    %1520 = vmatprep.mubr.bf16.mxu0 0
    %1521 = vmatmul.mubr.bf16.gmra.mrb[0].mxu0 %v1434
    %v1522 = vpop.f32.mrb[0].mxu0
    %v1523 = vadd.f32 %v1474, %v1522
    %v1524 = vpop.f32.mrb[0].mxu0
    %v1525 = vpop.f32.mrb[0].mxu0
    %v1526 = vadd.f32 %v1477, %v1525
    %v1527 = vpop.f32.mrb[0].mxu0
    %1528 = vmatprep.mubr.bf16.mxu0 0
    %1529 = vmatmul.mubr.bf16.gmra.mrb[0].mxu0 %v1437
    %v1530 = vpop.f32.mrb[0].mxu0
    %v1531 = vadd.f32 %v1482, %v1530
    %v1532 = vpop.f32.mrb[0].mxu0
    %v1533 = vpop.f32.mrb[0].mxu0
    %v1534 = vadd.f32 %v1485, %v1533
    %v1535 = vpop.f32.mrb[0].mxu0
    %1536 = vdwg.mxu0
    %v1537 = vld [vmem:[%s4] sm:$0x1]
    %v1539 = vlaneseq
    %v1540 = vshrl.u32 %v1539, 7
    %v1541 = vsub.s32 0, %v1540
    %v1542 = vrot.slane %v1537, %v1541
    %v1544 = vadd.f32 %v1523, %v1542
    %v1545 = vadd.f32 %v1526, %v1542
    %v1546 = vadd.f32 %v1531, %v1542
    %v1547 = vadd.f32 %v1534, %v1542
    %v1548 = vmax.f32 %v1544, 0.0
    %v1549 = vmax.f32 %v1545, 0.0
    %v1550 = vmax.f32 %v1546, 0.0
    %v1551 = vmax.f32 %v1547, 0.0
    %v1552 = vpack.c.bf16 %v1549, %v1548
    %v1553 = vpack.c.bf16 %v1551, %v1550
    %vm1554 = vcmask 516096
    %vm1555 = vsmask.f32 256
    %vm1556 = vmand %vm1554, %vm1555
    %v1557 = vld [vmem:[#allocation4] sm:$0x1]
    %v1558 = vsel %vm1556, 0, %v1557
    %1559 = vst [vmem:[#allocation4] sm:$0x1] %v1558
    %v1560 = vld [vmem:[#allocation4 + $0xc] sm:$0x1]
    %v1561 = vsel %vm1556, 0, %v1560
    %1562 = vst [vmem:[#allocation4 + $0xc] sm:$0x1] %v1561
    %vm1563 = vcmask 519168
    %vm1564 = vsmask.f32 7938
    %vm1565 = vmand %vm1563, %vm1564
    %v1566 = vld [vmem:[#allocation4 + $0x8] sm:$0xf]
    %v1567 = vsel %vm1565, 0, %v1566
    %1568 = vst [vmem:[#allocation4 + $0x8] sm:$0xf] %v1567
    %v1569 = vld [vmem:[#allocation4 + $0x14] sm:$0xf]
    %v1570 = vsel %vm1565, 0, %v1569
    %1571 = vst [vmem:[#allocation4 + $0x14] sm:$0xf] %v1570
    %v1574 = vunpack.c.l.b16 %v1552
    %v1575 = vunpack.c.h.b16 %v1552
    %v1576 = vunpack.c.l.b16 %v1553
    %v1577 = vunpack.c.h.b16 %v1553
    %v1578 = vpack.c.b16 %v1574, %v1574
    %v1579 = vpack.c.b16 %v1575, %v1575
    %v1580 = vpack.c.b16 %v1576, %v1576
    %v1581 = vpack.c.b16 %v1577, %v1577
    %vm1582 = vsmask.f32 4368
    %vm1583 = vmor %vm1555, %vm1582
    %v1585 = vshrl.u32 %v1578, 16
    %v1587 = vrot.slane %v1585, 7
    %v1588 = vshll.u32 %v1578, 16
    %v1590 = vor.u32 %v1587, %v1588
    %v1591 = vrot.slane %v1587, 4
    %v1593 = vshrl.u32 %v1579, 16
    %v1595 = vrot.slane %v1593, 7
    %v1596 = vshll.u32 %v1579, 16
    %v1598 = vor.u32 %v1595, %v1596
    %v1599 = vsel %vm1583, %v1591, %v1598
    %v1600 = vrot.slane %v1595, 4
    %v1602 = vshrl.u32 %v1580, 16
    %v1604 = vrot.slane %v1602, 7
    %v1605 = vshll.u32 %v1580, 16
    %v1607 = vor.u32 %v1604, %v1605
    %v1608 = vrot.slane %v1604, 4
    %v1610 = vshrl.u32 %v1581, 16
    %v1612 = vrot.slane %v1610, 7
    %v1613 = vshll.u32 %v1581, 16
    %v1615 = vor.u32 %v1612, %v1613
    %v1616 = vsel %vm1583, %v1608, %v1615
    %v1617 = vrot.slane %v1612, 4
    %v1624 = vld [vmem:[#allocation4] sm:$0xf]
    %v1625 = vsel %vm1565, %v1590, %v1624
    %1626 = vst [vmem:[#allocation4] sm:$0xf] %v1625
    %1627 = vst.msk [vmem:[#allocation4 + $0x4] sm:$0xf] %vm1124, %v1599
    %v1628 = vld [vmem:[#allocation4 + $0x8] sm:$0x1]
    %v1629 = vsel %vm1556, %v1600, %v1628
    %1630 = vst [vmem:[#allocation4 + $0x8] sm:$0x1] %v1629
    %v1631 = vld [vmem:[#allocation4 + $0xc] sm:$0xf]
    %v1632 = vsel %vm1565, %v1607, %v1631
    %1633 = vst [vmem:[#allocation4 + $0xc] sm:$0xf] %v1632
    %1634 = vst.msk [vmem:[#allocation4 + $0x10] sm:$0xf] %vm1124, %v1616
    %v1635 = vld [vmem:[#allocation4 + $0x14] sm:$0x1]
    %v1636 = vsel %vm1556, %v1617, %v1635
    %1637 = vst [vmem:[#allocation4 + $0x14] sm:$0x1] %v1636
    %v1638 = vld [vmem:[#allocation4] sm:$0xf]
    %v1639 = vld [vmem:[#allocation4 + $0x4] sm:$0xf]
    %v1640 = vld [vmem:[#allocation4 + $0xc] sm:$0xf]
    %v1641 = vld [vmem:[#allocation4 + $0x10] sm:$0xf]
    %v1642 = vld [vmem:[#allocation4 + $0x8] sm:$0x1]
    %v1643 = vld [vmem:[#allocation4 + $0x14] sm:$0x1]
    %v1644 = vld [vmem:[#allocation4] sm:$0xe]
    %v1645 = vld [vmem:[#allocation4 + $0xc] sm:$0xe]
    %v1650 = vunpack.c.l.b16 %v1638
    %v1651 = vunpack.c.l.b16 %v1639
    %v1652 = vunpack.c.l.b16 %v1640
    %v1653 = vunpack.c.l.b16 %v1641
    %v1654 = vpack.c.b16 %v1651, %v1650
    %v1655 = vpack.c.b16 %v1653, %v1652
    %v1658 = vunpack.c.l.b16 %v1642
    %v1659 = vunpack.c.l.b16 %v1643
    %v1660 = vpack.c.b16 %v1658, %v1658
    %v1661 = vpack.c.b16 %v1659, %v1659
    %v1663 = vshrl.u32 %v1654, 16
    %v1665 = vshll.u32 %v1654, 16
    %v1667 = vrot.slane %v1665, 1
    %v1668 = vor.u32 %v1663, %v1667
    %v1670 = vshll.u32 %v1660, 16
    %v1672 = vrot.slane %v1670, 1
    %v1673 = vsel %vm1158, %v1668, %v1672
    %v1675 = vshrl.u32 %v1655, 16
    %v1677 = vshll.u32 %v1655, 16
    %v1679 = vrot.slane %v1677, 1
    %v1680 = vor.u32 %v1675, %v1679
    %v1682 = vshll.u32 %v1661, 16
    %v1684 = vrot.slane %v1682, 1
    %v1685 = vsel %vm1158, %v1680, %v1684
    %1686 = vrot.lane.b32.xlu0 %v1673, 64
    %v1687 = vpop.permute.xlu0 %1686
    %1688 = vrot.lane.b32.xlu0 %v1685, 64
    %v1689 = vpop.permute.xlu0 %1688
    %v1692 = vunpack.c.l.b16 %v1644
    %v1693 = vunpack.c.l.b16 %v1645
    %v1694 = vpack.c.b16 %v1651, %v1692
    %v1695 = vpack.c.b16 %v1653, %v1693
    %v1696 = vrot.slane %v1694, 1
    %v1697 = vrot.slane %v1660, 1
    %v1698 = vsel %vm1193, %v1696, %v1697
    %v1699 = vrot.slane %v1695, 1
    %v1700 = vrot.slane %v1661, 1
    %v1701 = vsel %vm1193, %v1699, %v1700
    %v1703 = vsel %vm1258, %v1654, %v1687
    %v1706 = vsel %vm1258, %v1655, %v1689
    %v1708 = vld [vmem:[#allocation14] sm:$0xf]
    %v1709 = vld [vmem:[#allocation14 + $0x4] sm:$0xf]
    %v1710 = vld [vmem:[#allocation14 + $0x8] sm:$0xf]
    %v1711 = vld [vmem:[#allocation14 + $0xc] sm:$0xf]
    %v1712 = vld [vmem:[#allocation14 + $0x10] sm:$0xf]
    %v1713 = vld [vmem:[#allocation14 + $0x14] sm:$0xf]
    %v1714 = vld [vmem:[#allocation14 + $0x18] sm:$0xf]
    %v1715 = vld [vmem:[#allocation14 + $0x1c] sm:$0xf]
    %v1716 = vld [vmem:[#allocation14 + $0x20] sm:$0xf]
    %v1717 = vld [vmem:[#allocation14 + $0x24] sm:$0xf]
    %v1718 = vld [vmem:[#allocation14 + $0x28] sm:$0xf]
    %v1719 = vld [vmem:[#allocation14 + $0x2c] sm:$0xf]
    %v1720 = vld [vmem:[#allocation14 + $0x30] sm:$0xf]
    %v1721 = vld [vmem:[#allocation14 + $0x34] sm:$0xf]
    %v1722 = vld [vmem:[#allocation14 + $0x38] sm:$0xf]
    %v1723 = vld [vmem:[#allocation14 + $0x3c] sm:$0xf]
    %v1724 = vld [vmem:[#allocation14 + $0x40] sm:$0xf]
    %v1725 = vld [vmem:[#allocation14 + $0x44] sm:$0xf]
    %v1726 = vld [vmem:[#allocation14 + $0x48] sm:$0xf]
    %v1727 = vld [vmem:[#allocation14 + $0x4c] sm:$0xf]
    %v1728 = vld [vmem:[#allocation14 + $0x50] sm:$0xf]
    %v1729 = vld [vmem:[#allocation14 + $0x54] sm:$0xf]
    %v1730 = vld [vmem:[#allocation14 + $0x58] sm:$0xf]
    %v1731 = vld [vmem:[#allocation14 + $0x5c] sm:$0xf]
    %v1756 = vunpack.c.l.b16 %v1708
    %v1757 = vunpack.c.l.b16 %v1709
    %v1758 = vunpack.c.l.b16 %v1710
    %v1759 = vunpack.c.l.b16 %v1711
    %v1760 = vunpack.c.l.b16 %v1712
    %v1761 = vunpack.c.l.b16 %v1713
    %v1762 = vunpack.c.l.b16 %v1714
    %v1763 = vunpack.c.l.b16 %v1715
    %v1764 = vunpack.c.l.b16 %v1716
    %v1765 = vunpack.c.l.b16 %v1717
    %v1766 = vunpack.c.l.b16 %v1718
    %v1767 = vunpack.c.l.b16 %v1719
    %v1768 = vunpack.c.l.b16 %v1720
    %v1769 = vunpack.c.l.b16 %v1721
    %v1770 = vunpack.c.l.b16 %v1722
    %v1771 = vunpack.c.l.b16 %v1723
    %v1772 = vunpack.c.l.b16 %v1724
    %v1773 = vunpack.c.l.b16 %v1725
    %v1774 = vunpack.c.l.b16 %v1726
    %v1775 = vunpack.c.l.b16 %v1727
    %v1776 = vunpack.c.l.b16 %v1728
    %v1777 = vunpack.c.l.b16 %v1729
    %v1778 = vunpack.c.l.b16 %v1730
    %v1779 = vunpack.c.l.b16 %v1731
    %v1780 = vpack.c.b16 %v1757, %v1756
    %v1781 = vpack.c.b16 %v1759, %v1758
    %v1782 = vpack.c.b16 %v1761, %v1760
    %v1783 = vpack.c.b16 %v1763, %v1762
    %v1784 = vpack.c.b16 %v1765, %v1764
    %v1785 = vpack.c.b16 %v1767, %v1766
    %v1786 = vpack.c.b16 %v1769, %v1768
    %v1787 = vpack.c.b16 %v1771, %v1770
    %v1788 = vpack.c.b16 %v1773, %v1772
    %v1789 = vpack.c.b16 %v1775, %v1774
    %v1790 = vpack.c.b16 %v1777, %v1776
    %v1791 = vpack.c.b16 %v1779, %v1778
    %v1805 = vsel %vm1258, %v1698, 0
    %v1808 = vsel %vm1258, %v1701, 0
    %1810 = vmatprep.subr.bf16.mxu0 0
    %1811 = vmatpush1.bf16.msra.mxu0 %v1780
    %1812 = vmatprep.subr.bf16.mxu0 0
    %1813 = vmatpush1.bf16.msra.mxu0 %v1781
    %1814 = vmatprep.subr.bf16.mxu0 0
    %1815 = vmatpush1.bf16.msra.mxu0 %v1782
    %1816 = vmatprep.subr.bf16.mxu0 0
    %1817 = vmatpush1.bf16.msra.mxu0 %v1783
    %1818 = vmatprep.subr.bf16.mxu0 0
    %1819 = vmatpush1.bf16.msra.mxu0 %v1784
    %1820 = vmatprep.subr.bf16.mxu0 0
    %1821 = vmatpush1.bf16.msra.mxu0 %v1785
    %1822 = vmatprep.subr.bf16.mxu0 0
    %1823 = vmatpush1.bf16.msra.mxu0 %v1786
    %1824 = vmatprep.subr.bf16.mxu0 0
    %1825 = vmatpush1.bf16.msra.mxu0 %v1787
    %1826 = vmatprep.subr.bf16.mxu0 0
    %1827 = vmatpush1.bf16.msra.mxu0 %v1788
    %1828 = vmatprep.subr.bf16.mxu0 0
    %1829 = vmatpush1.bf16.msra.mxu0 %v1789
    %1830 = vmatprep.subr.bf16.mxu0 0
    %1831 = vmatpush1.bf16.msra.mxu0 %v1790
    %1832 = vmatprep.subr.bf16.mxu0 0
    %1833 = vmatpush1.bf16.msra.mxu0 %v1791
    %1834 = vmatprep.subr.bf16.mxu0 0
    %1835 = vmatpush1.bf16.msra.mxu0 0
    %1836 = vmatprep.subr.bf16.mxu0 0
    %1837 = vmatpush1.bf16.msra.mxu0 0
    %1838 = vmatprep.subr.bf16.mxu0 0
    %1839 = vmatpush1.bf16.msra.mxu0 0
    %1840 = vmatprep.subr.bf16.mxu0 0
    %1841 = vmatpush1.bf16.msra.mxu0 0
    %1842 = vmatprep.mubr.bf16.mxu0 %v1805
    %1843 = vmatmul.mubr.bf16.gmra.mrb[0].mxu0 %v1703
    %v1844 = vpop.f32.mrb[0].mxu0
    %v1845 = vadd.f32 0.0, %v1844
    %v1846 = vpop.f32.mrb[0].mxu0
    %v1847 = vpop.f32.mrb[0].mxu0
    %v1848 = vadd.f32 0.0, %v1847
    %v1849 = vpop.f32.mrb[0].mxu0
    %1850 = vmatprep.mubr.bf16.mxu0 %v1808
    %1851 = vmatmul.mubr.bf16.gmra.mrb[0].mxu0 %v1706
    %v1852 = vpop.f32.mrb[0].mxu0
    %v1853 = vadd.f32 0.0, %v1852
    %v1854 = vpop.f32.mrb[0].mxu0
    %v1855 = vpop.f32.mrb[0].mxu0
    %v1856 = vadd.f32 0.0, %v1855
    %v1857 = vpop.f32.mrb[0].mxu0
    %1858 = vdwg.mxu0
    %v1859 = vld [vmem:[%s6] sm:$0x1]
    %v1861 = vlaneseq
    %v1862 = vshrl.u32 %v1861, 7
    %v1863 = vsub.s32 0, %v1862
    %v1864 = vrot.slane %v1859, %v1863
    %v1866 = vadd.f32 %v1845, %v1864
    %v1867 = vadd.f32 %v1848, %v1864
    %v1868 = vadd.f32 %v1853, %v1864
    %v1869 = vadd.f32 %v1856, %v1864
    %v1870 = vadd.f32 %v1866, %v265
    %v1871 = vadd.f32 %v1867, %v266
    %v1872 = vadd.f32 %v1868, %v267
    %v1873 = vadd.f32 %v1869, %v268
    %v1874 = vmax.f32 %v1870, 0.0
    %v1875 = vmax.f32 %v1871, 0.0
    %v1876 = vmax.f32 %v1872, 0.0
    %v1877 = vmax.f32 %v1873, 0.0
    %v1878 = vpack.c.bf16 %v1875, %v1874
    %v1879 = vpack.c.bf16 %v1877, %v1876
    %v1880 = vld [vmem:[#allocation19] sm:$0xf]
    %v1881 = vld [vmem:[#allocation19 + $0x4] sm:$0xf]
    %v1882 = vld [vmem:[#allocation19 + $0x8] sm:$0xf]
    %v1883 = vld [vmem:[#allocation19 + $0xc] sm:$0xf]
    %v1884 = vld [vmem:[#allocation19 + $0x10] sm:$0xf]
    %v1885 = vld [vmem:[#allocation19 + $0x14] sm:$0xf]
    %v1886 = vld [vmem:[#allocation19 + $0x18] sm:$0xf]
    %v1887 = vld [vmem:[#allocation19 + $0x1c] sm:$0xf]
    %v1896 = vunpack.c.l.b16 %v1880
    %v1897 = vunpack.c.l.b16 %v1881
    %v1898 = vunpack.c.l.b16 %v1882
    %v1899 = vunpack.c.l.b16 %v1883
    %v1900 = vunpack.c.l.b16 %v1884
    %v1901 = vunpack.c.l.b16 %v1885
    %v1902 = vunpack.c.l.b16 %v1886
    %v1903 = vunpack.c.l.b16 %v1887
    %v1904 = vpack.c.b16 %v1897, %v1896
    %v1905 = vpack.c.b16 %v1899, %v1898
    %v1906 = vpack.c.b16 %v1901, %v1900
    %v1907 = vpack.c.b16 %v1903, %v1902
    %v1913 = vsel %vm1258, %v1878, 0
    %v1916 = vsel %vm1258, %v1879, 0
    %1918 = vmatprep.subr.bf16.mxu0 0
    %1919 = vmatpush1.bf16.msra.mxu0 %v1904
    %1920 = vmatprep.subr.bf16.mxu0 0
    %1921 = vmatpush1.bf16.msra.mxu0 %v1905
    %1922 = vmatprep.subr.bf16.mxu0 0
    %1923 = vmatpush1.bf16.msra.mxu0 %v1906
    %1924 = vmatprep.subr.bf16.mxu0 0
    %1925 = vmatpush1.bf16.msra.mxu0 %v1907
    %1926 = vmatprep.subr.bf16.mxu0 0
    %1927 = vmatpush1.bf16.msra.mxu0 0
    %1928 = vmatprep.subr.bf16.mxu0 0
    %1929 = vmatpush1.bf16.msra.mxu0 0
    %1930 = vmatprep.subr.bf16.mxu0 0
    %1931 = vmatpush1.bf16.msra.mxu0 0
    %1932 = vmatprep.subr.bf16.mxu0 0
    %1933 = vmatpush1.bf16.msra.mxu0 0
    %1934 = vmatprep.subr.bf16.mxu0 0
    %1935 = vmatpush1.bf16.msra.mxu0 0
    %1936 = vmatprep.subr.bf16.mxu0 0
    %1937 = vmatpush1.bf16.msra.mxu0 0
    %1938 = vmatprep.subr.bf16.mxu0 0
    %1939 = vmatpush1.bf16.msra.mxu0 0
    %1940 = vmatprep.subr.bf16.mxu0 0
    %1941 = vmatpush1.bf16.msra.mxu0 0
    %1942 = vmatprep.subr.bf16.mxu0 0
    %1943 = vmatpush1.bf16.msra.mxu0 0
    %1944 = vmatprep.subr.bf16.mxu0 0
    %1945 = vmatpush1.bf16.msra.mxu0 0
    %1946 = vmatprep.subr.bf16.mxu0 0
    %1947 = vmatpush1.bf16.msra.mxu0 0
    %1948 = vmatprep.subr.bf16.mxu0 0
    %1949 = vmatpush1.bf16.msra.mxu0 0
    %1950 = vmatprep.mubr.bf16.mxu0 0
    %1951 = vmatmul.mubr.bf16.gmra.mrb[0].mxu0 %v1913
    %v1952 = vpop.f32.mrb[0].mxu0
    %v1953 = vadd.f32 0.0, %v1952
    %v1954 = vpop.f32.mrb[0].mxu0
    %v1955 = vpop.f32.mrb[0].mxu0
    %v1956 = vadd.f32 0.0, %v1955
    %v1957 = vpop.f32.mrb[0].mxu0
    %1958 = vmatprep.mubr.bf16.mxu0 0
    %1959 = vmatmul.mubr.bf16.gmra.mrb[0].mxu0 %v1916
    %v1960 = vpop.f32.mrb[0].mxu0
    %v1961 = vadd.f32 0.0, %v1960
    %v1962 = vpop.f32.mrb[0].mxu0
    %v1963 = vpop.f32.mrb[0].mxu0
    %v1964 = vadd.f32 0.0, %v1963
    %v1965 = vpop.f32.mrb[0].mxu0
    %1966 = vdwg.mxu0
    %v1967 = vld [vmem:[%s16] sm:$0x1]
    %v1969 = vlaneseq
    %v1970 = vshrl.u32 %v1969, 7
    %v1971 = vsub.s32 0, %v1970
    %v1972 = vrot.slane %v1967, %v1971
    %v1974 = vadd.f32 %v1953, %v1972
    %v1975 = vadd.f32 %v1956, %v1972
    %v1976 = vadd.f32 %v1961, %v1972
    %v1977 = vadd.f32 %v1964, %v1972
    %vm1978 = vcmask 517120
    %vm1979 = vmand %vm1978, %vm270
    %v1980 = vld [vmem:[#allocation5] sm:$0x3]
    %v1981 = vsel %vm1979, 0, %v1980
    %1982 = vst [vmem:[#allocation5] sm:$0x3] %v1981
    %v1983 = vld [vmem:[#allocation5 + $0xc] sm:$0x3]
    %v1984 = vsel %vm1979, 0, %v1983
    %1985 = vst [vmem:[#allocation5 + $0xc] sm:$0x3] %v1984
    %vm1986 = vcmask 519169
    %vm1987 = vmand %vm1986, %vm279
    %v1988 = vld [vmem:[#allocation5 + $0x8] sm:$0xe]
    %v1989 = vsel %vm1987, 0, %v1988
    %1990 = vst [vmem:[#allocation5 + $0x8] sm:$0xe] %v1989
    %v1991 = vld [vmem:[#allocation5 + $0x14] sm:$0xe]
    %v1992 = vsel %vm1987, 0, %v1991
    %1993 = vst [vmem:[#allocation5 + $0x14] sm:$0xe] %v1992
    %v1996 = vunpack.c.l.b16 %v1878
    %v1997 = vunpack.c.h.b16 %v1878
    %v1998 = vunpack.c.l.b16 %v1879
    %v1999 = vunpack.c.h.b16 %v1879
    %v2000 = vpack.c.b16 %v1996, %v1996
    %v2001 = vpack.c.b16 %v1997, %v1997
    %v2002 = vpack.c.b16 %v1998, %v1998
    %v2003 = vpack.c.b16 %v1999, %v1999
    %v2005 = vshrl.u32 %v2000, 16
    %v2007 = vrot.slane %v2005, 6
    %v2008 = vshll.u32 %v2000, 16
    %v2010 = vrot.slane %v2008, 7
    %v2011 = vor.u32 %v2007, %v2010
    %v2012 = vrot.slane %v2011, 4
    %v2014 = vshrl.u32 %v2001, 16
    %v2016 = vrot.slane %v2014, 6
    %v2017 = vshll.u32 %v2001, 16
    %v2019 = vrot.slane %v2017, 7
    %v2020 = vor.u32 %v2016, %v2019
    %v2021 = vsel %vm298, %v2012, %v2020
    %v2022 = vrot.slane %v2020, 4
    %v2024 = vshrl.u32 %v2002, 16
    %v2026 = vrot.slane %v2024, 6
    %v2027 = vshll.u32 %v2002, 16
    %v2029 = vrot.slane %v2027, 7
    %v2030 = vor.u32 %v2026, %v2029
    %v2031 = vrot.slane %v2030, 4
    %v2033 = vshrl.u32 %v2003, 16
    %v2035 = vrot.slane %v2033, 6
    %v2036 = vshll.u32 %v2003, 16
    %v2038 = vrot.slane %v2036, 7
    %v2039 = vor.u32 %v2035, %v2038
    %v2040 = vsel %vm298, %v2031, %v2039
    %v2041 = vrot.slane %v2039, 4
    %v2048 = vld [vmem:[#allocation5] sm:$0xe]
    %v2049 = vsel %vm1987, %v2011, %v2048
    %2050 = vst [vmem:[#allocation5] sm:$0xe] %v2049
    %2051 = vst.msk [vmem:[#allocation5 + $0x4] sm:$0xf] %vm1124, %v2021
    %v2052 = vld [vmem:[#allocation5 + $0x8] sm:$0x3]
    %v2053 = vsel %vm1979, %v2022, %v2052
    %2054 = vst [vmem:[#allocation5 + $0x8] sm:$0x3] %v2053
    %v2055 = vld [vmem:[#allocation5 + $0xc] sm:$0xe]
    %v2056 = vsel %vm1987, %v2030, %v2055
    %2057 = vst [vmem:[#allocation5 + $0xc] sm:$0xe] %v2056
    %2058 = vst.msk [vmem:[#allocation5 + $0x10] sm:$0xf] %vm1124, %v2040
    %v2059 = vld [vmem:[#allocation5 + $0x14] sm:$0x3]
    %v2060 = vsel %vm1979, %v2041, %v2059
    %2061 = vst [vmem:[#allocation5 + $0x14] sm:$0x3] %v2060
    %v2062 = vld [vmem:[#allocation5] sm:$0xf]
    %v2063 = vld [vmem:[#allocation5 + $0x4] sm:$0xf]
    %v2064 = vld [vmem:[#allocation5 + $0xc] sm:$0xf]
    %v2065 = vld [vmem:[#allocation5 + $0x10] sm:$0xf]
    %v2066 = vld [vmem:[#allocation5 + $0x8] sm:$0x1]
    %v2067 = vld [vmem:[#allocation5 + $0x14] sm:$0x1]
    %v2068 = vld [vmem:[#allocation5] sm:$0xe]
    %v2069 = vld [vmem:[#allocation5 + $0xc] sm:$0xe]
    %v2070 = vld [vmem:[#allocation5 + $0x8] sm:$0x3]
    %v2071 = vld [vmem:[#allocation5 + $0x14] sm:$0x3]
    %v2072 = vld [vmem:[#allocation5] sm:$0xc]
    %v2073 = vld [vmem:[#allocation5 + $0xc] sm:$0xc]
    %v2074 = vld [vmem:[#allocation5 + $0x8] sm:$0x7]
    %v2075 = vld [vmem:[#allocation5 + $0x14] sm:$0x7]
    %v2076 = vld [vmem:[#allocation5] sm:$0x8]
    %v2077 = vld [vmem:[#allocation5 + $0xc] sm:$0x8]
    %v2082 = vunpack.c.l.b16 %v2062
    %v2083 = vunpack.c.l.b16 %v2063
    %v2084 = vunpack.c.l.b16 %v2064
    %v2085 = vunpack.c.l.b16 %v2065
    %v2086 = vpack.c.b16 %v2083, %v2082
    %v2087 = vpack.c.b16 %v2085, %v2084
    %v2090 = vunpack.c.l.b16 %v2066
    %v2091 = vunpack.c.l.b16 %v2067
    %v2092 = vpack.c.b16 %v2090, %v2090
    %v2093 = vpack.c.b16 %v2091, %v2091
    %v2095 = vshrl.u32 %v2086, 16
    %v2097 = vshll.u32 %v2086, 16
    %v2099 = vrot.slane %v2097, 1
    %v2100 = vor.u32 %v2095, %v2099
    %v2102 = vshll.u32 %v2092, 16
    %v2104 = vrot.slane %v2102, 1
    %v2105 = vsel %vm1158, %v2100, %v2104
    %v2107 = vshrl.u32 %v2087, 16
    %v2109 = vshll.u32 %v2087, 16
    %v2111 = vrot.slane %v2109, 1
    %v2112 = vor.u32 %v2107, %v2111
    %v2114 = vshll.u32 %v2093, 16
    %v2116 = vrot.slane %v2114, 1
    %v2117 = vsel %vm1158, %v2112, %v2116
    %2118 = vrot.lane.b32.xlu0 %v2105, 64
    %v2119 = vpop.permute.xlu0 %2118
    %2120 = vrot.lane.b32.xlu0 %v2117, 64
    %v2121 = vpop.permute.xlu0 %2120
    %v2124 = vunpack.c.l.b16 %v2068
    %v2125 = vunpack.c.l.b16 %v2069
    %v2126 = vpack.c.b16 %v2083, %v2124
    %v2127 = vpack.c.b16 %v2085, %v2125
    %v2128 = vrot.slane %v2126, 1
    %v2129 = vrot.slane %v2092, 1
    %v2130 = vsel %vm1193, %v2128, %v2129
    %v2131 = vrot.slane %v2127, 1
    %v2132 = vrot.slane %v2093, 1
    %v2133 = vsel %vm1193, %v2131, %v2132
    %v2136 = vunpack.c.l.b16 %v2070
    %v2137 = vunpack.c.l.b16 %v2071
    %v2138 = vpack.c.b16 %v2136, %v2136
    %v2139 = vpack.c.b16 %v2137, %v2137
    %v2141 = vshrl.u32 %v2126, 16
    %v2143 = vrot.slane %v2141, 1
    %v2144 = vshll.u32 %v2126, 16
    %v2146 = vrot.slane %v2144, 2
    %v2147 = vor.u32 %v2143, %v2146
    %v2149 = vshrl.u32 %v2138, 16
    %v2151 = vrot.slane %v2149, 1
    %v2152 = vshll.u32 %v2138, 16
    %v2154 = vrot.slane %v2152, 2
    %v2155 = vor.u32 %v2151, %v2154
    %v2156 = vsel %vm1206, %v2147, %v2155
    %v2158 = vshrl.u32 %v2127, 16
    %v2160 = vrot.slane %v2158, 1
    %v2161 = vshll.u32 %v2127, 16
    %v2163 = vrot.slane %v2161, 2
    %v2164 = vor.u32 %v2160, %v2163
    %v2166 = vshrl.u32 %v2139, 16
    %v2168 = vrot.slane %v2166, 1
    %v2169 = vshll.u32 %v2139, 16
    %v2171 = vrot.slane %v2169, 2
    %v2172 = vor.u32 %v2168, %v2171
    %v2173 = vsel %vm1206, %v2164, %v2172
    %2174 = vrot.lane.b32.xlu0 %v2156, 64
    %v2175 = vpop.permute.xlu0 %2174
    %2176 = vrot.lane.b32.xlu0 %v2173, 64
    %v2177 = vpop.permute.xlu0 %2176
    %v2180 = vunpack.c.l.b16 %v2072
    %v2181 = vunpack.c.l.b16 %v2073
    %v2182 = vpack.c.b16 %v2083, %v2180
    %v2183 = vpack.c.b16 %v2085, %v2181
    %v2184 = vrot.slane %v2182, 2
    %v2185 = vrot.slane %v2138, 2
    %v2186 = vsel %vm1251, %v2184, %v2185
    %v2187 = vrot.slane %v2183, 2
    %v2188 = vrot.slane %v2139, 2
    %v2189 = vsel %vm1251, %v2187, %v2188
    %v2192 = vunpack.c.l.b16 %v2074
    %v2193 = vunpack.c.l.b16 %v2075
    %v2194 = vpack.c.b16 %v2192, %v2192
    %v2195 = vpack.c.b16 %v2193, %v2193
    %vm2196 = vsmask.f32 5376
    %v2198 = vshrl.u32 %v2182, 16
    %v2200 = vrot.slane %v2198, 2
    %v2201 = vshll.u32 %v2182, 16
    %v2203 = vrot.slane %v2201, 3
    %v2204 = vor.u32 %v2200, %v2203
    %v2206 = vshrl.u32 %v2194, 16
    %v2208 = vrot.slane %v2206, 2
    %v2209 = vshll.u32 %v2194, 16
    %v2211 = vrot.slane %v2209, 3
    %v2212 = vor.u32 %v2208, %v2211
    %v2213 = vsel %vm2196, %v2204, %v2212
    %v2215 = vshrl.u32 %v2183, 16
    %v2217 = vrot.slane %v2215, 2
    %v2218 = vshll.u32 %v2183, 16
    %v2220 = vrot.slane %v2218, 3
    %v2221 = vor.u32 %v2217, %v2220
    %v2223 = vshrl.u32 %v2195, 16
    %v2225 = vrot.slane %v2223, 2
    %v2226 = vshll.u32 %v2195, 16
    %v2228 = vrot.slane %v2226, 3
    %v2229 = vor.u32 %v2225, %v2228
    %v2230 = vsel %vm2196, %v2221, %v2229
    %2231 = vrot.lane.b32.xlu0 %v2213, 64
    %v2232 = vpop.permute.xlu0 %2231
    %2233 = vrot.lane.b32.xlu0 %v2230, 64
    %v2234 = vpop.permute.xlu0 %2233
    %v2237 = vunpack.c.l.b16 %v2076
    %v2238 = vunpack.c.l.b16 %v2077
    %v2239 = vpack.c.b16 %v2083, %v2237
    %v2240 = vpack.c.b16 %v2085, %v2238
    %vm2241 = vcmask 1044480
    %v2242 = vrot.slane %v2239, 3
    %v2243 = vrot.slane %v2194, 3
    %v2244 = vsel %vm2241, %v2242, %v2243
    %v2245 = vrot.slane %v2240, 3
    %v2246 = vrot.slane %v2195, 3
    %v2247 = vsel %vm2241, %v2245, %v2246
    %v2249 = vsel %vm1258, %v2086, %v2119
    %v2252 = vsel %vm1258, %v2087, %v2121
    %v2256 = vsel %vm1258, %v2130, %v2175
    %v2260 = vsel %vm1258, %v2133, %v2177
    %v2264 = vsel %vm1258, %v2186, %v2232
    %v2268 = vsel %vm1258, %v2189, %v2234
    %v2270 = vld [vmem:[#allocation16] sm:$0xf]
    %v2271 = vld [vmem:[#allocation16 + $0x4] sm:$0xf]
    %v2272 = vld [vmem:[#allocation16 + $0x8] sm:$0xf]
    %v2273 = vld [vmem:[#allocation16 + $0xc] sm:$0xf]
    %v2274 = vld [vmem:[#allocation16 + $0x10] sm:$0xf]
    %v2275 = vld [vmem:[#allocation16 + $0x14] sm:$0xf]
    %v2276 = vld [vmem:[#allocation16 + $0x18] sm:$0xf]
    %v2277 = vld [vmem:[#allocation16 + $0x1c] sm:$0xf]
    %v2278 = vld [vmem:[#allocation16 + $0x20] sm:$0xf]
    %v2279 = vld [vmem:[#allocation16 + $0x24] sm:$0xf]
    %v2280 = vld [vmem:[#allocation16 + $0x28] sm:$0xf]
    %v2281 = vld [vmem:[#allocation16 + $0x2c] sm:$0xf]
    %v2282 = vld [vmem:[#allocation16 + $0x30] sm:$0xf]
    %v2283 = vld [vmem:[#allocation16 + $0x34] sm:$0xf]
    %v2284 = vld [vmem:[#allocation16 + $0x38] sm:$0xf]
    %v2285 = vld [vmem:[#allocation16 + $0x3c] sm:$0xf]
    %v2286 = vld [vmem:[#allocation16 + $0x40] sm:$0xf]
    %v2287 = vld [vmem:[#allocation16 + $0x44] sm:$0xf]
    %v2288 = vld [vmem:[#allocation16 + $0x48] sm:$0xf]
    %v2289 = vld [vmem:[#allocation16 + $0x4c] sm:$0xf]
    %v2290 = vld [vmem:[#allocation16 + $0x50] sm:$0xf]
    %v2291 = vld [vmem:[#allocation16 + $0x54] sm:$0xf]
    %v2292 = vld [vmem:[#allocation16 + $0x58] sm:$0xf]
    %v2293 = vld [vmem:[#allocation16 + $0x5c] sm:$0xf]
    %v2294 = vld [vmem:[#allocation16 + $0x60] sm:$0xf]
    %v2295 = vld [vmem:[#allocation16 + $0x64] sm:$0xf]
    %v2296 = vld [vmem:[#allocation16 + $0x68] sm:$0xf]
    %v2297 = vld [vmem:[#allocation16 + $0x6c] sm:$0xf]
    %v2298 = vld [vmem:[#allocation16 + $0x70] sm:$0xf]
    %v2299 = vld [vmem:[#allocation16 + $0x74] sm:$0xf]
    %v2300 = vld [vmem:[#allocation16 + $0x78] sm:$0xf]
    %v2301 = vld [vmem:[#allocation16 + $0x7c] sm:$0xf]
    %v2302 = vld [vmem:[#allocation16 + $0x80] sm:$0xf]
    %v2303 = vld [vmem:[#allocation16 + $0x84] sm:$0xf]
    %v2304 = vld [vmem:[#allocation16 + $0x88] sm:$0xf]
    %v2305 = vld [vmem:[#allocation16 + $0x8c] sm:$0xf]
    %v2306 = vld [vmem:[#allocation16 + $0x90] sm:$0xf]
    %v2307 = vld [vmem:[#allocation16 + $0x94] sm:$0xf]
    %v2308 = vld [vmem:[#allocation16 + $0x98] sm:$0xf]
    %v2309 = vld [vmem:[#allocation16 + $0x9c] sm:$0xf]
    %v2310 = vld [vmem:[#allocation16 + $0xa0] sm:$0xf]
    %v2311 = vld [vmem:[#allocation16 + $0xa4] sm:$0xf]
    %v2312 = vld [vmem:[#allocation16 + $0xa8] sm:$0xf]
    %v2313 = vld [vmem:[#allocation16 + $0xac] sm:$0xf]
    %v2314 = vld [vmem:[#allocation16 + $0xb0] sm:$0xf]
    %v2315 = vld [vmem:[#allocation16 + $0xb4] sm:$0xf]
    %v2316 = vld [vmem:[#allocation16 + $0xb8] sm:$0xf]
    %v2317 = vld [vmem:[#allocation16 + $0xbc] sm:$0xf]
    %v2318 = vld [vmem:[#allocation16 + $0xc0] sm:$0xf]
    %v2319 = vld [vmem:[#allocation16 + $0xc4] sm:$0xf]
    %v2320 = vld [vmem:[#allocation16 + $0xc8] sm:$0xf]
    %v2321 = vld [vmem:[#allocation16 + $0xcc] sm:$0xf]
    %v2322 = vld [vmem:[#allocation16 + $0xd0] sm:$0xf]
    %v2323 = vld [vmem:[#allocation16 + $0xd4] sm:$0xf]
    %v2324 = vld [vmem:[#allocation16 + $0xd8] sm:$0xf]
    %v2325 = vld [vmem:[#allocation16 + $0xdc] sm:$0xf]
    %v2382 = vunpack.c.l.b16 %v2270
    %v2383 = vunpack.c.l.b16 %v2271
    %v2384 = vunpack.c.l.b16 %v2272
    %v2385 = vunpack.c.l.b16 %v2273
    %v2386 = vunpack.c.l.b16 %v2274
    %v2387 = vunpack.c.l.b16 %v2275
    %v2388 = vunpack.c.l.b16 %v2276
    %v2389 = vunpack.c.l.b16 %v2277
    %v2390 = vunpack.c.l.b16 %v2278
    %v2391 = vunpack.c.l.b16 %v2279
    %v2392 = vunpack.c.l.b16 %v2280
    %v2393 = vunpack.c.l.b16 %v2281
    %v2394 = vunpack.c.l.b16 %v2282
    %v2395 = vunpack.c.l.b16 %v2283
    %v2396 = vunpack.c.l.b16 %v2284
    %v2397 = vunpack.c.l.b16 %v2285
    %v2398 = vunpack.c.l.b16 %v2286
    %v2399 = vunpack.c.l.b16 %v2287
    %v2400 = vunpack.c.l.b16 %v2288
    %v2401 = vunpack.c.l.b16 %v2289
    %v2402 = vunpack.c.l.b16 %v2290
    %v2403 = vunpack.c.l.b16 %v2291
    %v2404 = vunpack.c.l.b16 %v2292
    %v2405 = vunpack.c.l.b16 %v2293
    %v2406 = vunpack.c.l.b16 %v2294
    %v2407 = vunpack.c.l.b16 %v2295
    %v2408 = vunpack.c.l.b16 %v2296
    %v2409 = vunpack.c.l.b16 %v2297
    %v2410 = vunpack.c.l.b16 %v2298
    %v2411 = vunpack.c.l.b16 %v2299
    %v2412 = vunpack.c.l.b16 %v2300
    %v2413 = vunpack.c.l.b16 %v2301
    %v2414 = vunpack.c.l.b16 %v2302
    %v2415 = vunpack.c.l.b16 %v2303
    %v2416 = vunpack.c.l.b16 %v2304
    %v2417 = vunpack.c.l.b16 %v2305
    %v2418 = vunpack.c.l.b16 %v2306
    %v2419 = vunpack.c.l.b16 %v2307
    %v2420 = vunpack.c.l.b16 %v2308
    %v2421 = vunpack.c.l.b16 %v2309
    %v2422 = vunpack.c.l.b16 %v2310
    %v2423 = vunpack.c.l.b16 %v2311
    %v2424 = vunpack.c.l.b16 %v2312
    %v2425 = vunpack.c.l.b16 %v2313
    %v2426 = vunpack.c.l.b16 %v2314
    %v2427 = vunpack.c.l.b16 %v2315
    %v2428 = vunpack.c.l.b16 %v2316
    %v2429 = vunpack.c.l.b16 %v2317
    %v2430 = vunpack.c.l.b16 %v2318
    %v2431 = vunpack.c.l.b16 %v2319
    %v2432 = vunpack.c.l.b16 %v2320
    %v2433 = vunpack.c.l.b16 %v2321
    %v2434 = vunpack.c.l.b16 %v2322
    %v2435 = vunpack.c.l.b16 %v2323
    %v2436 = vunpack.c.l.b16 %v2324
    %v2437 = vunpack.c.l.b16 %v2325
    %v2438 = vpack.c.b16 %v2383, %v2382
    %v2439 = vpack.c.b16 %v2385, %v2384
    %v2440 = vpack.c.b16 %v2387, %v2386
    %v2441 = vpack.c.b16 %v2389, %v2388
    %v2442 = vpack.c.b16 %v2391, %v2390
    %v2443 = vpack.c.b16 %v2393, %v2392
    %v2444 = vpack.c.b16 %v2395, %v2394
    %v2445 = vpack.c.b16 %v2397, %v2396
    %v2446 = vpack.c.b16 %v2399, %v2398
    %v2447 = vpack.c.b16 %v2401, %v2400
    %v2448 = vpack.c.b16 %v2403, %v2402
    %v2449 = vpack.c.b16 %v2405, %v2404
    %v2450 = vpack.c.b16 %v2407, %v2406
    %v2451 = vpack.c.b16 %v2409, %v2408
    %v2452 = vpack.c.b16 %v2411, %v2410
    %v2453 = vpack.c.b16 %v2413, %v2412
    %v2454 = vpack.c.b16 %v2415, %v2414
    %v2455 = vpack.c.b16 %v2417, %v2416
    %v2456 = vpack.c.b16 %v2419, %v2418
    %v2457 = vpack.c.b16 %v2421, %v2420
    %v2458 = vpack.c.b16 %v2423, %v2422
    %v2459 = vpack.c.b16 %v2425, %v2424
    %v2460 = vpack.c.b16 %v2427, %v2426
    %v2461 = vpack.c.b16 %v2429, %v2428
    %v2462 = vpack.c.b16 %v2431, %v2430
    %v2463 = vpack.c.b16 %v2433, %v2432
    %v2464 = vpack.c.b16 %v2435, %v2434
    %v2465 = vpack.c.b16 %v2437, %v2436
    %v2495 = vsel %vm1258, %v2244, 0
    %v2498 = vsel %vm1258, %v2247, 0
    %2500 = vmatprep.subr.bf16.mxu0 0
    %2501 = vmatpush1.bf16.msra.mxu0 %v2438
    %2502 = vmatprep.subr.bf16.mxu0 0
    %2503 = vmatpush1.bf16.msra.mxu0 %v2439
    %2504 = vmatprep.subr.bf16.mxu0 0
    %2505 = vmatpush1.bf16.msra.mxu0 %v2440
    %2506 = vmatprep.subr.bf16.mxu0 0
    %2507 = vmatpush1.bf16.msra.mxu0 %v2441
    %2508 = vmatprep.subr.bf16.mxu0 0
    %2509 = vmatpush1.bf16.msra.mxu0 %v2442
    %2510 = vmatprep.subr.bf16.mxu0 0
    %2511 = vmatpush1.bf16.msra.mxu0 %v2443
    %2512 = vmatprep.subr.bf16.mxu0 0
    %2513 = vmatpush1.bf16.msra.mxu0 %v2444
    %2514 = vmatprep.subr.bf16.mxu0 0
    %2515 = vmatpush1.bf16.msra.mxu0 %v2445
    %2516 = vmatprep.subr.bf16.mxu0 0
    %2517 = vmatpush1.bf16.msra.mxu0 %v2446
    %2518 = vmatprep.subr.bf16.mxu0 0
    %2519 = vmatpush1.bf16.msra.mxu0 %v2447
    %2520 = vmatprep.subr.bf16.mxu0 0
    %2521 = vmatpush1.bf16.msra.mxu0 %v2448
    %2522 = vmatprep.subr.bf16.mxu0 0
    %2523 = vmatpush1.bf16.msra.mxu0 %v2449
    %2524 = vmatprep.subr.bf16.mxu0 0
    %2525 = vmatpush1.bf16.msra.mxu0 %v2450
    %2526 = vmatprep.subr.bf16.mxu0 0
    %2527 = vmatpush1.bf16.msra.mxu0 %v2451
    %2528 = vmatprep.subr.bf16.mxu0 0
    %2529 = vmatpush1.bf16.msra.mxu0 %v2452
    %2530 = vmatprep.subr.bf16.mxu0 0
    %2531 = vmatpush1.bf16.msra.mxu0 %v2453
    %2532 = vmatprep.mubr.bf16.mxu0 %v2256
    %2533 = vmatmul.mubr.bf16.gmra.mrb[0].mxu0 %v2249
    %v2534 = vpop.f32.mrb[0].mxu0
    %v2535 = vadd.f32 0.0, %v2534
    %v2536 = vpop.f32.mrb[0].mxu0
    %v2537 = vpop.f32.mrb[0].mxu0
    %v2538 = vadd.f32 0.0, %v2537
    %v2539 = vpop.f32.mrb[0].mxu0
    %2540 = vmatprep.mubr.bf16.mxu0 %v2260
    %2541 = vmatmul.mubr.bf16.gmra.mrb[0].mxu0 %v2252
    %v2542 = vpop.f32.mrb[0].mxu0
    %v2543 = vadd.f32 0.0, %v2542
    %v2544 = vpop.f32.mrb[0].mxu0
    %v2545 = vpop.f32.mrb[0].mxu0
    %v2546 = vadd.f32 0.0, %v2545
    %v2547 = vpop.f32.mrb[0].mxu0
    %2548 = vdwg.mxu0
    %2549 = vmatprep.subr.bf16.mxu0 0
    %2550 = vmatpush1.bf16.msra.mxu0 %v2454
    %2551 = vmatprep.subr.bf16.mxu0 0
    %2552 = vmatpush1.bf16.msra.mxu0 %v2455
    %2553 = vmatprep.subr.bf16.mxu0 0
    %2554 = vmatpush1.bf16.msra.mxu0 %v2456
    %2555 = vmatprep.subr.bf16.mxu0 0
    %2556 = vmatpush1.bf16.msra.mxu0 %v2457
    %2557 = vmatprep.subr.bf16.mxu0 0
    %2558 = vmatpush1.bf16.msra.mxu0 %v2458
    %2559 = vmatprep.subr.bf16.mxu0 0
    %2560 = vmatpush1.bf16.msra.mxu0 %v2459
    %2561 = vmatprep.subr.bf16.mxu0 0
    %2562 = vmatpush1.bf16.msra.mxu0 %v2460
    %2563 = vmatprep.subr.bf16.mxu0 0
    %2564 = vmatpush1.bf16.msra.mxu0 %v2461
    %2565 = vmatprep.subr.bf16.mxu0 0
    %2566 = vmatpush1.bf16.msra.mxu0 %v2462
    %2567 = vmatprep.subr.bf16.mxu0 0
    %2568 = vmatpush1.bf16.msra.mxu0 %v2463
    %2569 = vmatprep.subr.bf16.mxu0 0
    %2570 = vmatpush1.bf16.msra.mxu0 %v2464
    %2571 = vmatprep.subr.bf16.mxu0 0
    %2572 = vmatpush1.bf16.msra.mxu0 %v2465
    %2573 = vmatprep.subr.bf16.mxu0 0
    %2574 = vmatpush1.bf16.msra.mxu0 0
    %2575 = vmatprep.subr.bf16.mxu0 0
    %2576 = vmatpush1.bf16.msra.mxu0 0
    %2577 = vmatprep.subr.bf16.mxu0 0
    %2578 = vmatpush1.bf16.msra.mxu0 0
    %2579 = vmatprep.subr.bf16.mxu0 0
    %2580 = vmatpush1.bf16.msra.mxu0 0
    %2581 = vmatprep.mubr.bf16.mxu0 %v2495
    %2582 = vmatmul.mubr.bf16.gmra.mrb[0].mxu0 %v2264
    %v2583 = vpop.f32.mrb[0].mxu0
    %v2584 = vadd.f32 %v2535, %v2583
    %v2585 = vpop.f32.mrb[0].mxu0
    %v2586 = vpop.f32.mrb[0].mxu0
    %v2587 = vadd.f32 %v2538, %v2586
    %v2588 = vpop.f32.mrb[0].mxu0
    %2589 = vmatprep.mubr.bf16.mxu0 %v2498
    %2590 = vmatmul.mubr.bf16.gmra.mrb[0].mxu0 %v2268
    %v2591 = vpop.f32.mrb[0].mxu0
    %v2592 = vadd.f32 %v2543, %v2591
    %v2593 = vpop.f32.mrb[0].mxu0
    %v2594 = vpop.f32.mrb[0].mxu0
    %v2595 = vadd.f32 %v2546, %v2594
    %v2596 = vpop.f32.mrb[0].mxu0
    %2597 = vdwg.mxu0
    %v2598 = vld [vmem:[%s10] sm:$0x1]
    %v2600 = vlaneseq
    %v2601 = vshrl.u32 %v2600, 7
    %v2602 = vsub.s32 0, %v2601
    %v2603 = vrot.slane %v2598, %v2602
    %v2605 = vadd.f32 %v2584, %v2603
    %v2606 = vadd.f32 %v2587, %v2603
    %v2607 = vadd.f32 %v2592, %v2603
    %v2608 = vadd.f32 %v2595, %v2603
    %v2609 = vmax.f32 %v2605, 0.0
    %v2610 = vmax.f32 %v2606, 0.0
    %v2611 = vmax.f32 %v2607, 0.0
    %v2612 = vmax.f32 %v2608, 0.0
    %v2613 = vpack.c.bf16 %v2610, %v2609
    %v2614 = vpack.c.bf16 %v2612, %v2611
    %2615 = vst [vmem:[#allocation6] sm:$0x1] 0
    %2616 = vst [vmem:[#allocation6 + $0xc] sm:$0x1] 0
    %2617 = vst [vmem:[#allocation6 + $0x8] sm:$0xe] 0
    %2618 = vst [vmem:[#allocation6 + $0x14] sm:$0xe] 0
    %v2621 = vunpack.c.l.b16 %v2613
    %v2622 = vunpack.c.h.b16 %v2613
    %v2623 = vunpack.c.l.b16 %v2614
    %v2624 = vunpack.c.h.b16 %v2614
    %v2625 = vpack.c.b16 %v2621, %v2621
    %v2626 = vpack.c.b16 %v2622, %v2622
    %v2627 = vpack.c.b16 %v2623, %v2623
    %v2628 = vpack.c.b16 %v2624, %v2624
    %v2629 = vrot.slane %v2625, 7
    %v2630 = vrot.slane %v2629, 4
    %v2631 = vrot.slane %v2626, 7
    %v2632 = vsel %vm990, %v2630, %v2631
    %v2633 = vrot.slane %v2631, 4
    %v2634 = vrot.slane %v2627, 7
    %v2635 = vrot.slane %v2634, 4
    %v2636 = vrot.slane %v2628, 7
    %v2637 = vsel %vm990, %v2635, %v2636
    %v2638 = vrot.slane %v2636, 4
    %2645 = vst [vmem:[#allocation6] sm:$0xe] %v2629
    %2646 = vst [vmem:[#allocation6 + $0x4] sm:$0xf] %v2632
    %2647 = vst [vmem:[#allocation6 + $0x8] sm:$0x1] %v2633
    %2648 = vst [vmem:[#allocation6 + $0xc] sm:$0xe] %v2634
    %2649 = vst [vmem:[#allocation6 + $0x10] sm:$0xf] %v2637
    %2650 = vst [vmem:[#allocation6 + $0x14] sm:$0x1] %v2638
    %v2651 = vld [vmem:[#allocation6] sm:$0xf]
    %v2652 = vld [vmem:[#allocation6 + $0x4] sm:$0xf]
    %v2653 = vld [vmem:[#allocation6 + $0xc] sm:$0xf]
    %v2654 = vld [vmem:[#allocation6 + $0x10] sm:$0xf]
    %v2655 = vld [vmem:[#allocation6] sm:$0xf]
    %v2656 = vld [vmem:[#allocation6 + $0x4] sm:$0xf]
    %v2657 = vld [vmem:[#allocation6 + $0x8] sm:$0x1]
    %v2658 = vld [vmem:[#allocation6 + $0xc] sm:$0xf]
    %v2659 = vld [vmem:[#allocation6 + $0x10] sm:$0xf]
    %v2660 = vld [vmem:[#allocation6 + $0x14] sm:$0x1]
    %v2661 = vld [vmem:[#allocation6] sm:$0xe]
    %v2662 = vld [vmem:[#allocation6 + $0xc] sm:$0xe]
    %v2663 = vld [vmem:[#allocation6 + $0x8] sm:$0x3]
    %v2664 = vld [vmem:[#allocation6 + $0x14] sm:$0x3]
    %v2665 = vld [vmem:[#allocation6] sm:$0xc]
    %v2666 = vld [vmem:[#allocation6 + $0xc] sm:$0xc]
    %v2671 = vunpack.c.l.b16 %v2651
    %v2672 = vunpack.c.l.b16 %v2652
    %v2673 = vunpack.c.l.b16 %v2653
    %v2674 = vunpack.c.l.b16 %v2654
    %v2675 = vpack.c.b16 %v2672, %v2671
    %v2676 = vpack.c.b16 %v2674, %v2673
    %v2685 = vunpack.c.l.b16 %v2655
    %v2686 = vunpack.c.l.b16 %v2656
    %v2687 = vunpack.c.l.b16 %v2657
    %v2688 = vunpack.c.l.b16 %v2658
    %v2689 = vunpack.c.l.b16 %v2659
    %v2690 = vunpack.c.l.b16 %v2660
    %v2691 = vpack.c.b16 %v2686, %v2685
    %v2692 = vpack.c.b16 %v2687, %v2687
    %v2693 = vpack.c.b16 %v2689, %v2688
    %v2694 = vpack.c.b16 %v2690, %v2690
    %v2696 = vshrl.u32 %v2691, 16
    %v2698 = vshll.u32 %v2691, 16
    %v2700 = vrot.slane %v2698, 1
    %v2701 = vor.u32 %v2696, %v2700
    %v2703 = vshll.u32 %v2692, 16
    %v2705 = vrot.slane %v2703, 1
    %v2706 = vsel %vm1158, %v2701, %v2705
    %v2708 = vshrl.u32 %v2693, 16
    %v2710 = vshll.u32 %v2693, 16
    %v2712 = vrot.slane %v2710, 1
    %v2713 = vor.u32 %v2708, %v2712
    %v2715 = vshll.u32 %v2694, 16
    %v2717 = vrot.slane %v2715, 1
    %v2718 = vsel %vm1158, %v2713, %v2717
    %v2723 = vunpack.c.l.b16 %v2661
    %v2724 = vunpack.c.l.b16 %v2662
    %v2725 = vpack.c.b16 %v2686, %v2723
    %v2726 = vpack.c.b16 %v2689, %v2724
    %v2727 = vrot.slane %v2725, 1
    %v2728 = vrot.slane %v2692, 1
    %v2729 = vsel %vm1193, %v2727, %v2728
    %v2730 = vrot.slane %v2726, 1
    %v2731 = vrot.slane %v2694, 1
    %v2732 = vsel %vm1193, %v2730, %v2731
    %v2737 = vunpack.c.l.b16 %v2663
    %v2738 = vunpack.c.l.b16 %v2664
    %v2739 = vpack.c.b16 %v2737, %v2737
    %v2740 = vpack.c.b16 %v2738, %v2738
    %v2742 = vshrl.u32 %v2725, 16
    %v2744 = vrot.slane %v2742, 1
    %v2745 = vshll.u32 %v2725, 16
    %v2747 = vrot.slane %v2745, 2
    %v2748 = vor.u32 %v2744, %v2747
    %v2750 = vshrl.u32 %v2739, 16
    %v2752 = vrot.slane %v2750, 1
    %v2753 = vshll.u32 %v2739, 16
    %v2755 = vrot.slane %v2753, 2
    %v2756 = vor.u32 %v2752, %v2755
    %v2757 = vsel %vm1206, %v2748, %v2756
    %v2759 = vshrl.u32 %v2726, 16
    %v2761 = vrot.slane %v2759, 1
    %v2762 = vshll.u32 %v2726, 16
    %v2764 = vrot.slane %v2762, 2
    %v2765 = vor.u32 %v2761, %v2764
    %v2767 = vshrl.u32 %v2740, 16
    %v2769 = vrot.slane %v2767, 1
    %v2770 = vshll.u32 %v2740, 16
    %v2772 = vrot.slane %v2770, 2
    %v2773 = vor.u32 %v2769, %v2772
    %v2774 = vsel %vm1206, %v2765, %v2773
    %v2779 = vunpack.c.l.b16 %v2665
    %v2780 = vunpack.c.l.b16 %v2666
    %v2781 = vpack.c.b16 %v2686, %v2779
    %v2782 = vpack.c.b16 %v2689, %v2780
    %v2783 = vrot.slane %v2781, 2
    %v2784 = vrot.slane %v2739, 2
    %v2785 = vsel %vm1251, %v2783, %v2784
    %v2786 = vrot.slane %v2782, 2
    %v2787 = vrot.slane %v2740, 2
    %v2788 = vsel %vm1251, %v2786, %v2787
    %v2791 = vld [vmem:[#allocation17] sm:$0xf]
    %v2792 = vld [vmem:[#allocation17 + $0x4] sm:$0xf]
    %v2793 = vld [vmem:[#allocation17 + $0x8] sm:$0xf]
    %v2794 = vld [vmem:[#allocation17 + $0xc] sm:$0xf]
    %v2795 = vld [vmem:[#allocation17 + $0x10] sm:$0xf]
    %v2796 = vld [vmem:[#allocation17 + $0x14] sm:$0xf]
    %v2797 = vld [vmem:[#allocation17 + $0x18] sm:$0xf]
    %v2798 = vld [vmem:[#allocation17 + $0x1c] sm:$0xf]
    %v2799 = vld [vmem:[#allocation17 + $0x20] sm:$0xf]
    %v2800 = vld [vmem:[#allocation17 + $0x24] sm:$0xf]
    %v2801 = vld [vmem:[#allocation17 + $0x28] sm:$0xf]
    %v2802 = vld [vmem:[#allocation17 + $0x2c] sm:$0xf]
    %v2803 = vld [vmem:[#allocation17 + $0x30] sm:$0xf]
    %v2804 = vld [vmem:[#allocation17 + $0x34] sm:$0xf]
    %v2805 = vld [vmem:[#allocation17 + $0x38] sm:$0xf]
    %v2806 = vld [vmem:[#allocation17 + $0x3c] sm:$0xf]
    %v2807 = vld [vmem:[#allocation17 + $0x40] sm:$0xf]
    %v2808 = vld [vmem:[#allocation17 + $0x44] sm:$0xf]
    %v2809 = vld [vmem:[#allocation17 + $0x48] sm:$0xf]
    %v2810 = vld [vmem:[#allocation17 + $0x4c] sm:$0xf]
    %v2811 = vld [vmem:[#allocation17 + $0x50] sm:$0xf]
    %v2812 = vld [vmem:[#allocation17 + $0x54] sm:$0xf]
    %v2813 = vld [vmem:[#allocation17 + $0x58] sm:$0xf]
    %v2814 = vld [vmem:[#allocation17 + $0x5c] sm:$0xf]
    %v2815 = vld [vmem:[#allocation17 + $0x60] sm:$0xf]
    %v2816 = vld [vmem:[#allocation17 + $0x64] sm:$0xf]
    %v2817 = vld [vmem:[#allocation17 + $0x68] sm:$0xf]
    %v2818 = vld [vmem:[#allocation17 + $0x6c] sm:$0xf]
    %v2819 = vld [vmem:[#allocation17 + $0x70] sm:$0xf]
    %v2820 = vld [vmem:[#allocation17 + $0x74] sm:$0xf]
    %v2821 = vld [vmem:[#allocation17 + $0x78] sm:$0xf]
    %v2822 = vld [vmem:[#allocation17 + $0x7c] sm:$0xf]
    %v2823 = vld [vmem:[#allocation17 + $0x80] sm:$0xf]
    %v2824 = vld [vmem:[#allocation17 + $0x84] sm:$0xf]
    %v2825 = vld [vmem:[#allocation17 + $0x88] sm:$0xf]
    %v2826 = vld [vmem:[#allocation17 + $0x8c] sm:$0xf]
    %v2827 = vld [vmem:[#allocation17 + $0x90] sm:$0xf]
    %v2828 = vld [vmem:[#allocation17 + $0x94] sm:$0xf]
    %v2829 = vld [vmem:[#allocation17 + $0x98] sm:$0xf]
    %v2830 = vld [vmem:[#allocation17 + $0x9c] sm:$0xf]
    %v2831 = vld [vmem:[#allocation17 + $0xa0] sm:$0xf]
    %v2832 = vld [vmem:[#allocation17 + $0xa4] sm:$0xf]
    %v2833 = vld [vmem:[#allocation17 + $0xa8] sm:$0xf]
    %v2834 = vld [vmem:[#allocation17 + $0xac] sm:$0xf]
    %v2835 = vld [vmem:[#allocation17 + $0xb0] sm:$0xf]
    %v2836 = vld [vmem:[#allocation17 + $0xb4] sm:$0xf]
    %v2837 = vld [vmem:[#allocation17 + $0xb8] sm:$0xf]
    %v2838 = vld [vmem:[#allocation17 + $0xbc] sm:$0xf]
    %v2839 = vld [vmem:[#allocation17 + $0xc0] sm:$0xf]
    %v2840 = vld [vmem:[#allocation17 + $0xc4] sm:$0xf]
    %v2841 = vld [vmem:[#allocation17 + $0xc8] sm:$0xf]
    %v2842 = vld [vmem:[#allocation17 + $0xcc] sm:$0xf]
    %v2843 = vld [vmem:[#allocation17 + $0xd0] sm:$0xf]
    %v2844 = vld [vmem:[#allocation17 + $0xd4] sm:$0xf]
    %v2845 = vld [vmem:[#allocation17 + $0xd8] sm:$0xf]
    %v2846 = vld [vmem:[#allocation17 + $0xdc] sm:$0xf]
    %v2847 = vld [vmem:[#allocation17 + $0xe0] sm:$0xf]
    %v2848 = vld [vmem:[#allocation17 + $0xe4] sm:$0xf]
    %v2849 = vld [vmem:[#allocation17 + $0xe8] sm:$0xf]
    %v2850 = vld [vmem:[#allocation17 + $0xec] sm:$0xf]
    %v2851 = vld [vmem:[#allocation17 + $0xf0] sm:$0xf]
    %v2852 = vld [vmem:[#allocation17 + $0xf4] sm:$0xf]
    %v2853 = vld [vmem:[#allocation17 + $0xf8] sm:$0xf]
    %v2854 = vld [vmem:[#allocation17 + $0xfc] sm:$0xf]
    %v2855 = vld [vmem:[#allocation17 + $0x100] sm:$0xf]
    %v2856 = vld [vmem:[#allocation17 + $0x104] sm:$0xf]
    %v2857 = vld [vmem:[#allocation17 + $0x108] sm:$0xf]
    %v2858 = vld [vmem:[#allocation17 + $0x10c] sm:$0xf]
    %v2859 = vld [vmem:[#allocation17 + $0x110] sm:$0xf]
    %v2860 = vld [vmem:[#allocation17 + $0x114] sm:$0xf]
    %v2861 = vld [vmem:[#allocation17 + $0x118] sm:$0xf]
    %v2862 = vld [vmem:[#allocation17 + $0x11c] sm:$0xf]
    %v2863 = vld [vmem:[#allocation17 + $0x120] sm:$0xf]
    %v2864 = vld [vmem:[#allocation17 + $0x124] sm:$0xf]
    %v2865 = vld [vmem:[#allocation17 + $0x128] sm:$0xf]
    %v2866 = vld [vmem:[#allocation17 + $0x12c] sm:$0xf]
    %v2867 = vld [vmem:[#allocation17 + $0x130] sm:$0xf]
    %v2868 = vld [vmem:[#allocation17 + $0x134] sm:$0xf]
    %v2869 = vld [vmem:[#allocation17 + $0x138] sm:$0xf]
    %v2870 = vld [vmem:[#allocation17 + $0x13c] sm:$0xf]
    %v2951 = vunpack.c.l.b16 %v2791
    %v2952 = vunpack.c.l.b16 %v2792
    %v2953 = vunpack.c.l.b16 %v2793
    %v2954 = vunpack.c.l.b16 %v2794
    %v2955 = vunpack.c.l.b16 %v2795
    %v2956 = vunpack.c.l.b16 %v2796
    %v2957 = vunpack.c.l.b16 %v2797
    %v2958 = vunpack.c.l.b16 %v2798
    %v2959 = vunpack.c.l.b16 %v2799
    %v2960 = vunpack.c.l.b16 %v2800
    %v2961 = vunpack.c.l.b16 %v2801
    %v2962 = vunpack.c.l.b16 %v2802
    %v2963 = vunpack.c.l.b16 %v2803
    %v2964 = vunpack.c.l.b16 %v2804
    %v2965 = vunpack.c.l.b16 %v2805
    %v2966 = vunpack.c.l.b16 %v2806
    %v2967 = vunpack.c.l.b16 %v2807
    %v2968 = vunpack.c.l.b16 %v2808
    %v2969 = vunpack.c.l.b16 %v2809
    %v2970 = vunpack.c.l.b16 %v2810
    %v2971 = vunpack.c.l.b16 %v2811
    %v2972 = vunpack.c.l.b16 %v2812
    %v2973 = vunpack.c.l.b16 %v2813
    %v2974 = vunpack.c.l.b16 %v2814
    %v2975 = vunpack.c.l.b16 %v2815
    %v2976 = vunpack.c.l.b16 %v2816
    %v2977 = vunpack.c.l.b16 %v2817
    %v2978 = vunpack.c.l.b16 %v2818
    %v2979 = vunpack.c.l.b16 %v2819
    %v2980 = vunpack.c.l.b16 %v2820
    %v2981 = vunpack.c.l.b16 %v2821
    %v2982 = vunpack.c.l.b16 %v2822
    %v2983 = vunpack.c.l.b16 %v2823
    %v2984 = vunpack.c.l.b16 %v2824
    %v2985 = vunpack.c.l.b16 %v2825
    %v2986 = vunpack.c.l.b16 %v2826
    %v2987 = vunpack.c.l.b16 %v2827
    %v2988 = vunpack.c.l.b16 %v2828
    %v2989 = vunpack.c.l.b16 %v2829
    %v2990 = vunpack.c.l.b16 %v2830
    %v2991 = vunpack.c.l.b16 %v2831
    %v2992 = vunpack.c.l.b16 %v2832
    %v2993 = vunpack.c.l.b16 %v2833
    %v2994 = vunpack.c.l.b16 %v2834
    %v2995 = vunpack.c.l.b16 %v2835
    %v2996 = vunpack.c.l.b16 %v2836
    %v2997 = vunpack.c.l.b16 %v2837
    %v2998 = vunpack.c.l.b16 %v2838
    %v2999 = vunpack.c.l.b16 %v2839
    %v3000 = vunpack.c.l.b16 %v2840
    %v3001 = vunpack.c.l.b16 %v2841
    %v3002 = vunpack.c.l.b16 %v2842
    %v3003 = vunpack.c.l.b16 %v2843
    %v3004 = vunpack.c.l.b16 %v2844
    %v3005 = vunpack.c.l.b16 %v2845
    %v3006 = vunpack.c.l.b16 %v2846
    %v3007 = vunpack.c.l.b16 %v2847
    %v3008 = vunpack.c.l.b16 %v2848
    %v3009 = vunpack.c.l.b16 %v2849
    %v3010 = vunpack.c.l.b16 %v2850
    %v3011 = vunpack.c.l.b16 %v2851
    %v3012 = vunpack.c.l.b16 %v2852
    %v3013 = vunpack.c.l.b16 %v2853
    %v3014 = vunpack.c.l.b16 %v2854
    %v3015 = vunpack.c.l.b16 %v2855
    %v3016 = vunpack.c.l.b16 %v2856
    %v3017 = vunpack.c.l.b16 %v2857
    %v3018 = vunpack.c.l.b16 %v2858
    %v3019 = vunpack.c.l.b16 %v2859
    %v3020 = vunpack.c.l.b16 %v2860
    %v3021 = vunpack.c.l.b16 %v2861
    %v3022 = vunpack.c.l.b16 %v2862
    %v3023 = vunpack.c.l.b16 %v2863
    %v3024 = vunpack.c.l.b16 %v2864
    %v3025 = vunpack.c.l.b16 %v2865
    %v3026 = vunpack.c.l.b16 %v2866
    %v3027 = vunpack.c.l.b16 %v2867
    %v3028 = vunpack.c.l.b16 %v2868
    %v3029 = vunpack.c.l.b16 %v2869
    %v3030 = vunpack.c.l.b16 %v2870
    %v3031 = vpack.c.b16 %v2952, %v2951
    %v3032 = vpack.c.b16 %v2954, %v2953
    %v3033 = vpack.c.b16 %v2956, %v2955
    %v3034 = vpack.c.b16 %v2958, %v2957
    %v3035 = vpack.c.b16 %v2960, %v2959
    %v3036 = vpack.c.b16 %v2962, %v2961
    %v3037 = vpack.c.b16 %v2964, %v2963
    %v3038 = vpack.c.b16 %v2966, %v2965
    %v3039 = vpack.c.b16 %v2968, %v2967
    %v3040 = vpack.c.b16 %v2970, %v2969
    %v3041 = vpack.c.b16 %v2972, %v2971
    %v3042 = vpack.c.b16 %v2974, %v2973
    %v3043 = vpack.c.b16 %v2976, %v2975
    %v3044 = vpack.c.b16 %v2978, %v2977
    %v3045 = vpack.c.b16 %v2980, %v2979
    %v3046 = vpack.c.b16 %v2982, %v2981
    %v3047 = vpack.c.b16 %v2984, %v2983
    %v3048 = vpack.c.b16 %v2986, %v2985
    %v3049 = vpack.c.b16 %v2988, %v2987
    %v3050 = vpack.c.b16 %v2990, %v2989
    %v3051 = vpack.c.b16 %v2992, %v2991
    %v3052 = vpack.c.b16 %v2994, %v2993
    %v3053 = vpack.c.b16 %v2996, %v2995
    %v3054 = vpack.c.b16 %v2998, %v2997
    %v3055 = vpack.c.b16 %v3000, %v2999
    %v3056 = vpack.c.b16 %v3002, %v3001
    %v3057 = vpack.c.b16 %v3004, %v3003
    %v3058 = vpack.c.b16 %v3006, %v3005
    %v3059 = vpack.c.b16 %v3008, %v3007
    %v3060 = vpack.c.b16 %v3010, %v3009
    %v3061 = vpack.c.b16 %v3012, %v3011
    %v3062 = vpack.c.b16 %v3014, %v3013
    %v3063 = vpack.c.b16 %v3016, %v3015
    %v3064 = vpack.c.b16 %v3018, %v3017
    %v3065 = vpack.c.b16 %v3020, %v3019
    %v3066 = vpack.c.b16 %v3022, %v3021
    %v3067 = vpack.c.b16 %v3024, %v3023
    %v3068 = vpack.c.b16 %v3026, %v3025
    %v3069 = vpack.c.b16 %v3028, %v3027
    %v3070 = vpack.c.b16 %v3030, %v3029
    %3111 = vmatprep.subr.bf16.mxu0 0
    %3112 = vmatpush1.bf16.msra.mxu0 %v3031
    %3113 = vmatprep.subr.bf16.mxu0 0
    %3114 = vmatpush1.bf16.msra.mxu0 %v3032
    %3115 = vmatprep.subr.bf16.mxu0 0
    %3116 = vmatpush1.bf16.msra.mxu0 %v3033
    %3117 = vmatprep.subr.bf16.mxu0 0
    %3118 = vmatpush1.bf16.msra.mxu0 %v3034
    %3119 = vmatprep.subr.bf16.mxu0 0
    %3120 = vmatpush1.bf16.msra.mxu0 %v3035
    %3121 = vmatprep.subr.bf16.mxu0 0
    %3122 = vmatpush1.bf16.msra.mxu0 %v3036
    %3123 = vmatprep.subr.bf16.mxu0 0
    %3124 = vmatpush1.bf16.msra.mxu0 %v3037
    %3125 = vmatprep.subr.bf16.mxu0 0
    %3126 = vmatpush1.bf16.msra.mxu0 %v3038
    %3127 = vmatprep.subr.bf16.mxu0 0
    %3128 = vmatpush1.bf16.msra.mxu0 %v3039
    %3129 = vmatprep.subr.bf16.mxu0 0
    %3130 = vmatpush1.bf16.msra.mxu0 %v3040
    %3131 = vmatprep.subr.bf16.mxu0 0
    %3132 = vmatpush1.bf16.msra.mxu0 %v3041
    %3133 = vmatprep.subr.bf16.mxu0 0
    %3134 = vmatpush1.bf16.msra.mxu0 %v3042
    %3135 = vmatprep.subr.bf16.mxu0 0
    %3136 = vmatpush1.bf16.msra.mxu0 %v3043
    %3137 = vmatprep.subr.bf16.mxu0 0
    %3138 = vmatpush1.bf16.msra.mxu0 %v3044
    %3139 = vmatprep.subr.bf16.mxu0 0
    %3140 = vmatpush1.bf16.msra.mxu0 %v3045
    %3141 = vmatprep.subr.bf16.mxu0 0
    %3142 = vmatpush1.bf16.msra.mxu0 %v3046
    %3143 = vmatprep.mubr.bf16.mxu0 %v2706
    %3144 = vmatmul.mubr.bf16.gmra.mrb[0].mxu0 %v2675
    %v3145 = vpop.f32.mrb[0].mxu0
    %v3146 = vadd.f32 0.0, %v3145
    %v3147 = vpop.f32.mrb[0].mxu0
    %v3148 = vpop.f32.mrb[0].mxu0
    %v3149 = vadd.f32 0.0, %v3148
    %v3150 = vpop.f32.mrb[0].mxu0
    %3151 = vmatprep.mubr.bf16.mxu0 %v2718
    %3152 = vmatmul.mubr.bf16.gmra.mrb[0].mxu0 %v2676
    %v3153 = vpop.f32.mrb[0].mxu0
    %v3154 = vadd.f32 0.0, %v3153
    %v3155 = vpop.f32.mrb[0].mxu0
    %v3156 = vpop.f32.mrb[0].mxu0
    %v3157 = vadd.f32 0.0, %v3156
    %v3158 = vpop.f32.mrb[0].mxu0
    %3159 = vdwg.mxu0
    %3160 = vmatprep.subr.bf16.mxu0 0
    %3161 = vmatpush1.bf16.msra.mxu0 %v3047
    %3162 = vmatprep.subr.bf16.mxu0 0
    %3163 = vmatpush1.bf16.msra.mxu0 %v3048
    %3164 = vmatprep.subr.bf16.mxu0 0
    %3165 = vmatpush1.bf16.msra.mxu0 %v3049
    %3166 = vmatprep.subr.bf16.mxu0 0
    %3167 = vmatpush1.bf16.msra.mxu0 %v3050
    %3168 = vmatprep.subr.bf16.mxu0 0
    %3169 = vmatpush1.bf16.msra.mxu0 %v3051
    %3170 = vmatprep.subr.bf16.mxu0 0
    %3171 = vmatpush1.bf16.msra.mxu0 %v3052
    %3172 = vmatprep.subr.bf16.mxu0 0
    %3173 = vmatpush1.bf16.msra.mxu0 %v3053
    %3174 = vmatprep.subr.bf16.mxu0 0
    %3175 = vmatpush1.bf16.msra.mxu0 %v3054
    %3176 = vmatprep.subr.bf16.mxu0 0
    %3177 = vmatpush1.bf16.msra.mxu0 %v3055
    %3178 = vmatprep.subr.bf16.mxu0 0
    %3179 = vmatpush1.bf16.msra.mxu0 %v3056
    %3180 = vmatprep.subr.bf16.mxu0 0
    %3181 = vmatpush1.bf16.msra.mxu0 %v3057
    %3182 = vmatprep.subr.bf16.mxu0 0
    %3183 = vmatpush1.bf16.msra.mxu0 %v3058
    %3184 = vmatprep.subr.bf16.mxu0 0
    %3185 = vmatpush1.bf16.msra.mxu0 %v3059
    %3186 = vmatprep.subr.bf16.mxu0 0
    %3187 = vmatpush1.bf16.msra.mxu0 %v3060
    %3188 = vmatprep.subr.bf16.mxu0 0
    %3189 = vmatpush1.bf16.msra.mxu0 %v3061
    %3190 = vmatprep.subr.bf16.mxu0 0
    %3191 = vmatpush1.bf16.msra.mxu0 %v3062
    %3192 = vmatprep.mubr.bf16.mxu0 %v2757
    %3193 = vmatmul.mubr.bf16.gmra.mrb[0].mxu0 %v2729
    %v3194 = vpop.f32.mrb[0].mxu0
    %v3195 = vadd.f32 %v3146, %v3194
    %v3196 = vpop.f32.mrb[0].mxu0
    %v3197 = vpop.f32.mrb[0].mxu0
    %v3198 = vadd.f32 %v3149, %v3197
    %v3199 = vpop.f32.mrb[0].mxu0
    %3200 = vmatprep.mubr.bf16.mxu0 %v2774
    %3201 = vmatmul.mubr.bf16.gmra.mrb[0].mxu0 %v2732
    %v3202 = vpop.f32.mrb[0].mxu0
    %v3203 = vadd.f32 %v3154, %v3202
    %v3204 = vpop.f32.mrb[0].mxu0
    %v3205 = vpop.f32.mrb[0].mxu0
    %v3206 = vadd.f32 %v3157, %v3205
    %v3207 = vpop.f32.mrb[0].mxu0
    %3208 = vdwg.mxu0
    %3209 = vmatprep.subr.bf16.mxu0 0
    %3210 = vmatpush1.bf16.msra.mxu0 %v3063
    %3211 = vmatprep.subr.bf16.mxu0 0
    %3212 = vmatpush1.bf16.msra.mxu0 %v3064
    %3213 = vmatprep.subr.bf16.mxu0 0
    %3214 = vmatpush1.bf16.msra.mxu0 %v3065
    %3215 = vmatprep.subr.bf16.mxu0 0
    %3216 = vmatpush1.bf16.msra.mxu0 %v3066
    %3217 = vmatprep.subr.bf16.mxu0 0
    %3218 = vmatpush1.bf16.msra.mxu0 %v3067
    %3219 = vmatprep.subr.bf16.mxu0 0
    %3220 = vmatpush1.bf16.msra.mxu0 %v3068
    %3221 = vmatprep.subr.bf16.mxu0 0
    %3222 = vmatpush1.bf16.msra.mxu0 %v3069
    %3223 = vmatprep.subr.bf16.mxu0 0
    %3224 = vmatpush1.bf16.msra.mxu0 %v3070
    %3225 = vmatprep.subr.bf16.mxu0 0
    %3226 = vmatpush1.bf16.msra.mxu0 0
    %3227 = vmatprep.subr.bf16.mxu0 0
    %3228 = vmatpush1.bf16.msra.mxu0 0
    %3229 = vmatprep.subr.bf16.mxu0 0
    %3230 = vmatpush1.bf16.msra.mxu0 0
    %3231 = vmatprep.subr.bf16.mxu0 0
    %3232 = vmatpush1.bf16.msra.mxu0 0
    %3233 = vmatprep.subr.bf16.mxu0 0
    %3234 = vmatpush1.bf16.msra.mxu0 0
    %3235 = vmatprep.subr.bf16.mxu0 0
    %3236 = vmatpush1.bf16.msra.mxu0 0
    %3237 = vmatprep.subr.bf16.mxu0 0
    %3238 = vmatpush1.bf16.msra.mxu0 0
    %3239 = vmatprep.subr.bf16.mxu0 0
    %3240 = vmatpush1.bf16.msra.mxu0 0
    %3241 = vmatprep.mubr.bf16.mxu0 0
    %3242 = vmatmul.mubr.bf16.gmra.mrb[0].mxu0 %v2785
    %v3243 = vpop.f32.mrb[0].mxu0
    %v3244 = vadd.f32 %v3195, %v3243
    %v3245 = vpop.f32.mrb[0].mxu0
    %v3246 = vpop.f32.mrb[0].mxu0
    %v3247 = vadd.f32 %v3198, %v3246
    %v3248 = vpop.f32.mrb[0].mxu0
    %3249 = vmatprep.mubr.bf16.mxu0 0
    %3250 = vmatmul.mubr.bf16.gmra.mrb[0].mxu0 %v2788
    %v3251 = vpop.f32.mrb[0].mxu0
    %v3252 = vadd.f32 %v3203, %v3251
    %v3253 = vpop.f32.mrb[0].mxu0
    %v3254 = vpop.f32.mrb[0].mxu0
    %v3255 = vadd.f32 %v3206, %v3254
    %v3256 = vpop.f32.mrb[0].mxu0
    %3257 = vdwg.mxu0
    %v3258 = vld [vmem:[%s12] sm:$0x1]
    %v3260 = vlaneseq
    %v3261 = vshrl.u32 %v3260, 7
    %v3262 = vsub.s32 0, %v3261
    %v3263 = vrot.slane %v3258, %v3262
    %v3265 = vadd.f32 %v3244, %v3263
    %v3266 = vadd.f32 %v3247, %v3263
    %v3267 = vadd.f32 %v3252, %v3263
    %v3268 = vadd.f32 %v3255, %v3263
    %v3269 = vmax.f32 %v3265, 0.0
    %v3270 = vmax.f32 %v3266, 0.0
    %v3271 = vmax.f32 %v3267, 0.0
    %v3272 = vmax.f32 %v3268, 0.0
    %v3273 = vpack.c.bf16 %v3270, %v3269
    %v3274 = vpack.c.bf16 %v3272, %v3271
    %vm3275 = vmand %vm988, %vm1555
    %v3276 = vld [vmem:[#allocation7] sm:$0x1]
    %v3277 = vsel %vm3275, 0, %v3276
    %3278 = vst [vmem:[#allocation7] sm:$0x1] %v3277
    %v3279 = vld [vmem:[#allocation7 + $0xc] sm:$0x1]
    %v3280 = vsel %vm3275, 0, %v3279
    %3281 = vst [vmem:[#allocation7 + $0xc] sm:$0x1] %v3280
    %vm3282 = vcmask 1043456
    %vm3283 = vmand %vm3282, %vm1564
    %v3284 = vld [vmem:[#allocation7 + $0x8] sm:$0xf]
    %v3285 = vsel %vm3283, 0, %v3284
    %3286 = vst [vmem:[#allocation7 + $0x8] sm:$0xf] %v3285
    %v3287 = vld [vmem:[#allocation7 + $0x14] sm:$0xf]
    %v3288 = vsel %vm3283, 0, %v3287
    %3289 = vst [vmem:[#allocation7 + $0x14] sm:$0xf] %v3288
    %v3292 = vunpack.c.l.b16 %v3273
    %v3293 = vunpack.c.h.b16 %v3273
    %v3294 = vunpack.c.l.b16 %v3274
    %v3295 = vunpack.c.h.b16 %v3274
    %v3296 = vpack.c.b16 %v3292, %v3292
    %v3297 = vpack.c.b16 %v3293, %v3293
    %v3298 = vpack.c.b16 %v3294, %v3294
    %v3299 = vpack.c.b16 %v3295, %v3295
    %v3301 = vshrl.u32 %v3296, 16
    %v3303 = vrot.slane %v3301, 7
    %v3304 = vshll.u32 %v3296, 16
    %v3306 = vor.u32 %v3303, %v3304
    %v3307 = vrot.slane %v3303, 4
    %v3309 = vshrl.u32 %v3297, 16
    %v3311 = vrot.slane %v3309, 7
    %v3312 = vshll.u32 %v3297, 16
    %v3314 = vor.u32 %v3311, %v3312
    %v3315 = vsel %vm1583, %v3307, %v3314
    %v3316 = vrot.slane %v3311, 4
    %v3318 = vshrl.u32 %v3298, 16
    %v3320 = vrot.slane %v3318, 7
    %v3321 = vshll.u32 %v3298, 16
    %v3323 = vor.u32 %v3320, %v3321
    %v3324 = vrot.slane %v3320, 4
    %v3326 = vshrl.u32 %v3299, 16
    %v3328 = vrot.slane %v3326, 7
    %v3329 = vshll.u32 %v3299, 16
    %v3331 = vor.u32 %v3328, %v3329
    %v3332 = vsel %vm1583, %v3324, %v3331
    %v3333 = vrot.slane %v3328, 4
    %v3340 = vld [vmem:[#allocation7] sm:$0xf]
    %v3341 = vsel %vm3283, %v3306, %v3340
    %3342 = vst [vmem:[#allocation7] sm:$0xf] %v3341
    %3343 = vst [vmem:[#allocation7 + $0x4] sm:$0xf] %v3315
    %v3344 = vld [vmem:[#allocation7 + $0x8] sm:$0x1]
    %v3345 = vsel %vm3275, %v3316, %v3344
    %3346 = vst [vmem:[#allocation7 + $0x8] sm:$0x1] %v3345
    %v3347 = vld [vmem:[#allocation7 + $0xc] sm:$0xf]
    %v3348 = vsel %vm3283, %v3323, %v3347
    %3349 = vst [vmem:[#allocation7 + $0xc] sm:$0xf] %v3348
    %3350 = vst [vmem:[#allocation7 + $0x10] sm:$0xf] %v3332
    %v3351 = vld [vmem:[#allocation7 + $0x14] sm:$0x1]
    %v3352 = vsel %vm3275, %v3333, %v3351
    %3353 = vst [vmem:[#allocation7 + $0x14] sm:$0x1] %v3352
    %v3354 = vld [vmem:[#allocation7] sm:$0xf]
    %v3355 = vld [vmem:[#allocation7 + $0x4] sm:$0xf]
    %v3356 = vld [vmem:[#allocation7 + $0xc] sm:$0xf]
    %v3357 = vld [vmem:[#allocation7 + $0x10] sm:$0xf]
    %v3358 = vld [vmem:[#allocation7] sm:$0xf]
    %v3359 = vld [vmem:[#allocation7 + $0x4] sm:$0xf]
    %v3360 = vld [vmem:[#allocation7 + $0x8] sm:$0x1]
    %v3361 = vld [vmem:[#allocation7 + $0xc] sm:$0xf]
    %v3362 = vld [vmem:[#allocation7 + $0x10] sm:$0xf]
    %v3363 = vld [vmem:[#allocation7 + $0x14] sm:$0x1]
    %v3364 = vld [vmem:[#allocation7] sm:$0xe]
    %v3365 = vld [vmem:[#allocation7 + $0xc] sm:$0xe]
    %v3370 = vunpack.c.l.b16 %v3354
    %v3371 = vunpack.c.l.b16 %v3355
    %v3372 = vunpack.c.l.b16 %v3356
    %v3373 = vunpack.c.l.b16 %v3357
    %v3374 = vpack.c.b16 %v3371, %v3370
    %v3375 = vpack.c.b16 %v3373, %v3372
    %v3384 = vunpack.c.l.b16 %v3358
    %v3385 = vunpack.c.l.b16 %v3359
    %v3386 = vunpack.c.l.b16 %v3360
    %v3387 = vunpack.c.l.b16 %v3361
    %v3388 = vunpack.c.l.b16 %v3362
    %v3389 = vunpack.c.l.b16 %v3363
    %v3390 = vpack.c.b16 %v3385, %v3384
    %v3391 = vpack.c.b16 %v3386, %v3386
    %v3392 = vpack.c.b16 %v3388, %v3387
    %v3393 = vpack.c.b16 %v3389, %v3389
    %v3395 = vshrl.u32 %v3390, 16
    %v3397 = vshll.u32 %v3390, 16
    %v3399 = vrot.slane %v3397, 1
    %v3400 = vor.u32 %v3395, %v3399
    %v3402 = vshll.u32 %v3391, 16
    %v3404 = vrot.slane %v3402, 1
    %v3405 = vsel %vm1158, %v3400, %v3404
    %v3407 = vshrl.u32 %v3392, 16
    %v3409 = vshll.u32 %v3392, 16
    %v3411 = vrot.slane %v3409, 1
    %v3412 = vor.u32 %v3407, %v3411
    %v3414 = vshll.u32 %v3393, 16
    %v3416 = vrot.slane %v3414, 1
    %v3417 = vsel %vm1158, %v3412, %v3416
    %v3422 = vunpack.c.l.b16 %v3364
    %v3423 = vunpack.c.l.b16 %v3365
    %v3424 = vpack.c.b16 %v3385, %v3422
    %v3425 = vpack.c.b16 %v3388, %v3423
    %v3426 = vrot.slane %v3424, 1
    %v3427 = vrot.slane %v3391, 1
    %v3428 = vsel %vm1193, %v3426, %v3427
    %v3429 = vrot.slane %v3425, 1
    %v3430 = vrot.slane %v3393, 1
    %v3431 = vsel %vm1193, %v3429, %v3430
    %v3434 = vld [vmem:[%s13] sm:$0xf]
    %v3435 = vld [vmem:[%s13 + $0x4] sm:$0xf]
    %v3436 = vld [vmem:[%s13 + $0x8] sm:$0xf]
    %v3437 = vld [vmem:[%s13 + $0xc] sm:$0xf]
    %v3438 = vld [vmem:[%s13 + $0x10] sm:$0xf]
    %v3439 = vld [vmem:[%s13 + $0x14] sm:$0xf]
    %v3440 = vld [vmem:[%s13 + $0x18] sm:$0xf]
    %v3441 = vld [vmem:[%s13 + $0x1c] sm:$0xf]
    %v3442 = vld [vmem:[%s13 + $0x20] sm:$0xf]
    %v3443 = vld [vmem:[%s13 + $0x24] sm:$0xf]
    %v3444 = vld [vmem:[%s13 + $0x28] sm:$0xf]
    %v3445 = vld [vmem:[%s13 + $0x2c] sm:$0xf]
    %v3446 = vld [vmem:[%s13 + $0x30] sm:$0xf]
    %v3447 = vld [vmem:[%s13 + $0x34] sm:$0xf]
    %v3448 = vld [vmem:[%s13 + $0x38] sm:$0xf]
    %v3449 = vld [vmem:[%s13 + $0x3c] sm:$0xf]
    %v3450 = vld [vmem:[%s13 + $0x40] sm:$0xf]
    %v3451 = vld [vmem:[%s13 + $0x44] sm:$0xf]
    %v3452 = vld [vmem:[%s13 + $0x48] sm:$0xf]
    %v3453 = vld [vmem:[%s13 + $0x4c] sm:$0xf]
    %v3454 = vld [vmem:[%s13 + $0x50] sm:$0xf]
    %v3455 = vld [vmem:[%s13 + $0x54] sm:$0xf]
    %v3456 = vld [vmem:[%s13 + $0x58] sm:$0xf]
    %v3457 = vld [vmem:[%s13 + $0x5c] sm:$0xf]
    %v3458 = vld [vmem:[%s13 + $0x60] sm:$0xf]
    %v3459 = vld [vmem:[%s13 + $0x64] sm:$0xf]
    %v3460 = vld [vmem:[%s13 + $0x68] sm:$0xf]
    %v3461 = vld [vmem:[%s13 + $0x6c] sm:$0xf]
    %v3462 = vld [vmem:[%s13 + $0x70] sm:$0xf]
    %v3463 = vld [vmem:[%s13 + $0x74] sm:$0xf]
    %v3464 = vld [vmem:[%s13 + $0x78] sm:$0xf]
    %v3465 = vld [vmem:[%s13 + $0x7c] sm:$0xf]
    %v3466 = vld [vmem:[%s13 + $0x80] sm:$0xf]
    %v3467 = vld [vmem:[%s13 + $0x84] sm:$0xf]
    %v3468 = vld [vmem:[%s13 + $0x88] sm:$0xf]
    %v3469 = vld [vmem:[%s13 + $0x8c] sm:$0xf]
    %v3470 = vld [vmem:[%s13 + $0x90] sm:$0xf]
    %v3471 = vld [vmem:[%s13 + $0x94] sm:$0xf]
    %v3472 = vld [vmem:[%s13 + $0x98] sm:$0xf]
    %v3473 = vld [vmem:[%s13 + $0x9c] sm:$0xf]
    %v3474 = vld [vmem:[%s13 + $0xa0] sm:$0xf]
    %v3475 = vld [vmem:[%s13 + $0xa4] sm:$0xf]
    %v3476 = vld [vmem:[%s13 + $0xa8] sm:$0xf]
    %v3477 = vld [vmem:[%s13 + $0xac] sm:$0xf]
    %v3478 = vld [vmem:[%s13 + $0xb0] sm:$0xf]
    %v3479 = vld [vmem:[%s13 + $0xb4] sm:$0xf]
    %v3480 = vld [vmem:[%s13 + $0xb8] sm:$0xf]
    %v3481 = vld [vmem:[%s13 + $0xbc] sm:$0xf]
    %v3530 = vunpack.c.l.b16 %v3434
    %v3531 = vunpack.c.l.b16 %v3435
    %v3532 = vunpack.c.l.b16 %v3436
    %v3533 = vunpack.c.l.b16 %v3437
    %v3534 = vunpack.c.l.b16 %v3438
    %v3535 = vunpack.c.l.b16 %v3439
    %v3536 = vunpack.c.l.b16 %v3440
    %v3537 = vunpack.c.l.b16 %v3441
    %v3538 = vunpack.c.l.b16 %v3442
    %v3539 = vunpack.c.l.b16 %v3443
    %v3540 = vunpack.c.l.b16 %v3444
    %v3541 = vunpack.c.l.b16 %v3445
    %v3542 = vunpack.c.l.b16 %v3446
    %v3543 = vunpack.c.l.b16 %v3447
    %v3544 = vunpack.c.l.b16 %v3448
    %v3545 = vunpack.c.l.b16 %v3449
    %v3546 = vunpack.c.l.b16 %v3450
    %v3547 = vunpack.c.l.b16 %v3451
    %v3548 = vunpack.c.l.b16 %v3452
    %v3549 = vunpack.c.l.b16 %v3453
    %v3550 = vunpack.c.l.b16 %v3454
    %v3551 = vunpack.c.l.b16 %v3455
    %v3552 = vunpack.c.l.b16 %v3456
    %v3553 = vunpack.c.l.b16 %v3457
    %v3554 = vunpack.c.l.b16 %v3458
    %v3555 = vunpack.c.l.b16 %v3459
    %v3556 = vunpack.c.l.b16 %v3460
    %v3557 = vunpack.c.l.b16 %v3461
    %v3558 = vunpack.c.l.b16 %v3462
    %v3559 = vunpack.c.l.b16 %v3463
    %v3560 = vunpack.c.l.b16 %v3464
    %v3561 = vunpack.c.l.b16 %v3465
    %v3562 = vunpack.c.l.b16 %v3466
    %v3563 = vunpack.c.l.b16 %v3467
    %v3564 = vunpack.c.l.b16 %v3468
    %v3565 = vunpack.c.l.b16 %v3469
    %v3566 = vunpack.c.l.b16 %v3470
    %v3567 = vunpack.c.l.b16 %v3471
    %v3568 = vunpack.c.l.b16 %v3472
    %v3569 = vunpack.c.l.b16 %v3473
    %v3570 = vunpack.c.l.b16 %v3474
    %v3571 = vunpack.c.l.b16 %v3475
    %v3572 = vunpack.c.l.b16 %v3476
    %v3573 = vunpack.c.l.b16 %v3477
    %v3574 = vunpack.c.l.b16 %v3478
    %v3575 = vunpack.c.l.b16 %v3479
    %v3576 = vunpack.c.l.b16 %v3480
    %v3577 = vunpack.c.l.b16 %v3481
    %v3578 = vpack.c.b16 %v3531, %v3530
    %v3579 = vpack.c.b16 %v3533, %v3532
    %v3580 = vpack.c.b16 %v3535, %v3534
    %v3581 = vpack.c.b16 %v3537, %v3536
    %v3582 = vpack.c.b16 %v3539, %v3538
    %v3583 = vpack.c.b16 %v3541, %v3540
    %v3584 = vpack.c.b16 %v3543, %v3542
    %v3585 = vpack.c.b16 %v3545, %v3544
    %v3586 = vpack.c.b16 %v3547, %v3546
    %v3587 = vpack.c.b16 %v3549, %v3548
    %v3588 = vpack.c.b16 %v3551, %v3550
    %v3589 = vpack.c.b16 %v3553, %v3552
    %v3590 = vpack.c.b16 %v3555, %v3554
    %v3591 = vpack.c.b16 %v3557, %v3556
    %v3592 = vpack.c.b16 %v3559, %v3558
    %v3593 = vpack.c.b16 %v3561, %v3560
    %v3594 = vpack.c.b16 %v3563, %v3562
    %v3595 = vpack.c.b16 %v3565, %v3564
    %v3596 = vpack.c.b16 %v3567, %v3566
    %v3597 = vpack.c.b16 %v3569, %v3568
    %v3598 = vpack.c.b16 %v3571, %v3570
    %v3599 = vpack.c.b16 %v3573, %v3572
    %v3600 = vpack.c.b16 %v3575, %v3574
    %v3601 = vpack.c.b16 %v3577, %v3576
    %3626 = vmatprep.subr.bf16.mxu0 0
    %3627 = vmatpush1.bf16.msra.mxu0 %v3578
    %3628 = vmatprep.subr.bf16.mxu0 0
    %3629 = vmatpush1.bf16.msra.mxu0 %v3579
    %3630 = vmatprep.subr.bf16.mxu0 0
    %3631 = vmatpush1.bf16.msra.mxu0 %v3580
    %3632 = vmatprep.subr.bf16.mxu0 0
    %3633 = vmatpush1.bf16.msra.mxu0 %v3581
    %3634 = vmatprep.subr.bf16.mxu0 0
    %3635 = vmatpush1.bf16.msra.mxu0 %v3582
    %3636 = vmatprep.subr.bf16.mxu0 0
    %3637 = vmatpush1.bf16.msra.mxu0 %v3583
    %3638 = vmatprep.subr.bf16.mxu0 0
    %3639 = vmatpush1.bf16.msra.mxu0 %v3584
    %3640 = vmatprep.subr.bf16.mxu0 0
    %3641 = vmatpush1.bf16.msra.mxu0 %v3585
    %3642 = vmatprep.subr.bf16.mxu0 0
    %3643 = vmatpush1.bf16.msra.mxu0 %v3586
    %3644 = vmatprep.subr.bf16.mxu0 0
    %3645 = vmatpush1.bf16.msra.mxu0 %v3587
    %3646 = vmatprep.subr.bf16.mxu0 0
    %3647 = vmatpush1.bf16.msra.mxu0 %v3588
    %3648 = vmatprep.subr.bf16.mxu0 0
    %3649 = vmatpush1.bf16.msra.mxu0 %v3589
    %3650 = vmatprep.subr.bf16.mxu0 0
    %3651 = vmatpush1.bf16.msra.mxu0 %v3590
    %3652 = vmatprep.subr.bf16.mxu0 0
    %3653 = vmatpush1.bf16.msra.mxu0 %v3591
    %3654 = vmatprep.subr.bf16.mxu0 0
    %3655 = vmatpush1.bf16.msra.mxu0 %v3592
    %3656 = vmatprep.subr.bf16.mxu0 0
    %3657 = vmatpush1.bf16.msra.mxu0 %v3593
    %3658 = vmatprep.mubr.bf16.mxu0 %v3405
    %3659 = vmatmul.mubr.bf16.gmra.mrb[0].mxu0 %v3374
    %v3660 = vpop.f32.mrb[0].mxu0
    %v3661 = vadd.f32 0.0, %v3660
    %v3662 = vpop.f32.mrb[0].mxu0
    %v3663 = vpop.f32.mrb[0].mxu0
    %v3664 = vadd.f32 0.0, %v3663
    %v3665 = vpop.f32.mrb[0].mxu0
    %3666 = vmatprep.mubr.bf16.mxu0 %v3417
    %3667 = vmatmul.mubr.bf16.gmra.mrb[0].mxu0 %v3375
    %v3668 = vpop.f32.mrb[0].mxu0
    %v3669 = vadd.f32 0.0, %v3668
    %v3670 = vpop.f32.mrb[0].mxu0
    %v3671 = vpop.f32.mrb[0].mxu0
    %v3672 = vadd.f32 0.0, %v3671
    %v3673 = vpop.f32.mrb[0].mxu0
    %3674 = vdwg.mxu0
    %3675 = vmatprep.subr.bf16.mxu0 0
    %3676 = vmatpush1.bf16.msra.mxu0 %v3594
    %3677 = vmatprep.subr.bf16.mxu0 0
    %3678 = vmatpush1.bf16.msra.mxu0 %v3595
    %3679 = vmatprep.subr.bf16.mxu0 0
    %3680 = vmatpush1.bf16.msra.mxu0 %v3596
    %3681 = vmatprep.subr.bf16.mxu0 0
    %3682 = vmatpush1.bf16.msra.mxu0 %v3597
    %3683 = vmatprep.subr.bf16.mxu0 0
    %3684 = vmatpush1.bf16.msra.mxu0 %v3598
    %3685 = vmatprep.subr.bf16.mxu0 0
    %3686 = vmatpush1.bf16.msra.mxu0 %v3599
    %3687 = vmatprep.subr.bf16.mxu0 0
    %3688 = vmatpush1.bf16.msra.mxu0 %v3600
    %3689 = vmatprep.subr.bf16.mxu0 0
    %3690 = vmatpush1.bf16.msra.mxu0 %v3601
    %3691 = vmatprep.subr.bf16.mxu0 0
    %3692 = vmatpush1.bf16.msra.mxu0 0
    %3693 = vmatprep.subr.bf16.mxu0 0
    %3694 = vmatpush1.bf16.msra.mxu0 0
    %3695 = vmatprep.subr.bf16.mxu0 0
    %3696 = vmatpush1.bf16.msra.mxu0 0
    %3697 = vmatprep.subr.bf16.mxu0 0
    %3698 = vmatpush1.bf16.msra.mxu0 0
    %3699 = vmatprep.subr.bf16.mxu0 0
    %3700 = vmatpush1.bf16.msra.mxu0 0
    %3701 = vmatprep.subr.bf16.mxu0 0
    %3702 = vmatpush1.bf16.msra.mxu0 0
    %3703 = vmatprep.subr.bf16.mxu0 0
    %3704 = vmatpush1.bf16.msra.mxu0 0
    %3705 = vmatprep.subr.bf16.mxu0 0
    %3706 = vmatpush1.bf16.msra.mxu0 0
    %3707 = vmatprep.mubr.bf16.mxu0 0
    %3708 = vmatmul.mubr.bf16.gmra.mrb[0].mxu0 %v3428
    %v3709 = vpop.f32.mrb[0].mxu0
    %v3710 = vadd.f32 %v3661, %v3709
    %v3711 = vpop.f32.mrb[0].mxu0
    %v3712 = vpop.f32.mrb[0].mxu0
    %v3713 = vadd.f32 %v3664, %v3712
    %v3714 = vpop.f32.mrb[0].mxu0
    %3715 = vmatprep.mubr.bf16.mxu0 0
    %3716 = vmatmul.mubr.bf16.gmra.mrb[0].mxu0 %v3431
    %v3717 = vpop.f32.mrb[0].mxu0
    %v3718 = vadd.f32 %v3669, %v3717
    %v3719 = vpop.f32.mrb[0].mxu0
    %v3720 = vpop.f32.mrb[0].mxu0
    %v3721 = vadd.f32 %v3672, %v3720
    %v3722 = vpop.f32.mrb[0].mxu0
    %3723 = vdwg.mxu0
    %v3724 = vld [vmem:[%s14] sm:$0x1]
    %v3726 = vlaneseq
    %v3727 = vshrl.u32 %v3726, 7
    %v3728 = vsub.s32 0, %v3727
    %v3729 = vrot.slane %v3724, %v3728
    %v3731 = vadd.f32 %v3710, %v3729
    %v3732 = vadd.f32 %v3713, %v3729
    %v3733 = vadd.f32 %v3718, %v3729
    %v3734 = vadd.f32 %v3721, %v3729
    %v3735 = vadd.f32 %v3731, %v1974
    %v3736 = vadd.f32 %v3732, %v1975
    %v3737 = vadd.f32 %v3733, %v1976
    %v3738 = vadd.f32 %v3734, %v1977
    %v3739 = vmax.f32 %v3735, 0.0
    %v3740 = vmax.f32 %v3736, 0.0
    %v3741 = vmax.f32 %v3737, 0.0
    %v3742 = vmax.f32 %v3738, 0.0
    %v3743 = vpack.c.bf16 %v3740, %v3739
    %v3744 = vpack.c.bf16 %v3742, %v3741
    %v3745 = vld [vmem:[%s23] sm:$0x1]
    %v3747 = vlaneseq
    %v3748 = vshrl.u32 %v3747, 7
    %v3749 = vsub.s32 0, %v3748
    %v3750 = vrot.slane %v3745, %v3749
    %v3752 = vmul.f32 %v3739, %v3750
    %v3753 = vmul.f32 %v3740, %v3750
    %v3754 = vmul.f32 %v3741, %v3750
    %v3755 = vmul.f32 %v3742, %v3750
    %v3756 = vld [vmem:[%s24] sm:$0x1]
    %v3758 = vlaneseq
    %v3759 = vshrl.u32 %v3758, 7
    %v3760 = vsub.s32 0, %v3759
    %v3761 = vrot.slane %v3756, %v3760
    %v3763 = vadd.f32 %v3752, %v3761
    %v3764 = vadd.f32 %v3753, %v3761
    %v3765 = vadd.f32 %v3754, %v3761
    %v3766 = vadd.f32 %v3755, %v3761
    %vm3767 = vmand %vm775, %vm270
    %v3768 = vld [vmem:[#allocation8] sm:$0x3]
    %v3769 = vsel %vm3767, 0, %v3768
    %3770 = vst [vmem:[#allocation8] sm:$0x3] %v3769
    %v3771 = vld [vmem:[#allocation8 + $0xc] sm:$0x3]
    %v3772 = vsel %vm3767, 0, %v3771
    %3773 = vst [vmem:[#allocation8 + $0xc] sm:$0x3] %v3772
    %vm3774 = vcmask 1043457
    %vm3775 = vmand %vm3774, %vm279
    %v3776 = vld [vmem:[#allocation8 + $0x8] sm:$0xe]
    %v3777 = vsel %vm3775, 0, %v3776
    %3778 = vst [vmem:[#allocation8 + $0x8] sm:$0xe] %v3777
    %v3779 = vld [vmem:[#allocation8 + $0x14] sm:$0xe]
    %v3780 = vsel %vm3775, 0, %v3779
    %3781 = vst [vmem:[#allocation8 + $0x14] sm:$0xe] %v3780
    %v3784 = vunpack.c.l.b16 %v3743
    %v3785 = vunpack.c.h.b16 %v3743
    %v3786 = vunpack.c.l.b16 %v3744
    %v3787 = vunpack.c.h.b16 %v3744
    %v3788 = vpack.c.b16 %v3784, %v3784
    %v3789 = vpack.c.b16 %v3785, %v3785
    %v3790 = vpack.c.b16 %v3786, %v3786
    %v3791 = vpack.c.b16 %v3787, %v3787
    %v3793 = vshrl.u32 %v3788, 16
    %v3795 = vrot.slane %v3793, 6
    %v3796 = vshll.u32 %v3788, 16
    %v3798 = vrot.slane %v3796, 7
    %v3799 = vor.u32 %v3795, %v3798
    %v3800 = vrot.slane %v3799, 4
    %v3802 = vshrl.u32 %v3789, 16
    %v3804 = vrot.slane %v3802, 6
    %v3805 = vshll.u32 %v3789, 16
    %v3807 = vrot.slane %v3805, 7
    %v3808 = vor.u32 %v3804, %v3807
    %v3809 = vsel %vm298, %v3800, %v3808
    %v3810 = vrot.slane %v3808, 4
    %v3812 = vshrl.u32 %v3790, 16
    %v3814 = vrot.slane %v3812, 6
    %v3815 = vshll.u32 %v3790, 16
    %v3817 = vrot.slane %v3815, 7
    %v3818 = vor.u32 %v3814, %v3817
    %v3819 = vrot.slane %v3818, 4
    %v3821 = vshrl.u32 %v3791, 16
    %v3823 = vrot.slane %v3821, 6
    %v3824 = vshll.u32 %v3791, 16
    %v3826 = vrot.slane %v3824, 7
    %v3827 = vor.u32 %v3823, %v3826
    %v3828 = vsel %vm298, %v3819, %v3827
    %v3829 = vrot.slane %v3827, 4
    %v3836 = vld [vmem:[#allocation8] sm:$0xe]
    %v3837 = vsel %vm3775, %v3799, %v3836
    %3838 = vst [vmem:[#allocation8] sm:$0xe] %v3837
    %3839 = vst [vmem:[#allocation8 + $0x4] sm:$0xf] %v3809
    %v3840 = vld [vmem:[#allocation8 + $0x8] sm:$0x3]
    %v3841 = vsel %vm3767, %v3810, %v3840
    %3842 = vst [vmem:[#allocation8 + $0x8] sm:$0x3] %v3841
    %v3843 = vld [vmem:[#allocation8 + $0xc] sm:$0xe]
    %v3844 = vsel %vm3775, %v3818, %v3843
    %3845 = vst [vmem:[#allocation8 + $0xc] sm:$0xe] %v3844
    %3846 = vst [vmem:[#allocation8 + $0x10] sm:$0xf] %v3828
    %v3847 = vld [vmem:[#allocation8 + $0x14] sm:$0x3]
    %v3848 = vsel %vm3767, %v3829, %v3847
    %3849 = vst [vmem:[#allocation8 + $0x14] sm:$0x3] %v3848
    %v3850 = vld [vmem:[#allocation8] sm:$0xf]
    %v3851 = vld [vmem:[#allocation8 + $0x4] sm:$0xf]
    %v3852 = vld [vmem:[#allocation8 + $0xc] sm:$0xf]
    %v3853 = vld [vmem:[#allocation8 + $0x10] sm:$0xf]
    %v3854 = vld [vmem:[#allocation8] sm:$0xf]
    %v3855 = vld [vmem:[#allocation8 + $0x4] sm:$0xf]
    %v3856 = vld [vmem:[#allocation8 + $0x8] sm:$0x1]
    %v3857 = vld [vmem:[#allocation8 + $0xc] sm:$0xf]
    %v3858 = vld [vmem:[#allocation8 + $0x10] sm:$0xf]
    %v3859 = vld [vmem:[#allocation8 + $0x14] sm:$0x1]
    %v3860 = vld [vmem:[#allocation8] sm:$0xe]
    %v3861 = vld [vmem:[#allocation8 + $0xc] sm:$0xe]
    %v3862 = vld [vmem:[#allocation8 + $0x8] sm:$0x3]
    %v3863 = vld [vmem:[#allocation8 + $0x14] sm:$0x3]
    %v3864 = vld [vmem:[#allocation8] sm:$0xc]
    %v3865 = vld [vmem:[#allocation8 + $0xc] sm:$0xc]
    %v3866 = vld [vmem:[#allocation8 + $0x8] sm:$0x7]
    %v3867 = vld [vmem:[#allocation8 + $0x14] sm:$0x7]
    %v3868 = vld [vmem:[#allocation8] sm:$0x8]
    %v3869 = vld [vmem:[#allocation8 + $0xc] sm:$0x8]
    %v3874 = vunpack.c.l.b16 %v3850
    %v3875 = vunpack.c.l.b16 %v3851
    %v3876 = vunpack.c.l.b16 %v3852
    %v3877 = vunpack.c.l.b16 %v3853
    %v3878 = vpack.c.b16 %v3875, %v3874
    %v3879 = vpack.c.b16 %v3877, %v3876
    %v3888 = vunpack.c.l.b16 %v3854
    %v3889 = vunpack.c.l.b16 %v3855
    %v3890 = vunpack.c.l.b16 %v3856
    %v3891 = vunpack.c.l.b16 %v3857
    %v3892 = vunpack.c.l.b16 %v3858
    %v3893 = vunpack.c.l.b16 %v3859
    %v3894 = vpack.c.b16 %v3889, %v3888
    %v3895 = vpack.c.b16 %v3890, %v3890
    %v3896 = vpack.c.b16 %v3892, %v3891
    %v3897 = vpack.c.b16 %v3893, %v3893
    %v3899 = vshrl.u32 %v3894, 16
    %v3901 = vshll.u32 %v3894, 16
    %v3903 = vrot.slane %v3901, 1
    %v3904 = vor.u32 %v3899, %v3903
    %v3906 = vshll.u32 %v3895, 16
    %v3908 = vrot.slane %v3906, 1
    %v3909 = vsel %vm1158, %v3904, %v3908
    %v3911 = vshrl.u32 %v3896, 16
    %v3913 = vshll.u32 %v3896, 16
    %v3915 = vrot.slane %v3913, 1
    %v3916 = vor.u32 %v3911, %v3915
    %v3918 = vshll.u32 %v3897, 16
    %v3920 = vrot.slane %v3918, 1
    %v3921 = vsel %vm1158, %v3916, %v3920
    %v3926 = vunpack.c.l.b16 %v3860
    %v3927 = vunpack.c.l.b16 %v3861
    %v3928 = vpack.c.b16 %v3889, %v3926
    %v3929 = vpack.c.b16 %v3892, %v3927
    %v3930 = vrot.slane %v3928, 1
    %v3931 = vrot.slane %v3895, 1
    %v3932 = vsel %vm1193, %v3930, %v3931
    %v3933 = vrot.slane %v3929, 1
    %v3934 = vrot.slane %v3897, 1
    %v3935 = vsel %vm1193, %v3933, %v3934
    %v3940 = vunpack.c.l.b16 %v3862
    %v3941 = vunpack.c.l.b16 %v3863
    %v3942 = vpack.c.b16 %v3940, %v3940
    %v3943 = vpack.c.b16 %v3941, %v3941
    %v3945 = vshrl.u32 %v3928, 16
    %v3947 = vrot.slane %v3945, 1
    %v3948 = vshll.u32 %v3928, 16
    %v3950 = vrot.slane %v3948, 2
    %v3951 = vor.u32 %v3947, %v3950
    %v3953 = vshrl.u32 %v3942, 16
    %v3955 = vrot.slane %v3953, 1
    %v3956 = vshll.u32 %v3942, 16
    %v3958 = vrot.slane %v3956, 2
    %v3959 = vor.u32 %v3955, %v3958
    %v3960 = vsel %vm1206, %v3951, %v3959
    %v3962 = vshrl.u32 %v3929, 16
    %v3964 = vrot.slane %v3962, 1
    %v3965 = vshll.u32 %v3929, 16
    %v3967 = vrot.slane %v3965, 2
    %v3968 = vor.u32 %v3964, %v3967
    %v3970 = vshrl.u32 %v3943, 16
    %v3972 = vrot.slane %v3970, 1
    %v3973 = vshll.u32 %v3943, 16
    %v3975 = vrot.slane %v3973, 2
    %v3976 = vor.u32 %v3972, %v3975
    %v3977 = vsel %vm1206, %v3968, %v3976
    %v3982 = vunpack.c.l.b16 %v3864
    %v3983 = vunpack.c.l.b16 %v3865
    %v3984 = vpack.c.b16 %v3889, %v3982
    %v3985 = vpack.c.b16 %v3892, %v3983
    %v3986 = vrot.slane %v3984, 2
    %v3987 = vrot.slane %v3942, 2
    %v3988 = vsel %vm1251, %v3986, %v3987
    %v3989 = vrot.slane %v3985, 2
    %v3990 = vrot.slane %v3943, 2
    %v3991 = vsel %vm1251, %v3989, %v3990
    %v3996 = vunpack.c.l.b16 %v3866
    %v3997 = vunpack.c.l.b16 %v3867
    %v3998 = vpack.c.b16 %v3996, %v3996
    %v3999 = vpack.c.b16 %v3997, %v3997
    %v4001 = vshrl.u32 %v3984, 16
    %v4003 = vrot.slane %v4001, 2
    %v4004 = vshll.u32 %v3984, 16
    %v4006 = vrot.slane %v4004, 3
    %v4007 = vor.u32 %v4003, %v4006
    %v4009 = vshrl.u32 %v3998, 16
    %v4011 = vrot.slane %v4009, 2
    %v4012 = vshll.u32 %v3998, 16
    %v4014 = vrot.slane %v4012, 3
    %v4015 = vor.u32 %v4011, %v4014
    %v4016 = vsel %vm2196, %v4007, %v4015
    %v4018 = vshrl.u32 %v3985, 16
    %v4020 = vrot.slane %v4018, 2
    %v4021 = vshll.u32 %v3985, 16
    %v4023 = vrot.slane %v4021, 3
    %v4024 = vor.u32 %v4020, %v4023
    %v4026 = vshrl.u32 %v3999, 16
    %v4028 = vrot.slane %v4026, 2
    %v4029 = vshll.u32 %v3999, 16
    %v4031 = vrot.slane %v4029, 3
    %v4032 = vor.u32 %v4028, %v4031
    %v4033 = vsel %vm2196, %v4024, %v4032
    %v4038 = vunpack.c.l.b16 %v3868
    %v4039 = vunpack.c.l.b16 %v3869
    %v4040 = vpack.c.b16 %v3889, %v4038
    %v4041 = vpack.c.b16 %v3892, %v4039
    %v4042 = vrot.slane %v4040, 3
    %v4043 = vrot.slane %v3998, 3
    %v4044 = vsel %vm2241, %v4042, %v4043
    %v4045 = vrot.slane %v4041, 3
    %v4046 = vrot.slane %v3999, 3
    %v4047 = vsel %vm2241, %v4045, %v4046
    %v4050 = vld [vmem:[#allocation20] sm:$0xf]
    %v4051 = vld [vmem:[#allocation20 + $0x4] sm:$0xf]
    %v4052 = vld [vmem:[#allocation20 + $0x8] sm:$0xf]
    %v4053 = vld [vmem:[#allocation20 + $0xc] sm:$0xf]
    %v4054 = vld [vmem:[#allocation20 + $0x10] sm:$0xf]
    %v4055 = vld [vmem:[#allocation20 + $0x14] sm:$0xf]
    %v4056 = vld [vmem:[#allocation20 + $0x18] sm:$0xf]
    %v4057 = vld [vmem:[#allocation20 + $0x1c] sm:$0xf]
    %v4058 = vld [vmem:[#allocation20 + $0x20] sm:$0xf]
    %v4059 = vld [vmem:[#allocation20 + $0x24] sm:$0xf]
    %v4060 = vld [vmem:[#allocation20 + $0x28] sm:$0xf]
    %v4061 = vld [vmem:[#allocation20 + $0x2c] sm:$0xf]
    %v4062 = vld [vmem:[#allocation20 + $0x30] sm:$0xf]
    %v4063 = vld [vmem:[#allocation20 + $0x34] sm:$0xf]
    %v4064 = vld [vmem:[#allocation20 + $0x38] sm:$0xf]
    %v4065 = vld [vmem:[#allocation20 + $0x3c] sm:$0xf]
    %v4066 = vld [vmem:[#allocation20 + $0x40] sm:$0xf]
    %v4067 = vld [vmem:[#allocation20 + $0x44] sm:$0xf]
    %v4068 = vld [vmem:[#allocation20 + $0x48] sm:$0xf]
    %v4069 = vld [vmem:[#allocation20 + $0x4c] sm:$0xf]
    %v4070 = vld [vmem:[#allocation20 + $0x50] sm:$0xf]
    %v4071 = vld [vmem:[#allocation20 + $0x54] sm:$0xf]
    %v4072 = vld [vmem:[#allocation20 + $0x58] sm:$0xf]
    %v4073 = vld [vmem:[#allocation20 + $0x5c] sm:$0xf]
    %v4074 = vld [vmem:[#allocation20 + $0x60] sm:$0xf]
    %v4075 = vld [vmem:[#allocation20 + $0x64] sm:$0xf]
    %v4076 = vld [vmem:[#allocation20 + $0x68] sm:$0xf]
    %v4077 = vld [vmem:[#allocation20 + $0x6c] sm:$0xf]
    %v4078 = vld [vmem:[#allocation20 + $0x70] sm:$0xf]
    %v4079 = vld [vmem:[#allocation20 + $0x74] sm:$0xf]
    %v4080 = vld [vmem:[#allocation20 + $0x78] sm:$0xf]
    %v4081 = vld [vmem:[#allocation20 + $0x7c] sm:$0xf]
    %v4082 = vld [vmem:[#allocation20 + $0x80] sm:$0xf]
    %v4083 = vld [vmem:[#allocation20 + $0x84] sm:$0xf]
    %v4084 = vld [vmem:[#allocation20 + $0x88] sm:$0xf]
    %v4085 = vld [vmem:[#allocation20 + $0x8c] sm:$0xf]
    %v4086 = vld [vmem:[#allocation20 + $0x90] sm:$0xf]
    %v4087 = vld [vmem:[#allocation20 + $0x94] sm:$0xf]
    %v4088 = vld [vmem:[#allocation20 + $0x98] sm:$0xf]
    %v4089 = vld [vmem:[#allocation20 + $0x9c] sm:$0xf]
    %v4090 = vld [vmem:[#allocation20 + $0xa0] sm:$0xf]
    %v4091 = vld [vmem:[#allocation20 + $0xa4] sm:$0xf]
    %v4092 = vld [vmem:[#allocation20 + $0xa8] sm:$0xf]
    %v4093 = vld [vmem:[#allocation20 + $0xac] sm:$0xf]
    %v4094 = vld [vmem:[#allocation20 + $0xb0] sm:$0xf]
    %v4095 = vld [vmem:[#allocation20 + $0xb4] sm:$0xf]
    %v4096 = vld [vmem:[#allocation20 + $0xb8] sm:$0xf]
    %v4097 = vld [vmem:[#allocation20 + $0xbc] sm:$0xf]
    %v4098 = vld [vmem:[#allocation20 + $0xc0] sm:$0xf]
    %v4099 = vld [vmem:[#allocation20 + $0xc4] sm:$0xf]
    %v4100 = vld [vmem:[#allocation20 + $0xc8] sm:$0xf]
    %v4101 = vld [vmem:[#allocation20 + $0xcc] sm:$0xf]
    %v4102 = vld [vmem:[#allocation20 + $0xd0] sm:$0xf]
    %v4103 = vld [vmem:[#allocation20 + $0xd4] sm:$0xf]
    %v4104 = vld [vmem:[#allocation20 + $0xd8] sm:$0xf]
    %v4105 = vld [vmem:[#allocation20 + $0xdc] sm:$0xf]
    %v4106 = vld [vmem:[#allocation20 + $0xe0] sm:$0xf]
    %v4107 = vld [vmem:[#allocation20 + $0xe4] sm:$0xf]
    %v4108 = vld [vmem:[#allocation20 + $0xe8] sm:$0xf]
    %v4109 = vld [vmem:[#allocation20 + $0xec] sm:$0xf]
    %v4110 = vld [vmem:[#allocation20 + $0xf0] sm:$0xf]
    %v4111 = vld [vmem:[#allocation20 + $0xf4] sm:$0xf]
    %v4112 = vld [vmem:[#allocation20 + $0xf8] sm:$0xf]
    %v4113 = vld [vmem:[#allocation20 + $0xfc] sm:$0xf]
    %v4114 = vld [vmem:[#allocation20 + $0x100] sm:$0xf]
    %v4115 = vld [vmem:[#allocation20 + $0x104] sm:$0xf]
    %v4116 = vld [vmem:[#allocation20 + $0x108] sm:$0xf]
    %v4117 = vld [vmem:[#allocation20 + $0x10c] sm:$0xf]
    %v4118 = vld [vmem:[#allocation20 + $0x110] sm:$0xf]
    %v4119 = vld [vmem:[#allocation20 + $0x114] sm:$0xf]
    %v4120 = vld [vmem:[#allocation20 + $0x118] sm:$0xf]
    %v4121 = vld [vmem:[#allocation20 + $0x11c] sm:$0xf]
    %v4122 = vld [vmem:[#allocation20 + $0x120] sm:$0xf]
    %v4123 = vld [vmem:[#allocation20 + $0x124] sm:$0xf]
    %v4124 = vld [vmem:[#allocation20 + $0x128] sm:$0xf]
    %v4125 = vld [vmem:[#allocation20 + $0x12c] sm:$0xf]
    %v4126 = vld [vmem:[#allocation20 + $0x130] sm:$0xf]
    %v4127 = vld [vmem:[#allocation20 + $0x134] sm:$0xf]
    %v4128 = vld [vmem:[#allocation20 + $0x138] sm:$0xf]
    %v4129 = vld [vmem:[#allocation20 + $0x13c] sm:$0xf]
    %v4130 = vld [vmem:[#allocation20 + $0x140] sm:$0xf]
    %v4131 = vld [vmem:[#allocation20 + $0x144] sm:$0xf]
    %v4132 = vld [vmem:[#allocation20 + $0x148] sm:$0xf]
    %v4133 = vld [vmem:[#allocation20 + $0x14c] sm:$0xf]
    %v4134 = vld [vmem:[#allocation20 + $0x150] sm:$0xf]
    %v4135 = vld [vmem:[#allocation20 + $0x154] sm:$0xf]
    %v4136 = vld [vmem:[#allocation20 + $0x158] sm:$0xf]
    %v4137 = vld [vmem:[#allocation20 + $0x15c] sm:$0xf]
    %v4138 = vld [vmem:[#allocation20 + $0x160] sm:$0xf]
    %v4139 = vld [vmem:[#allocation20 + $0x164] sm:$0xf]
    %v4140 = vld [vmem:[#allocation20 + $0x168] sm:$0xf]
    %v4141 = vld [vmem:[#allocation20 + $0x16c] sm:$0xf]
    %v4142 = vld [vmem:[#allocation20 + $0x170] sm:$0xf]
    %v4143 = vld [vmem:[#allocation20 + $0x174] sm:$0xf]
    %v4144 = vld [vmem:[#allocation20 + $0x178] sm:$0xf]
    %v4145 = vld [vmem:[#allocation20 + $0x17c] sm:$0xf]
    %v4146 = vld [vmem:[#allocation20 + $0x180] sm:$0xf]
    %v4147 = vld [vmem:[#allocation20 + $0x184] sm:$0xf]
    %v4148 = vld [vmem:[#allocation20 + $0x188] sm:$0xf]
    %v4149 = vld [vmem:[#allocation20 + $0x18c] sm:$0xf]
    %v4150 = vld [vmem:[#allocation20 + $0x190] sm:$0xf]
    %v4151 = vld [vmem:[#allocation20 + $0x194] sm:$0xf]
    %v4152 = vld [vmem:[#allocation20 + $0x198] sm:$0xf]
    %v4153 = vld [vmem:[#allocation20 + $0x19c] sm:$0xf]
    %v4154 = vld [vmem:[#allocation20 + $0x1a0] sm:$0xf]
    %v4155 = vld [vmem:[#allocation20 + $0x1a4] sm:$0xf]
    %v4156 = vld [vmem:[#allocation20 + $0x1a8] sm:$0xf]
    %v4157 = vld [vmem:[#allocation20 + $0x1ac] sm:$0xf]
    %v4158 = vld [vmem:[#allocation20 + $0x1b0] sm:$0xf]
    %v4159 = vld [vmem:[#allocation20 + $0x1b4] sm:$0xf]
    %v4160 = vld [vmem:[#allocation20 + $0x1b8] sm:$0xf]
    %v4161 = vld [vmem:[#allocation20 + $0x1bc] sm:$0xf]
    %v4274 = vunpack.c.l.b16 %v4050
    %v4275 = vunpack.c.l.b16 %v4051
    %v4276 = vunpack.c.l.b16 %v4052
    %v4277 = vunpack.c.l.b16 %v4053
    %v4278 = vunpack.c.l.b16 %v4054
    %v4279 = vunpack.c.l.b16 %v4055
    %v4280 = vunpack.c.l.b16 %v4056
    %v4281 = vunpack.c.l.b16 %v4057
    %v4282 = vunpack.c.l.b16 %v4058
    %v4283 = vunpack.c.l.b16 %v4059
    %v4284 = vunpack.c.l.b16 %v4060
    %v4285 = vunpack.c.l.b16 %v4061
    %v4286 = vunpack.c.l.b16 %v4062
    %v4287 = vunpack.c.l.b16 %v4063
    %v4288 = vunpack.c.l.b16 %v4064
    %v4289 = vunpack.c.l.b16 %v4065
    %v4290 = vunpack.c.l.b16 %v4066
    %v4291 = vunpack.c.l.b16 %v4067
    %v4292 = vunpack.c.l.b16 %v4068
    %v4293 = vunpack.c.l.b16 %v4069
    %v4294 = vunpack.c.l.b16 %v4070
    %v4295 = vunpack.c.l.b16 %v4071
    %v4296 = vunpack.c.l.b16 %v4072
    %v4297 = vunpack.c.l.b16 %v4073
    %v4298 = vunpack.c.l.b16 %v4074
    %v4299 = vunpack.c.l.b16 %v4075
    %v4300 = vunpack.c.l.b16 %v4076
    %v4301 = vunpack.c.l.b16 %v4077
    %v4302 = vunpack.c.l.b16 %v4078
    %v4303 = vunpack.c.l.b16 %v4079
    %v4304 = vunpack.c.l.b16 %v4080
    %v4305 = vunpack.c.l.b16 %v4081
    %v4306 = vunpack.c.l.b16 %v4082
    %v4307 = vunpack.c.l.b16 %v4083
    %v4308 = vunpack.c.l.b16 %v4084
    %v4309 = vunpack.c.l.b16 %v4085
    %v4310 = vunpack.c.l.b16 %v4086
    %v4311 = vunpack.c.l.b16 %v4087
    %v4312 = vunpack.c.l.b16 %v4088
    %v4313 = vunpack.c.l.b16 %v4089
    %v4314 = vunpack.c.l.b16 %v4090
    %v4315 = vunpack.c.l.b16 %v4091
    %v4316 = vunpack.c.l.b16 %v4092
    %v4317 = vunpack.c.l.b16 %v4093
    %v4318 = vunpack.c.l.b16 %v4094
    %v4319 = vunpack.c.l.b16 %v4095
    %v4320 = vunpack.c.l.b16 %v4096
    %v4321 = vunpack.c.l.b16 %v4097
    %v4322 = vunpack.c.l.b16 %v4098
    %v4323 = vunpack.c.l.b16 %v4099
    %v4324 = vunpack.c.l.b16 %v4100
    %v4325 = vunpack.c.l.b16 %v4101
    %v4326 = vunpack.c.l.b16 %v4102
    %v4327 = vunpack.c.l.b16 %v4103
    %v4328 = vunpack.c.l.b16 %v4104
    %v4329 = vunpack.c.l.b16 %v4105
    %v4330 = vunpack.c.l.b16 %v4106
    %v4331 = vunpack.c.l.b16 %v4107
    %v4332 = vunpack.c.l.b16 %v4108
    %v4333 = vunpack.c.l.b16 %v4109
    %v4334 = vunpack.c.l.b16 %v4110
    %v4335 = vunpack.c.l.b16 %v4111
    %v4336 = vunpack.c.l.b16 %v4112
    %v4337 = vunpack.c.l.b16 %v4113
    %v4338 = vunpack.c.l.b16 %v4114
    %v4339 = vunpack.c.l.b16 %v4115
    %v4340 = vunpack.c.l.b16 %v4116
    %v4341 = vunpack.c.l.b16 %v4117
    %v4342 = vunpack.c.l.b16 %v4118
    %v4343 = vunpack.c.l.b16 %v4119
    %v4344 = vunpack.c.l.b16 %v4120
    %v4345 = vunpack.c.l.b16 %v4121
    %v4346 = vunpack.c.l.b16 %v4122
    %v4347 = vunpack.c.l.b16 %v4123
    %v4348 = vunpack.c.l.b16 %v4124
    %v4349 = vunpack.c.l.b16 %v4125
    %v4350 = vunpack.c.l.b16 %v4126
    %v4351 = vunpack.c.l.b16 %v4127
    %v4352 = vunpack.c.l.b16 %v4128
    %v4353 = vunpack.c.l.b16 %v4129
    %v4354 = vunpack.c.l.b16 %v4130
    %v4355 = vunpack.c.l.b16 %v4131
    %v4356 = vunpack.c.l.b16 %v4132
    %v4357 = vunpack.c.l.b16 %v4133
    %v4358 = vunpack.c.l.b16 %v4134
    %v4359 = vunpack.c.l.b16 %v4135
    %v4360 = vunpack.c.l.b16 %v4136
    %v4361 = vunpack.c.l.b16 %v4137
    %v4362 = vunpack.c.l.b16 %v4138
    %v4363 = vunpack.c.l.b16 %v4139
    %v4364 = vunpack.c.l.b16 %v4140
    %v4365 = vunpack.c.l.b16 %v4141
    %v4366 = vunpack.c.l.b16 %v4142
    %v4367 = vunpack.c.l.b16 %v4143
    %v4368 = vunpack.c.l.b16 %v4144
    %v4369 = vunpack.c.l.b16 %v4145
    %v4370 = vunpack.c.l.b16 %v4146
    %v4371 = vunpack.c.l.b16 %v4147
    %v4372 = vunpack.c.l.b16 %v4148
    %v4373 = vunpack.c.l.b16 %v4149
    %v4374 = vunpack.c.l.b16 %v4150
    %v4375 = vunpack.c.l.b16 %v4151
    %v4376 = vunpack.c.l.b16 %v4152
    %v4377 = vunpack.c.l.b16 %v4153
    %v4378 = vunpack.c.l.b16 %v4154
    %v4379 = vunpack.c.l.b16 %v4155
    %v4380 = vunpack.c.l.b16 %v4156
    %v4381 = vunpack.c.l.b16 %v4157
    %v4382 = vunpack.c.l.b16 %v4158
    %v4383 = vunpack.c.l.b16 %v4159
    %v4384 = vunpack.c.l.b16 %v4160
    %v4385 = vunpack.c.l.b16 %v4161
    %v4386 = vpack.c.b16 %v4275, %v4274
    %v4387 = vpack.c.b16 %v4277, %v4276
    %v4388 = vpack.c.b16 %v4279, %v4278
    %v4389 = vpack.c.b16 %v4281, %v4280
    %v4390 = vpack.c.b16 %v4283, %v4282
    %v4391 = vpack.c.b16 %v4285, %v4284
    %v4392 = vpack.c.b16 %v4287, %v4286
    %v4393 = vpack.c.b16 %v4289, %v4288
    %v4394 = vpack.c.b16 %v4291, %v4290
    %v4395 = vpack.c.b16 %v4293, %v4292
    %v4396 = vpack.c.b16 %v4295, %v4294
    %v4397 = vpack.c.b16 %v4297, %v4296
    %v4398 = vpack.c.b16 %v4299, %v4298
    %v4399 = vpack.c.b16 %v4301, %v4300
    %v4400 = vpack.c.b16 %v4303, %v4302
    %v4401 = vpack.c.b16 %v4305, %v4304
    %v4402 = vpack.c.b16 %v4307, %v4306
    %v4403 = vpack.c.b16 %v4309, %v4308
    %v4404 = vpack.c.b16 %v4311, %v4310
    %v4405 = vpack.c.b16 %v4313, %v4312
    %v4406 = vpack.c.b16 %v4315, %v4314
    %v4407 = vpack.c.b16 %v4317, %v4316
    %v4408 = vpack.c.b16 %v4319, %v4318
    %v4409 = vpack.c.b16 %v4321, %v4320
    %v4410 = vpack.c.b16 %v4323, %v4322
    %v4411 = vpack.c.b16 %v4325, %v4324
    %v4412 = vpack.c.b16 %v4327, %v4326
    %v4413 = vpack.c.b16 %v4329, %v4328
    %v4414 = vpack.c.b16 %v4331, %v4330
    %v4415 = vpack.c.b16 %v4333, %v4332
    %v4416 = vpack.c.b16 %v4335, %v4334
    %v4417 = vpack.c.b16 %v4337, %v4336
    %v4418 = vpack.c.b16 %v4339, %v4338
    %v4419 = vpack.c.b16 %v4341, %v4340
    %v4420 = vpack.c.b16 %v4343, %v4342
    %v4421 = vpack.c.b16 %v4345, %v4344
    %v4422 = vpack.c.b16 %v4347, %v4346
    %v4423 = vpack.c.b16 %v4349, %v4348
    %v4424 = vpack.c.b16 %v4351, %v4350
    %v4425 = vpack.c.b16 %v4353, %v4352
    %v4426 = vpack.c.b16 %v4355, %v4354
    %v4427 = vpack.c.b16 %v4357, %v4356
    %v4428 = vpack.c.b16 %v4359, %v4358
    %v4429 = vpack.c.b16 %v4361, %v4360
    %v4430 = vpack.c.b16 %v4363, %v4362
    %v4431 = vpack.c.b16 %v4365, %v4364
    %v4432 = vpack.c.b16 %v4367, %v4366
    %v4433 = vpack.c.b16 %v4369, %v4368
    %v4434 = vpack.c.b16 %v4371, %v4370
    %v4435 = vpack.c.b16 %v4373, %v4372
    %v4436 = vpack.c.b16 %v4375, %v4374
    %v4437 = vpack.c.b16 %v4377, %v4376
    %v4438 = vpack.c.b16 %v4379, %v4378
    %v4439 = vpack.c.b16 %v4381, %v4380
    %v4440 = vpack.c.b16 %v4383, %v4382
    %v4441 = vpack.c.b16 %v4385, %v4384
    %4498 = vmatprep.subr.bf16.mxu0 0
    %4499 = vmatpush1.bf16.msra.mxu0 %v4386
    %4500 = vmatprep.subr.bf16.mxu0 0
    %4501 = vmatpush1.bf16.msra.mxu0 %v4387
    %4502 = vmatprep.subr.bf16.mxu0 0
    %4503 = vmatpush1.bf16.msra.mxu0 %v4388
    %4504 = vmatprep.subr.bf16.mxu0 0
    %4505 = vmatpush1.bf16.msra.mxu0 %v4389
    %4506 = vmatprep.subr.bf16.mxu0 0
    %4507 = vmatpush1.bf16.msra.mxu0 %v4390
    %4508 = vmatprep.subr.bf16.mxu0 0
    %4509 = vmatpush1.bf16.msra.mxu0 %v4391
    %4510 = vmatprep.subr.bf16.mxu0 0
    %4511 = vmatpush1.bf16.msra.mxu0 %v4392
    %4512 = vmatprep.subr.bf16.mxu0 0
    %4513 = vmatpush1.bf16.msra.mxu0 %v4393
    %4514 = vmatprep.subr.bf16.mxu0 0
    %4515 = vmatpush1.bf16.msra.mxu0 %v4394
    %4516 = vmatprep.subr.bf16.mxu0 0
    %4517 = vmatpush1.bf16.msra.mxu0 %v4395
    %4518 = vmatprep.subr.bf16.mxu0 0
    %4519 = vmatpush1.bf16.msra.mxu0 %v4396
    %4520 = vmatprep.subr.bf16.mxu0 0
    %4521 = vmatpush1.bf16.msra.mxu0 %v4397
    %4522 = vmatprep.subr.bf16.mxu0 0
    %4523 = vmatpush1.bf16.msra.mxu0 %v4398
    %4524 = vmatprep.subr.bf16.mxu0 0
    %4525 = vmatpush1.bf16.msra.mxu0 %v4399
    %4526 = vmatprep.subr.bf16.mxu0 0
    %4527 = vmatpush1.bf16.msra.mxu0 %v4400
    %4528 = vmatprep.subr.bf16.mxu0 0
    %4529 = vmatpush1.bf16.msra.mxu0 %v4401
    %4530 = vmatprep.mubr.bf16.mxu0 %v3909
    %4531 = vmatmul.mubr.bf16.gmra.mrb[0].mxu0 %v3878
    %v4532 = vpop.f32.mrb[0].mxu0
    %v4533 = vadd.f32 0.0, %v4532
    %v4534 = vpop.f32.mrb[0].mxu0
    %v4535 = vpop.f32.mrb[0].mxu0
    %v4536 = vadd.f32 0.0, %v4535
    %v4537 = vpop.f32.mrb[0].mxu0
    %4538 = vmatprep.mubr.bf16.mxu0 %v3921
    %4539 = vmatmul.mubr.bf16.gmra.mrb[0].mxu0 %v3879
    %v4540 = vpop.f32.mrb[0].mxu0
    %v4541 = vadd.f32 0.0, %v4540
    %v4542 = vpop.f32.mrb[0].mxu0
    %v4543 = vpop.f32.mrb[0].mxu0
    %v4544 = vadd.f32 0.0, %v4543
    %v4545 = vpop.f32.mrb[0].mxu0
    %4546 = vdwg.mxu0
    %4547 = vmatprep.subr.bf16.mxu0 0
    %4548 = vmatpush1.bf16.msra.mxu0 %v4402
    %4549 = vmatprep.subr.bf16.mxu0 0
    %4550 = vmatpush1.bf16.msra.mxu0 %v4403
    %4551 = vmatprep.subr.bf16.mxu0 0
    %4552 = vmatpush1.bf16.msra.mxu0 %v4404
    %4553 = vmatprep.subr.bf16.mxu0 0
    %4554 = vmatpush1.bf16.msra.mxu0 %v4405
    %4555 = vmatprep.subr.bf16.mxu0 0
    %4556 = vmatpush1.bf16.msra.mxu0 %v4406
    %4557 = vmatprep.subr.bf16.mxu0 0
    %4558 = vmatpush1.bf16.msra.mxu0 %v4407
    %4559 = vmatprep.subr.bf16.mxu0 0
    %4560 = vmatpush1.bf16.msra.mxu0 %v4408
    %4561 = vmatprep.subr.bf16.mxu0 0
    %4562 = vmatpush1.bf16.msra.mxu0 %v4409
    %4563 = vmatprep.subr.bf16.mxu0 0
    %4564 = vmatpush1.bf16.msra.mxu0 %v4410
    %4565 = vmatprep.subr.bf16.mxu0 0
    %4566 = vmatpush1.bf16.msra.mxu0 %v4411
    %4567 = vmatprep.subr.bf16.mxu0 0
    %4568 = vmatpush1.bf16.msra.mxu0 %v4412
    %4569 = vmatprep.subr.bf16.mxu0 0
    %4570 = vmatpush1.bf16.msra.mxu0 %v4413
    %4571 = vmatprep.subr.bf16.mxu0 0
    %4572 = vmatpush1.bf16.msra.mxu0 %v4414
    %4573 = vmatprep.subr.bf16.mxu0 0
    %4574 = vmatpush1.bf16.msra.mxu0 %v4415
    %4575 = vmatprep.subr.bf16.mxu0 0
    %4576 = vmatpush1.bf16.msra.mxu0 %v4416
    %4577 = vmatprep.subr.bf16.mxu0 0
    %4578 = vmatpush1.bf16.msra.mxu0 %v4417
    %4579 = vmatprep.mubr.bf16.mxu0 %v3960
    %4580 = vmatmul.mubr.bf16.gmra.mrb[0].mxu0 %v3932
    %v4581 = vpop.f32.mrb[0].mxu0
    %v4582 = vadd.f32 %v4533, %v4581
    %v4583 = vpop.f32.mrb[0].mxu0
    %v4584 = vpop.f32.mrb[0].mxu0
    %v4585 = vadd.f32 %v4536, %v4584
    %v4586 = vpop.f32.mrb[0].mxu0
    %4587 = vmatprep.mubr.bf16.mxu0 %v3977
    %4588 = vmatmul.mubr.bf16.gmra.mrb[0].mxu0 %v3935
    %v4589 = vpop.f32.mrb[0].mxu0
    %v4590 = vadd.f32 %v4541, %v4589
    %v4591 = vpop.f32.mrb[0].mxu0
    %v4592 = vpop.f32.mrb[0].mxu0
    %v4593 = vadd.f32 %v4544, %v4592
    %v4594 = vpop.f32.mrb[0].mxu0
    %4595 = vdwg.mxu0
    %4596 = vmatprep.subr.bf16.mxu0 0
    %4597 = vmatpush1.bf16.msra.mxu0 %v4418
    %4598 = vmatprep.subr.bf16.mxu0 0
    %4599 = vmatpush1.bf16.msra.mxu0 %v4419
    %4600 = vmatprep.subr.bf16.mxu0 0
    %4601 = vmatpush1.bf16.msra.mxu0 %v4420
    %4602 = vmatprep.subr.bf16.mxu0 0
    %4603 = vmatpush1.bf16.msra.mxu0 %v4421
    %4604 = vmatprep.subr.bf16.mxu0 0
    %4605 = vmatpush1.bf16.msra.mxu0 %v4422
    %4606 = vmatprep.subr.bf16.mxu0 0
    %4607 = vmatpush1.bf16.msra.mxu0 %v4423
    %4608 = vmatprep.subr.bf16.mxu0 0
    %4609 = vmatpush1.bf16.msra.mxu0 %v4424
    %4610 = vmatprep.subr.bf16.mxu0 0
    %4611 = vmatpush1.bf16.msra.mxu0 %v4425
    %4612 = vmatprep.subr.bf16.mxu0 0
    %4613 = vmatpush1.bf16.msra.mxu0 %v4426
    %4614 = vmatprep.subr.bf16.mxu0 0
    %4615 = vmatpush1.bf16.msra.mxu0 %v4427
    %4616 = vmatprep.subr.bf16.mxu0 0
    %4617 = vmatpush1.bf16.msra.mxu0 %v4428
    %4618 = vmatprep.subr.bf16.mxu0 0
    %4619 = vmatpush1.bf16.msra.mxu0 %v4429
    %4620 = vmatprep.subr.bf16.mxu0 0
    %4621 = vmatpush1.bf16.msra.mxu0 %v4430
    %4622 = vmatprep.subr.bf16.mxu0 0
    %4623 = vmatpush1.bf16.msra.mxu0 %v4431
    %4624 = vmatprep.subr.bf16.mxu0 0
    %4625 = vmatpush1.bf16.msra.mxu0 %v4432
    %4626 = vmatprep.subr.bf16.mxu0 0
    %4627 = vmatpush1.bf16.msra.mxu0 %v4433
    %4628 = vmatprep.mubr.bf16.mxu0 %v4016
    %4629 = vmatmul.mubr.bf16.gmra.mrb[0].mxu0 %v3988
    %v4630 = vpop.f32.mrb[0].mxu0
    %v4631 = vadd.f32 %v4582, %v4630
    %v4632 = vpop.f32.mrb[0].mxu0
    %v4633 = vpop.f32.mrb[0].mxu0
    %v4634 = vadd.f32 %v4585, %v4633
    %v4635 = vpop.f32.mrb[0].mxu0
    %4636 = vmatprep.mubr.bf16.mxu0 %v4033
    %4637 = vmatmul.mubr.bf16.gmra.mrb[0].mxu0 %v3991
    %v4638 = vpop.f32.mrb[0].mxu0
    %v4639 = vadd.f32 %v4590, %v4638
    %v4640 = vpop.f32.mrb[0].mxu0
    %v4641 = vpop.f32.mrb[0].mxu0
    %v4642 = vadd.f32 %v4593, %v4641
    %v4643 = vpop.f32.mrb[0].mxu0
    %4644 = vdwg.mxu0
    %4645 = vmatprep.subr.bf16.mxu0 0
    %4646 = vmatpush1.bf16.msra.mxu0 %v4434
    %4647 = vmatprep.subr.bf16.mxu0 0
    %4648 = vmatpush1.bf16.msra.mxu0 %v4435
    %4649 = vmatprep.subr.bf16.mxu0 0
    %4650 = vmatpush1.bf16.msra.mxu0 %v4436
    %4651 = vmatprep.subr.bf16.mxu0 0
    %4652 = vmatpush1.bf16.msra.mxu0 %v4437
    %4653 = vmatprep.subr.bf16.mxu0 0
    %4654 = vmatpush1.bf16.msra.mxu0 %v4438
    %4655 = vmatprep.subr.bf16.mxu0 0
    %4656 = vmatpush1.bf16.msra.mxu0 %v4439
    %4657 = vmatprep.subr.bf16.mxu0 0
    %4658 = vmatpush1.bf16.msra.mxu0 %v4440
    %4659 = vmatprep.subr.bf16.mxu0 0
    %4660 = vmatpush1.bf16.msra.mxu0 %v4441
    %4661 = vmatprep.subr.bf16.mxu0 0
    %4662 = vmatpush1.bf16.msra.mxu0 0
    %4663 = vmatprep.subr.bf16.mxu0 0
    %4664 = vmatpush1.bf16.msra.mxu0 0
    %4665 = vmatprep.subr.bf16.mxu0 0
    %4666 = vmatpush1.bf16.msra.mxu0 0
    %4667 = vmatprep.subr.bf16.mxu0 0
    %4668 = vmatpush1.bf16.msra.mxu0 0
    %4669 = vmatprep.subr.bf16.mxu0 0
    %4670 = vmatpush1.bf16.msra.mxu0 0
    %4671 = vmatprep.subr.bf16.mxu0 0
    %4672 = vmatpush1.bf16.msra.mxu0 0
    %4673 = vmatprep.subr.bf16.mxu0 0
    %4674 = vmatpush1.bf16.msra.mxu0 0
    %4675 = vmatprep.subr.bf16.mxu0 0
    %4676 = vmatpush1.bf16.msra.mxu0 0
    %4677 = vmatprep.mubr.bf16.mxu0 0
    %4678 = vmatmul.mubr.bf16.gmra.mrb[0].mxu0 %v4044
    %v4679 = vpop.f32.mrb[0].mxu0
    %v4680 = vadd.f32 %v4631, %v4679
    %v4681 = vpop.f32.mrb[0].mxu0
    %v4682 = vpop.f32.mrb[0].mxu0
    %v4683 = vadd.f32 %v4634, %v4682
    %v4684 = vpop.f32.mrb[0].mxu0
    %4685 = vmatprep.mubr.bf16.mxu0 0
    %4686 = vmatmul.mubr.bf16.gmra.mrb[0].mxu0 %v4047
    %v4687 = vpop.f32.mrb[0].mxu0
    %v4688 = vadd.f32 %v4639, %v4687
    %v4689 = vpop.f32.mrb[0].mxu0
    %v4690 = vpop.f32.mrb[0].mxu0
    %v4691 = vadd.f32 %v4642, %v4690
    %v4692 = vpop.f32.mrb[0].mxu0
    %4693 = vdwg.mxu0
    %v4694 = vld [vmem:[%s18] sm:$0x1]
    %v4696 = vlaneseq
    %v4697 = vshrl.u32 %v4696, 7
    %v4698 = vsub.s32 0, %v4697
    %v4699 = vrot.slane %v4694, %v4698
    %v4701 = vadd.f32 %v4680, %v4699
    %v4702 = vadd.f32 %v4683, %v4699
    %v4703 = vadd.f32 %v4688, %v4699
    %v4704 = vadd.f32 %v4691, %v4699
    %v4705 = vmax.f32 %v4701, 0.0
    %v4706 = vmax.f32 %v4702, 0.0
    %v4707 = vmax.f32 %v4703, 0.0
    %v4708 = vmax.f32 %v4704, 0.0
    %v4709 = vpack.c.bf16 %v4706, %v4705
    %v4710 = vpack.c.bf16 %v4708, %v4707
    %4711 = vst [vmem:[#allocation9] sm:$0x1] 0
    %4712 = vst [vmem:[#allocation9 + $0xc] sm:$0x1] 0
    %4713 = vst [vmem:[#allocation9 + $0x8] sm:$0xe] 0
    %4714 = vst [vmem:[#allocation9 + $0x14] sm:$0xe] 0
    %v4717 = vunpack.c.l.b16 %v4709
    %v4718 = vunpack.c.h.b16 %v4709
    %v4719 = vunpack.c.l.b16 %v4710
    %v4720 = vunpack.c.h.b16 %v4710
    %v4721 = vpack.c.b16 %v4717, %v4717
    %v4722 = vpack.c.b16 %v4718, %v4718
    %v4723 = vpack.c.b16 %v4719, %v4719
    %v4724 = vpack.c.b16 %v4720, %v4720
    %v4725 = vrot.slane %v4721, 7
    %v4726 = vrot.slane %v4725, 4
    %v4727 = vrot.slane %v4722, 7
    %v4728 = vsel %vm990, %v4726, %v4727
    %v4729 = vrot.slane %v4727, 4
    %v4730 = vrot.slane %v4723, 7
    %v4731 = vrot.slane %v4730, 4
    %v4732 = vrot.slane %v4724, 7
    %v4733 = vsel %vm990, %v4731, %v4732
    %v4734 = vrot.slane %v4732, 4
    %4741 = vst [vmem:[#allocation9] sm:$0xe] %v4725
    %4742 = vst [vmem:[#allocation9 + $0x4] sm:$0xf] %v4728
    %4743 = vst [vmem:[#allocation9 + $0x8] sm:$0x1] %v4729
    %4744 = vst [vmem:[#allocation9 + $0xc] sm:$0xe] %v4730
    %4745 = vst [vmem:[#allocation9 + $0x10] sm:$0xf] %v4733
    %4746 = vst [vmem:[#allocation9 + $0x14] sm:$0x1] %v4734
    %v4747 = vld [vmem:[#allocation9] sm:$0xf]
    %v4748 = vld [vmem:[#allocation9 + $0x4] sm:$0xf]
    %v4749 = vld [vmem:[#allocation9 + $0xc] sm:$0xf]
    %v4750 = vld [vmem:[#allocation9 + $0x10] sm:$0xf]
    %v4751 = vld [vmem:[#allocation9] sm:$0xf]
    %v4752 = vld [vmem:[#allocation9 + $0x4] sm:$0xf]
    %v4753 = vld [vmem:[#allocation9 + $0x8] sm:$0x1]
    %v4754 = vld [vmem:[#allocation9 + $0xc] sm:$0xf]
    %v4755 = vld [vmem:[#allocation9 + $0x10] sm:$0xf]
    %v4756 = vld [vmem:[#allocation9 + $0x14] sm:$0x1]
    %v4757 = vld [vmem:[#allocation9] sm:$0xe]
    %v4758 = vld [vmem:[#allocation9 + $0xc] sm:$0xe]
    %v4759 = vld [vmem:[#allocation9 + $0x8] sm:$0x3]
    %v4760 = vld [vmem:[#allocation9 + $0x14] sm:$0x3]
    %v4761 = vld [vmem:[#allocation9] sm:$0xc]
    %v4762 = vld [vmem:[#allocation9 + $0xc] sm:$0xc]
    %v4767 = vunpack.c.l.b16 %v4747
    %v4768 = vunpack.c.l.b16 %v4748
    %v4769 = vunpack.c.l.b16 %v4749
    %v4770 = vunpack.c.l.b16 %v4750
    %v4771 = vpack.c.b16 %v4768, %v4767
    %v4772 = vpack.c.b16 %v4770, %v4769
    %v4781 = vunpack.c.l.b16 %v4751
    %v4782 = vunpack.c.l.b16 %v4752
    %v4783 = vunpack.c.l.b16 %v4753
    %v4784 = vunpack.c.l.b16 %v4754
    %v4785 = vunpack.c.l.b16 %v4755
    %v4786 = vunpack.c.l.b16 %v4756
    %v4787 = vpack.c.b16 %v4782, %v4781
    %v4788 = vpack.c.b16 %v4783, %v4783
    %v4789 = vpack.c.b16 %v4785, %v4784
    %v4790 = vpack.c.b16 %v4786, %v4786
    %v4792 = vshrl.u32 %v4787, 16
    %v4794 = vshll.u32 %v4787, 16
    %v4796 = vrot.slane %v4794, 1
    %v4797 = vor.u32 %v4792, %v4796
    %v4799 = vshll.u32 %v4788, 16
    %v4801 = vrot.slane %v4799, 1
    %v4802 = vsel %vm1158, %v4797, %v4801
    %v4804 = vshrl.u32 %v4789, 16
    %v4806 = vshll.u32 %v4789, 16
    %v4808 = vrot.slane %v4806, 1
    %v4809 = vor.u32 %v4804, %v4808
    %v4811 = vshll.u32 %v4790, 16
    %v4813 = vrot.slane %v4811, 1
    %v4814 = vsel %vm1158, %v4809, %v4813
    %v4819 = vunpack.c.l.b16 %v4757
    %v4820 = vunpack.c.l.b16 %v4758
    %v4821 = vpack.c.b16 %v4782, %v4819
    %v4822 = vpack.c.b16 %v4785, %v4820
    %v4823 = vrot.slane %v4821, 1
    %v4824 = vrot.slane %v4788, 1
    %v4825 = vsel %vm1193, %v4823, %v4824
    %v4826 = vrot.slane %v4822, 1
    %v4827 = vrot.slane %v4790, 1
    %v4828 = vsel %vm1193, %v4826, %v4827
    %v4833 = vunpack.c.l.b16 %v4759
    %v4834 = vunpack.c.l.b16 %v4760
    %v4835 = vpack.c.b16 %v4833, %v4833
    %v4836 = vpack.c.b16 %v4834, %v4834
    %v4838 = vshrl.u32 %v4821, 16
    %v4840 = vrot.slane %v4838, 1
    %v4841 = vshll.u32 %v4821, 16
    %v4843 = vrot.slane %v4841, 2
    %v4844 = vor.u32 %v4840, %v4843
    %v4846 = vshrl.u32 %v4835, 16
    %v4848 = vrot.slane %v4846, 1
    %v4849 = vshll.u32 %v4835, 16
    %v4851 = vrot.slane %v4849, 2
    %v4852 = vor.u32 %v4848, %v4851
    %v4853 = vsel %vm1206, %v4844, %v4852
    %v4855 = vshrl.u32 %v4822, 16
    %v4857 = vrot.slane %v4855, 1
    %v4858 = vshll.u32 %v4822, 16
    %v4860 = vrot.slane %v4858, 2
    %v4861 = vor.u32 %v4857, %v4860
    %v4863 = vshrl.u32 %v4836, 16
    %v4865 = vrot.slane %v4863, 1
    %v4866 = vshll.u32 %v4836, 16
    %v4868 = vrot.slane %v4866, 2
    %v4869 = vor.u32 %v4865, %v4868
    %v4870 = vsel %vm1206, %v4861, %v4869
    %v4875 = vunpack.c.l.b16 %v4761
    %v4876 = vunpack.c.l.b16 %v4762
    %v4877 = vpack.c.b16 %v4782, %v4875
    %v4878 = vpack.c.b16 %v4785, %v4876
    %v4879 = vrot.slane %v4877, 2
    %v4880 = vrot.slane %v4835, 2
    %v4881 = vsel %vm1251, %v4879, %v4880
    %v4882 = vrot.slane %v4878, 2
    %v4883 = vrot.slane %v4836, 2
    %v4884 = vsel %vm1251, %v4882, %v4883
    %v4887 = vld [vmem:[#allocation22] sm:$0xf]
    %v4888 = vld [vmem:[#allocation22 + $0x4] sm:$0xf]
    %v4889 = vld [vmem:[#allocation22 + $0x8] sm:$0xf]
    %v4890 = vld [vmem:[#allocation22 + $0xc] sm:$0xf]
    %v4891 = vld [vmem:[#allocation22 + $0x10] sm:$0xf]
    %v4892 = vld [vmem:[#allocation22 + $0x14] sm:$0xf]
    %v4893 = vld [vmem:[#allocation22 + $0x18] sm:$0xf]
    %v4894 = vld [vmem:[#allocation22 + $0x1c] sm:$0xf]
    %v4895 = vld [vmem:[#allocation22 + $0x20] sm:$0xf]
    %v4896 = vld [vmem:[#allocation22 + $0x24] sm:$0xf]
    %v4897 = vld [vmem:[#allocation22 + $0x28] sm:$0xf]
    %v4898 = vld [vmem:[#allocation22 + $0x2c] sm:$0xf]
    %v4899 = vld [vmem:[#allocation22 + $0x30] sm:$0xf]
    %v4900 = vld [vmem:[#allocation22 + $0x34] sm:$0xf]
    %v4901 = vld [vmem:[#allocation22 + $0x38] sm:$0xf]
    %v4902 = vld [vmem:[#allocation22 + $0x3c] sm:$0xf]
    %v4903 = vld [vmem:[#allocation22 + $0x40] sm:$0xf]
    %v4904 = vld [vmem:[#allocation22 + $0x44] sm:$0xf]
    %v4905 = vld [vmem:[#allocation22 + $0x48] sm:$0xf]
    %v4906 = vld [vmem:[#allocation22 + $0x4c] sm:$0xf]
    %v4907 = vld [vmem:[#allocation22 + $0x50] sm:$0xf]
    %v4908 = vld [vmem:[#allocation22 + $0x54] sm:$0xf]
    %v4909 = vld [vmem:[#allocation22 + $0x58] sm:$0xf]
    %v4910 = vld [vmem:[#allocation22 + $0x5c] sm:$0xf]
    %v4911 = vld [vmem:[#allocation22 + $0x60] sm:$0xf]
    %v4912 = vld [vmem:[#allocation22 + $0x64] sm:$0xf]
    %v4913 = vld [vmem:[#allocation22 + $0x68] sm:$0xf]
    %v4914 = vld [vmem:[#allocation22 + $0x6c] sm:$0xf]
    %v4915 = vld [vmem:[#allocation22 + $0x70] sm:$0xf]
    %v4916 = vld [vmem:[#allocation22 + $0x74] sm:$0xf]
    %v4917 = vld [vmem:[#allocation22 + $0x78] sm:$0xf]
    %v4918 = vld [vmem:[#allocation22 + $0x7c] sm:$0xf]
    %v4919 = vld [vmem:[#allocation22 + $0x80] sm:$0xf]
    %v4920 = vld [vmem:[#allocation22 + $0x84] sm:$0xf]
    %v4921 = vld [vmem:[#allocation22 + $0x88] sm:$0xf]
    %v4922 = vld [vmem:[#allocation22 + $0x8c] sm:$0xf]
    %v4923 = vld [vmem:[#allocation22 + $0x90] sm:$0xf]
    %v4924 = vld [vmem:[#allocation22 + $0x94] sm:$0xf]
    %v4925 = vld [vmem:[#allocation22 + $0x98] sm:$0xf]
    %v4926 = vld [vmem:[#allocation22 + $0x9c] sm:$0xf]
    %v4927 = vld [vmem:[#allocation22 + $0xa0] sm:$0xf]
    %v4928 = vld [vmem:[#allocation22 + $0xa4] sm:$0xf]
    %v4929 = vld [vmem:[#allocation22 + $0xa8] sm:$0xf]
    %v4930 = vld [vmem:[#allocation22 + $0xac] sm:$0xf]
    %v4931 = vld [vmem:[#allocation22 + $0xb0] sm:$0xf]
    %v4932 = vld [vmem:[#allocation22 + $0xb4] sm:$0xf]
    %v4933 = vld [vmem:[#allocation22 + $0xb8] sm:$0xf]
    %v4934 = vld [vmem:[#allocation22 + $0xbc] sm:$0xf]
    %v4935 = vld [vmem:[#allocation22 + $0xc0] sm:$0xf]
    %v4936 = vld [vmem:[#allocation22 + $0xc4] sm:$0xf]
    %v4937 = vld [vmem:[#allocation22 + $0xc8] sm:$0xf]
    %v4938 = vld [vmem:[#allocation22 + $0xcc] sm:$0xf]
    %v4939 = vld [vmem:[#allocation22 + $0xd0] sm:$0xf]
    %v4940 = vld [vmem:[#allocation22 + $0xd4] sm:$0xf]
    %v4941 = vld [vmem:[#allocation22 + $0xd8] sm:$0xf]
    %v4942 = vld [vmem:[#allocation22 + $0xdc] sm:$0xf]
    %v4943 = vld [vmem:[#allocation22 + $0xe0] sm:$0xf]
    %v4944 = vld [vmem:[#allocation22 + $0xe4] sm:$0xf]
    %v4945 = vld [vmem:[#allocation22 + $0xe8] sm:$0xf]
    %v4946 = vld [vmem:[#allocation22 + $0xec] sm:$0xf]
    %v4947 = vld [vmem:[#allocation22 + $0xf0] sm:$0xf]
    %v4948 = vld [vmem:[#allocation22 + $0xf4] sm:$0xf]
    %v4949 = vld [vmem:[#allocation22 + $0xf8] sm:$0xf]
    %v4950 = vld [vmem:[#allocation22 + $0xfc] sm:$0xf]
    %v4951 = vld [vmem:[#allocation22 + $0x100] sm:$0xf]
    %v4952 = vld [vmem:[#allocation22 + $0x104] sm:$0xf]
    %v4953 = vld [vmem:[#allocation22 + $0x108] sm:$0xf]
    %v4954 = vld [vmem:[#allocation22 + $0x10c] sm:$0xf]
    %v4955 = vld [vmem:[#allocation22 + $0x110] sm:$0xf]
    %v4956 = vld [vmem:[#allocation22 + $0x114] sm:$0xf]
    %v4957 = vld [vmem:[#allocation22 + $0x118] sm:$0xf]
    %v4958 = vld [vmem:[#allocation22 + $0x11c] sm:$0xf]
    %v4959 = vld [vmem:[#allocation22 + $0x120] sm:$0xf]
    %v4960 = vld [vmem:[#allocation22 + $0x124] sm:$0xf]
    %v4961 = vld [vmem:[#allocation22 + $0x128] sm:$0xf]
    %v4962 = vld [vmem:[#allocation22 + $0x12c] sm:$0xf]
    %v4963 = vld [vmem:[#allocation22 + $0x130] sm:$0xf]
    %v4964 = vld [vmem:[#allocation22 + $0x134] sm:$0xf]
    %v4965 = vld [vmem:[#allocation22 + $0x138] sm:$0xf]
    %v4966 = vld [vmem:[#allocation22 + $0x13c] sm:$0xf]
    %v5047 = vunpack.c.l.b16 %v4887
    %v5048 = vunpack.c.l.b16 %v4888
    %v5049 = vunpack.c.l.b16 %v4889
    %v5050 = vunpack.c.l.b16 %v4890
    %v5051 = vunpack.c.l.b16 %v4891
    %v5052 = vunpack.c.l.b16 %v4892
    %v5053 = vunpack.c.l.b16 %v4893
    %v5054 = vunpack.c.l.b16 %v4894
    %v5055 = vunpack.c.l.b16 %v4895
    %v5056 = vunpack.c.l.b16 %v4896
    %v5057 = vunpack.c.l.b16 %v4897
    %v5058 = vunpack.c.l.b16 %v4898
    %v5059 = vunpack.c.l.b16 %v4899
    %v5060 = vunpack.c.l.b16 %v4900
    %v5061 = vunpack.c.l.b16 %v4901
    %v5062 = vunpack.c.l.b16 %v4902
    %v5063 = vunpack.c.l.b16 %v4903
    %v5064 = vunpack.c.l.b16 %v4904
    %v5065 = vunpack.c.l.b16 %v4905
    %v5066 = vunpack.c.l.b16 %v4906
    %v5067 = vunpack.c.l.b16 %v4907
    %v5068 = vunpack.c.l.b16 %v4908
    %v5069 = vunpack.c.l.b16 %v4909
    %v5070 = vunpack.c.l.b16 %v4910
    %v5071 = vunpack.c.l.b16 %v4911
    %v5072 = vunpack.c.l.b16 %v4912
    %v5073 = vunpack.c.l.b16 %v4913
    %v5074 = vunpack.c.l.b16 %v4914
    %v5075 = vunpack.c.l.b16 %v4915
    %v5076 = vunpack.c.l.b16 %v4916
    %v5077 = vunpack.c.l.b16 %v4917
    %v5078 = vunpack.c.l.b16 %v4918
    %v5079 = vunpack.c.l.b16 %v4919
    %v5080 = vunpack.c.l.b16 %v4920
    %v5081 = vunpack.c.l.b16 %v4921
    %v5082 = vunpack.c.l.b16 %v4922
    %v5083 = vunpack.c.l.b16 %v4923
    %v5084 = vunpack.c.l.b16 %v4924
    %v5085 = vunpack.c.l.b16 %v4925
    %v5086 = vunpack.c.l.b16 %v4926
    %v5087 = vunpack.c.l.b16 %v4927
    %v5088 = vunpack.c.l.b16 %v4928
    %v5089 = vunpack.c.l.b16 %v4929
    %v5090 = vunpack.c.l.b16 %v4930
    %v5091 = vunpack.c.l.b16 %v4931
    %v5092 = vunpack.c.l.b16 %v4932
    %v5093 = vunpack.c.l.b16 %v4933
    %v5094 = vunpack.c.l.b16 %v4934
    %v5095 = vunpack.c.l.b16 %v4935
    %v5096 = vunpack.c.l.b16 %v4936
    %v5097 = vunpack.c.l.b16 %v4937
    %v5098 = vunpack.c.l.b16 %v4938
    %v5099 = vunpack.c.l.b16 %v4939
    %v5100 = vunpack.c.l.b16 %v4940
    %v5101 = vunpack.c.l.b16 %v4941
    %v5102 = vunpack.c.l.b16 %v4942
    %v5103 = vunpack.c.l.b16 %v4943
    %v5104 = vunpack.c.l.b16 %v4944
    %v5105 = vunpack.c.l.b16 %v4945
    %v5106 = vunpack.c.l.b16 %v4946
    %v5107 = vunpack.c.l.b16 %v4947
    %v5108 = vunpack.c.l.b16 %v4948
    %v5109 = vunpack.c.l.b16 %v4949
    %v5110 = vunpack.c.l.b16 %v4950
    %v5111 = vunpack.c.l.b16 %v4951
    %v5112 = vunpack.c.l.b16 %v4952
    %v5113 = vunpack.c.l.b16 %v4953
    %v5114 = vunpack.c.l.b16 %v4954
    %v5115 = vunpack.c.l.b16 %v4955
    %v5116 = vunpack.c.l.b16 %v4956
    %v5117 = vunpack.c.l.b16 %v4957
    %v5118 = vunpack.c.l.b16 %v4958
    %v5119 = vunpack.c.l.b16 %v4959
    %v5120 = vunpack.c.l.b16 %v4960
    %v5121 = vunpack.c.l.b16 %v4961
    %v5122 = vunpack.c.l.b16 %v4962
    %v5123 = vunpack.c.l.b16 %v4963
    %v5124 = vunpack.c.l.b16 %v4964
    %v5125 = vunpack.c.l.b16 %v4965
    %v5126 = vunpack.c.l.b16 %v4966
    %v5127 = vpack.c.b16 %v5048, %v5047
    %v5128 = vpack.c.b16 %v5050, %v5049
    %v5129 = vpack.c.b16 %v5052, %v5051
    %v5130 = vpack.c.b16 %v5054, %v5053
    %v5131 = vpack.c.b16 %v5056, %v5055
    %v5132 = vpack.c.b16 %v5058, %v5057
    %v5133 = vpack.c.b16 %v5060, %v5059
    %v5134 = vpack.c.b16 %v5062, %v5061
    %v5135 = vpack.c.b16 %v5064, %v5063
    %v5136 = vpack.c.b16 %v5066, %v5065
    %v5137 = vpack.c.b16 %v5068, %v5067
    %v5138 = vpack.c.b16 %v5070, %v5069
    %v5139 = vpack.c.b16 %v5072, %v5071
    %v5140 = vpack.c.b16 %v5074, %v5073
    %v5141 = vpack.c.b16 %v5076, %v5075
    %v5142 = vpack.c.b16 %v5078, %v5077
    %v5143 = vpack.c.b16 %v5080, %v5079
    %v5144 = vpack.c.b16 %v5082, %v5081
    %v5145 = vpack.c.b16 %v5084, %v5083
    %v5146 = vpack.c.b16 %v5086, %v5085
    %v5147 = vpack.c.b16 %v5088, %v5087
    %v5148 = vpack.c.b16 %v5090, %v5089
    %v5149 = vpack.c.b16 %v5092, %v5091
    %v5150 = vpack.c.b16 %v5094, %v5093
    %v5151 = vpack.c.b16 %v5096, %v5095
    %v5152 = vpack.c.b16 %v5098, %v5097
    %v5153 = vpack.c.b16 %v5100, %v5099
    %v5154 = vpack.c.b16 %v5102, %v5101
    %v5155 = vpack.c.b16 %v5104, %v5103
    %v5156 = vpack.c.b16 %v5106, %v5105
    %v5157 = vpack.c.b16 %v5108, %v5107
    %v5158 = vpack.c.b16 %v5110, %v5109
    %v5159 = vpack.c.b16 %v5112, %v5111
    %v5160 = vpack.c.b16 %v5114, %v5113
    %v5161 = vpack.c.b16 %v5116, %v5115
    %v5162 = vpack.c.b16 %v5118, %v5117
    %v5163 = vpack.c.b16 %v5120, %v5119
    %v5164 = vpack.c.b16 %v5122, %v5121
    %v5165 = vpack.c.b16 %v5124, %v5123
    %v5166 = vpack.c.b16 %v5126, %v5125
    %5207 = vmatprep.subr.bf16.mxu0 0
    %5208 = vmatpush1.bf16.msra.mxu0 %v5127
    %5209 = vmatprep.subr.bf16.mxu0 0
    %5210 = vmatpush1.bf16.msra.mxu0 %v5128
    %5211 = vmatprep.subr.bf16.mxu0 0
    %5212 = vmatpush1.bf16.msra.mxu0 %v5129
    %5213 = vmatprep.subr.bf16.mxu0 0
    %5214 = vmatpush1.bf16.msra.mxu0 %v5130
    %5215 = vmatprep.subr.bf16.mxu0 0
    %5216 = vmatpush1.bf16.msra.mxu0 %v5131
    %5217 = vmatprep.subr.bf16.mxu0 0
    %5218 = vmatpush1.bf16.msra.mxu0 %v5132
    %5219 = vmatprep.subr.bf16.mxu0 0
    %5220 = vmatpush1.bf16.msra.mxu0 %v5133
    %5221 = vmatprep.subr.bf16.mxu0 0
    %5222 = vmatpush1.bf16.msra.mxu0 %v5134
    %5223 = vmatprep.subr.bf16.mxu0 0
    %5224 = vmatpush1.bf16.msra.mxu0 %v5135
    %5225 = vmatprep.subr.bf16.mxu0 0
    %5226 = vmatpush1.bf16.msra.mxu0 %v5136
    %5227 = vmatprep.subr.bf16.mxu0 0
    %5228 = vmatpush1.bf16.msra.mxu0 %v5137
    %5229 = vmatprep.subr.bf16.mxu0 0
    %5230 = vmatpush1.bf16.msra.mxu0 %v5138
    %5231 = vmatprep.subr.bf16.mxu0 0
    %5232 = vmatpush1.bf16.msra.mxu0 %v5139
    %5233 = vmatprep.subr.bf16.mxu0 0
    %5234 = vmatpush1.bf16.msra.mxu0 %v5140
    %5235 = vmatprep.subr.bf16.mxu0 0
    %5236 = vmatpush1.bf16.msra.mxu0 %v5141
    %5237 = vmatprep.subr.bf16.mxu0 0
    %5238 = vmatpush1.bf16.msra.mxu0 %v5142
    %5239 = vmatprep.mubr.bf16.mxu0 %v4802
    %5240 = vmatmul.mubr.bf16.gmra.mrb[0].mxu0 %v4771
    %v5241 = vpop.f32.mrb[0].mxu0
    %v5242 = vadd.f32 0.0, %v5241
    %v5243 = vpop.f32.mrb[0].mxu0
    %v5244 = vpop.f32.mrb[0].mxu0
    %v5245 = vadd.f32 0.0, %v5244
    %v5246 = vpop.f32.mrb[0].mxu0
    %5247 = vmatprep.mubr.bf16.mxu0 %v4814
    %5248 = vmatmul.mubr.bf16.gmra.mrb[0].mxu0 %v4772
    %v5249 = vpop.f32.mrb[0].mxu0
    %v5250 = vadd.f32 0.0, %v5249
    %v5251 = vpop.f32.mrb[0].mxu0
    %v5252 = vpop.f32.mrb[0].mxu0
    %v5253 = vadd.f32 0.0, %v5252
    %v5254 = vpop.f32.mrb[0].mxu0
    %5255 = vdwg.mxu0
    %5256 = vmatprep.subr.bf16.mxu0 0
    %5257 = vmatpush1.bf16.msra.mxu0 %v5143
    %5258 = vmatprep.subr.bf16.mxu0 0
    %5259 = vmatpush1.bf16.msra.mxu0 %v5144
    %5260 = vmatprep.subr.bf16.mxu0 0
    %5261 = vmatpush1.bf16.msra.mxu0 %v5145
    %5262 = vmatprep.subr.bf16.mxu0 0
    %5263 = vmatpush1.bf16.msra.mxu0 %v5146
    %5264 = vmatprep.subr.bf16.mxu0 0
    %5265 = vmatpush1.bf16.msra.mxu0 %v5147
    %5266 = vmatprep.subr.bf16.mxu0 0
    %5267 = vmatpush1.bf16.msra.mxu0 %v5148
    %5268 = vmatprep.subr.bf16.mxu0 0
    %5269 = vmatpush1.bf16.msra.mxu0 %v5149
    %5270 = vmatprep.subr.bf16.mxu0 0
    %5271 = vmatpush1.bf16.msra.mxu0 %v5150
    %5272 = vmatprep.subr.bf16.mxu0 0
    %5273 = vmatpush1.bf16.msra.mxu0 %v5151
    %5274 = vmatprep.subr.bf16.mxu0 0
    %5275 = vmatpush1.bf16.msra.mxu0 %v5152
    %5276 = vmatprep.subr.bf16.mxu0 0
    %5277 = vmatpush1.bf16.msra.mxu0 %v5153
    %5278 = vmatprep.subr.bf16.mxu0 0
    %5279 = vmatpush1.bf16.msra.mxu0 %v5154
    %5280 = vmatprep.subr.bf16.mxu0 0
    %5281 = vmatpush1.bf16.msra.mxu0 %v5155
    %5282 = vmatprep.subr.bf16.mxu0 0
    %5283 = vmatpush1.bf16.msra.mxu0 %v5156
    %5284 = vmatprep.subr.bf16.mxu0 0
    %5285 = vmatpush1.bf16.msra.mxu0 %v5157
    %5286 = vmatprep.subr.bf16.mxu0 0
    %5287 = vmatpush1.bf16.msra.mxu0 %v5158
    %5288 = vmatprep.mubr.bf16.mxu0 %v4853
    %5289 = vmatmul.mubr.bf16.gmra.mrb[0].mxu0 %v4825
    %v5290 = vpop.f32.mrb[0].mxu0
    %v5291 = vadd.f32 %v5242, %v5290
    %v5292 = vpop.f32.mrb[0].mxu0
    %v5293 = vpop.f32.mrb[0].mxu0
    %v5294 = vadd.f32 %v5245, %v5293
    %v5295 = vpop.f32.mrb[0].mxu0
    %5296 = vmatprep.mubr.bf16.mxu0 %v4870
    %5297 = vmatmul.mubr.bf16.gmra.mrb[0].mxu0 %v4828
    %v5298 = vpop.f32.mrb[0].mxu0
    %v5299 = vadd.f32 %v5250, %v5298
    %v5300 = vpop.f32.mrb[0].mxu0
    %v5301 = vpop.f32.mrb[0].mxu0
    %v5302 = vadd.f32 %v5253, %v5301
    %v5303 = vpop.f32.mrb[0].mxu0
    %5304 = vdwg.mxu0
    %5305 = vmatprep.subr.bf16.mxu0 0
    %5306 = vmatpush1.bf16.msra.mxu0 %v5159
    %5307 = vmatprep.subr.bf16.mxu0 0
    %5308 = vmatpush1.bf16.msra.mxu0 %v5160
    %5309 = vmatprep.subr.bf16.mxu0 0
    %5310 = vmatpush1.bf16.msra.mxu0 %v5161
    %5311 = vmatprep.subr.bf16.mxu0 0
    %5312 = vmatpush1.bf16.msra.mxu0 %v5162
    %5313 = vmatprep.subr.bf16.mxu0 0
    %5314 = vmatpush1.bf16.msra.mxu0 %v5163
    %5315 = vmatprep.subr.bf16.mxu0 0
    %5316 = vmatpush1.bf16.msra.mxu0 %v5164
    %5317 = vmatprep.subr.bf16.mxu0 0
    %5318 = vmatpush1.bf16.msra.mxu0 %v5165
    %5319 = vmatprep.subr.bf16.mxu0 0
    %5320 = vmatpush1.bf16.msra.mxu0 %v5166
    %5321 = vmatprep.subr.bf16.mxu0 0
    %5322 = vmatpush1.bf16.msra.mxu0 0
    %5323 = vmatprep.subr.bf16.mxu0 0
    %5324 = vmatpush1.bf16.msra.mxu0 0
    %5325 = vmatprep.subr.bf16.mxu0 0
    %5326 = vmatpush1.bf16.msra.mxu0 0
    %5327 = vmatprep.subr.bf16.mxu0 0
    %5328 = vmatpush1.bf16.msra.mxu0 0
    %5329 = vmatprep.subr.bf16.mxu0 0
    %5330 = vmatpush1.bf16.msra.mxu0 0
    %5331 = vmatprep.subr.bf16.mxu0 0
    %5332 = vmatpush1.bf16.msra.mxu0 0
    %5333 = vmatprep.subr.bf16.mxu0 0
    %5334 = vmatpush1.bf16.msra.mxu0 0
    %5335 = vmatprep.subr.bf16.mxu0 0
    %5336 = vmatpush1.bf16.msra.mxu0 0
    %5337 = vmatprep.mubr.bf16.mxu0 0
    %5338 = vmatmul.mubr.bf16.gmra.mrb[0].mxu0 %v4881
    %v5339 = vpop.f32.mrb[0].mxu0
    %v5340 = vadd.f32 %v5291, %v5339
    %v5341 = vpop.f32.mrb[0].mxu0
    %v5342 = vpop.f32.mrb[0].mxu0
    %v5343 = vadd.f32 %v5294, %v5342
    %v5344 = vpop.f32.mrb[0].mxu0
    %5345 = vmatprep.mubr.bf16.mxu0 0
    %5346 = vmatmul.mubr.bf16.gmra.mrb[0].mxu0 %v4884
    %v5347 = vpop.f32.mrb[0].mxu0
    %v5348 = vadd.f32 %v5299, %v5347
    %v5349 = vpop.f32.mrb[0].mxu0
    %v5350 = vpop.f32.mrb[0].mxu0
    %v5351 = vadd.f32 %v5302, %v5350
    %v5352 = vpop.f32.mrb[0].mxu0
    %5353 = vdwg.mxu0
    %v5354 = vld [vmem:[%s20] sm:$0x1]
    %v5356 = vlaneseq
    %v5357 = vshrl.u32 %v5356, 7
    %v5358 = vsub.s32 0, %v5357
    %v5359 = vrot.slane %v5354, %v5358
    %v5361 = vadd.f32 %v5340, %v5359
    %v5362 = vadd.f32 %v5343, %v5359
    %v5363 = vadd.f32 %v5348, %v5359
    %v5364 = vadd.f32 %v5351, %v5359
    %v5365 = vmax.f32 %v5361, 0.0
    %v5366 = vmax.f32 %v5362, 0.0
    %v5367 = vmax.f32 %v5363, 0.0
    %v5368 = vmax.f32 %v5364, 0.0
    %v5369 = vpack.c.bf16 %v5366, %v5365
    %v5370 = vpack.c.bf16 %v5368, %v5367
    %v5371 = vld [vmem:[#allocation10] sm:$0x1]
    %v5372 = vsel %vm3275, 0, %v5371
    %5373 = vst [vmem:[#allocation10] sm:$0x1] %v5372
    %v5374 = vld [vmem:[#allocation10 + $0xc] sm:$0x1]
    %v5375 = vsel %vm3275, 0, %v5374
    %5376 = vst [vmem:[#allocation10 + $0xc] sm:$0x1] %v5375
    %v5377 = vld [vmem:[#allocation10 + $0x8] sm:$0xf]
    %v5378 = vsel %vm3283, 0, %v5377
    %5379 = vst [vmem:[#allocation10 + $0x8] sm:$0xf] %v5378
    %v5380 = vld [vmem:[#allocation10 + $0x14] sm:$0xf]
    %v5381 = vsel %vm3283, 0, %v5380
    %5382 = vst [vmem:[#allocation10 + $0x14] sm:$0xf] %v5381
    %v5385 = vunpack.c.l.b16 %v5369
    %v5386 = vunpack.c.h.b16 %v5369
    %v5387 = vunpack.c.l.b16 %v5370
    %v5388 = vunpack.c.h.b16 %v5370
    %v5389 = vpack.c.b16 %v5385, %v5385
    %v5390 = vpack.c.b16 %v5386, %v5386
    %v5391 = vpack.c.b16 %v5387, %v5387
    %v5392 = vpack.c.b16 %v5388, %v5388
    %v5394 = vshrl.u32 %v5389, 16
    %v5396 = vrot.slane %v5394, 7
    %v5397 = vshll.u32 %v5389, 16
    %v5399 = vor.u32 %v5396, %v5397
    %v5400 = vrot.slane %v5396, 4
    %v5402 = vshrl.u32 %v5390, 16
    %v5404 = vrot.slane %v5402, 7
    %v5405 = vshll.u32 %v5390, 16
    %v5407 = vor.u32 %v5404, %v5405
    %v5408 = vsel %vm1583, %v5400, %v5407
    %v5409 = vrot.slane %v5404, 4
    %v5411 = vshrl.u32 %v5391, 16
    %v5413 = vrot.slane %v5411, 7
    %v5414 = vshll.u32 %v5391, 16
    %v5416 = vor.u32 %v5413, %v5414
    %v5417 = vrot.slane %v5413, 4
    %v5419 = vshrl.u32 %v5392, 16
    %v5421 = vrot.slane %v5419, 7
    %v5422 = vshll.u32 %v5392, 16
    %v5424 = vor.u32 %v5421, %v5422
    %v5425 = vsel %vm1583, %v5417, %v5424
    %v5426 = vrot.slane %v5421, 4
    %v5433 = vld [vmem:[#allocation10] sm:$0xf]
    %v5434 = vsel %vm3283, %v5399, %v5433
    %5435 = vst [vmem:[#allocation10] sm:$0xf] %v5434
    %5436 = vst [vmem:[#allocation10 + $0x4] sm:$0xf] %v5408
    %v5437 = vld [vmem:[#allocation10 + $0x8] sm:$0x1]
    %v5438 = vsel %vm3275, %v5409, %v5437
    %5439 = vst [vmem:[#allocation10 + $0x8] sm:$0x1] %v5438
    %v5440 = vld [vmem:[#allocation10 + $0xc] sm:$0xf]
    %v5441 = vsel %vm3283, %v5416, %v5440
    %5442 = vst [vmem:[#allocation10 + $0xc] sm:$0xf] %v5441
    %5443 = vst [vmem:[#allocation10 + $0x10] sm:$0xf] %v5425
    %v5444 = vld [vmem:[#allocation10 + $0x14] sm:$0x1]
    %v5445 = vsel %vm3275, %v5426, %v5444
    %5446 = vst [vmem:[#allocation10 + $0x14] sm:$0x1] %v5445
    %v5447 = vld [vmem:[#allocation10] sm:$0xf]
    %v5448 = vld [vmem:[#allocation10 + $0x4] sm:$0xf]
    %v5449 = vld [vmem:[#allocation10 + $0xc] sm:$0xf]
    %v5450 = vld [vmem:[#allocation10 + $0x10] sm:$0xf]
    %v5451 = vld [vmem:[#allocation10] sm:$0xf]
    %v5452 = vld [vmem:[#allocation10 + $0x4] sm:$0xf]
    %v5453 = vld [vmem:[#allocation10 + $0x8] sm:$0x1]
    %v5454 = vld [vmem:[#allocation10 + $0xc] sm:$0xf]
    %v5455 = vld [vmem:[#allocation10 + $0x10] sm:$0xf]
    %v5456 = vld [vmem:[#allocation10 + $0x14] sm:$0x1]
    %v5457 = vld [vmem:[#allocation10] sm:$0xe]
    %v5458 = vld [vmem:[#allocation10 + $0xc] sm:$0xe]
    %v5463 = vunpack.c.l.b16 %v5447
    %v5464 = vunpack.c.l.b16 %v5448
    %v5465 = vunpack.c.l.b16 %v5449
    %v5466 = vunpack.c.l.b16 %v5450
    %v5467 = vpack.c.b16 %v5464, %v5463
    %v5468 = vpack.c.b16 %v5466, %v5465
    %v5477 = vunpack.c.l.b16 %v5451
    %v5478 = vunpack.c.l.b16 %v5452
    %v5479 = vunpack.c.l.b16 %v5453
    %v5480 = vunpack.c.l.b16 %v5454
    %v5481 = vunpack.c.l.b16 %v5455
    %v5482 = vunpack.c.l.b16 %v5456
    %v5483 = vpack.c.b16 %v5478, %v5477
    %v5484 = vpack.c.b16 %v5479, %v5479
    %v5485 = vpack.c.b16 %v5481, %v5480
    %v5486 = vpack.c.b16 %v5482, %v5482
    %v5488 = vshrl.u32 %v5483, 16
    %v5490 = vshll.u32 %v5483, 16
    %v5492 = vrot.slane %v5490, 1
    %v5493 = vor.u32 %v5488, %v5492
    %v5495 = vshll.u32 %v5484, 16
    %v5497 = vrot.slane %v5495, 1
    %v5498 = vsel %vm1158, %v5493, %v5497
    %v5500 = vshrl.u32 %v5485, 16
    %v5502 = vshll.u32 %v5485, 16
    %v5504 = vrot.slane %v5502, 1
    %v5505 = vor.u32 %v5500, %v5504
    %v5507 = vshll.u32 %v5486, 16
    %v5509 = vrot.slane %v5507, 1
    %v5510 = vsel %vm1158, %v5505, %v5509
    %v5515 = vunpack.c.l.b16 %v5457
    %v5516 = vunpack.c.l.b16 %v5458
    %v5517 = vpack.c.b16 %v5478, %v5515
    %v5518 = vpack.c.b16 %v5481, %v5516
    %v5519 = vrot.slane %v5517, 1
    %v5520 = vrot.slane %v5484, 1
    %v5521 = vsel %vm1193, %v5519, %v5520
    %v5522 = vrot.slane %v5518, 1
    %v5523 = vrot.slane %v5486, 1
    %v5524 = vsel %vm1193, %v5522, %v5523
    %v5527 = vld [vmem:[#allocation23] sm:$0xf]
    %v5528 = vld [vmem:[#allocation23 + $0x4] sm:$0xf]
    %v5529 = vld [vmem:[#allocation23 + $0x8] sm:$0xf]
    %v5530 = vld [vmem:[#allocation23 + $0xc] sm:$0xf]
    %v5531 = vld [vmem:[#allocation23 + $0x10] sm:$0xf]
    %v5532 = vld [vmem:[#allocation23 + $0x14] sm:$0xf]
    %v5533 = vld [vmem:[#allocation23 + $0x18] sm:$0xf]
    %v5534 = vld [vmem:[#allocation23 + $0x1c] sm:$0xf]
    %v5535 = vld [vmem:[#allocation23 + $0x20] sm:$0xf]
    %v5536 = vld [vmem:[#allocation23 + $0x24] sm:$0xf]
    %v5537 = vld [vmem:[#allocation23 + $0x28] sm:$0xf]
    %v5538 = vld [vmem:[#allocation23 + $0x2c] sm:$0xf]
    %v5539 = vld [vmem:[#allocation23 + $0x30] sm:$0xf]
    %v5540 = vld [vmem:[#allocation23 + $0x34] sm:$0xf]
    %v5541 = vld [vmem:[#allocation23 + $0x38] sm:$0xf]
    %v5542 = vld [vmem:[#allocation23 + $0x3c] sm:$0xf]
    %v5543 = vld [vmem:[#allocation23 + $0x40] sm:$0xf]
    %v5544 = vld [vmem:[#allocation23 + $0x44] sm:$0xf]
    %v5545 = vld [vmem:[#allocation23 + $0x48] sm:$0xf]
    %v5546 = vld [vmem:[#allocation23 + $0x4c] sm:$0xf]
    %v5547 = vld [vmem:[#allocation23 + $0x50] sm:$0xf]
    %v5548 = vld [vmem:[#allocation23 + $0x54] sm:$0xf]
    %v5549 = vld [vmem:[#allocation23 + $0x58] sm:$0xf]
    %v5550 = vld [vmem:[#allocation23 + $0x5c] sm:$0xf]
    %v5551 = vld [vmem:[#allocation23 + $0x60] sm:$0xf]
    %v5552 = vld [vmem:[#allocation23 + $0x64] sm:$0xf]
    %v5553 = vld [vmem:[#allocation23 + $0x68] sm:$0xf]
    %v5554 = vld [vmem:[#allocation23 + $0x6c] sm:$0xf]
    %v5555 = vld [vmem:[#allocation23 + $0x70] sm:$0xf]
    %v5556 = vld [vmem:[#allocation23 + $0x74] sm:$0xf]
    %v5557 = vld [vmem:[#allocation23 + $0x78] sm:$0xf]
    %v5558 = vld [vmem:[#allocation23 + $0x7c] sm:$0xf]
    %v5559 = vld [vmem:[#allocation23 + $0x80] sm:$0xf]
    %v5560 = vld [vmem:[#allocation23 + $0x84] sm:$0xf]
    %v5561 = vld [vmem:[#allocation23 + $0x88] sm:$0xf]
    %v5562 = vld [vmem:[#allocation23 + $0x8c] sm:$0xf]
    %v5563 = vld [vmem:[#allocation23 + $0x90] sm:$0xf]
    %v5564 = vld [vmem:[#allocation23 + $0x94] sm:$0xf]
    %v5565 = vld [vmem:[#allocation23 + $0x98] sm:$0xf]
    %v5566 = vld [vmem:[#allocation23 + $0x9c] sm:$0xf]
    %v5567 = vld [vmem:[#allocation23 + $0xa0] sm:$0xf]
    %v5568 = vld [vmem:[#allocation23 + $0xa4] sm:$0xf]
    %v5569 = vld [vmem:[#allocation23 + $0xa8] sm:$0xf]
    %v5570 = vld [vmem:[#allocation23 + $0xac] sm:$0xf]
    %v5571 = vld [vmem:[#allocation23 + $0xb0] sm:$0xf]
    %v5572 = vld [vmem:[#allocation23 + $0xb4] sm:$0xf]
    %v5573 = vld [vmem:[#allocation23 + $0xb8] sm:$0xf]
    %v5574 = vld [vmem:[#allocation23 + $0xbc] sm:$0xf]
    %v5623 = vunpack.c.l.b16 %v5527
    %v5624 = vunpack.c.l.b16 %v5528
    %v5625 = vunpack.c.l.b16 %v5529
    %v5626 = vunpack.c.l.b16 %v5530
    %v5627 = vunpack.c.l.b16 %v5531
    %v5628 = vunpack.c.l.b16 %v5532
    %v5629 = vunpack.c.l.b16 %v5533
    %v5630 = vunpack.c.l.b16 %v5534
    %v5631 = vunpack.c.l.b16 %v5535
    %v5632 = vunpack.c.l.b16 %v5536
    %v5633 = vunpack.c.l.b16 %v5537
    %v5634 = vunpack.c.l.b16 %v5538
    %v5635 = vunpack.c.l.b16 %v5539
    %v5636 = vunpack.c.l.b16 %v5540
    %v5637 = vunpack.c.l.b16 %v5541
    %v5638 = vunpack.c.l.b16 %v5542
    %v5639 = vunpack.c.l.b16 %v5543
    %v5640 = vunpack.c.l.b16 %v5544
    %v5641 = vunpack.c.l.b16 %v5545
    %v5642 = vunpack.c.l.b16 %v5546
    %v5643 = vunpack.c.l.b16 %v5547
    %v5644 = vunpack.c.l.b16 %v5548
    %v5645 = vunpack.c.l.b16 %v5549
    %v5646 = vunpack.c.l.b16 %v5550
    %v5647 = vunpack.c.l.b16 %v5551
    %v5648 = vunpack.c.l.b16 %v5552
    %v5649 = vunpack.c.l.b16 %v5553
    %v5650 = vunpack.c.l.b16 %v5554
    %v5651 = vunpack.c.l.b16 %v5555
    %v5652 = vunpack.c.l.b16 %v5556
    %v5653 = vunpack.c.l.b16 %v5557
    %v5654 = vunpack.c.l.b16 %v5558
    %v5655 = vunpack.c.l.b16 %v5559
    %v5656 = vunpack.c.l.b16 %v5560
    %v5657 = vunpack.c.l.b16 %v5561
    %v5658 = vunpack.c.l.b16 %v5562
    %v5659 = vunpack.c.l.b16 %v5563
    %v5660 = vunpack.c.l.b16 %v5564
    %v5661 = vunpack.c.l.b16 %v5565
    %v5662 = vunpack.c.l.b16 %v5566
    %v5663 = vunpack.c.l.b16 %v5567
    %v5664 = vunpack.c.l.b16 %v5568
    %v5665 = vunpack.c.l.b16 %v5569
    %v5666 = vunpack.c.l.b16 %v5570
    %v5667 = vunpack.c.l.b16 %v5571
    %v5668 = vunpack.c.l.b16 %v5572
    %v5669 = vunpack.c.l.b16 %v5573
    %v5670 = vunpack.c.l.b16 %v5574
    %v5671 = vpack.c.b16 %v5624, %v5623
    %v5672 = vpack.c.b16 %v5626, %v5625
    %v5673 = vpack.c.b16 %v5628, %v5627
    %v5674 = vpack.c.b16 %v5630, %v5629
    %v5675 = vpack.c.b16 %v5632, %v5631
    %v5676 = vpack.c.b16 %v5634, %v5633
    %v5677 = vpack.c.b16 %v5636, %v5635
    %v5678 = vpack.c.b16 %v5638, %v5637
    %v5679 = vpack.c.b16 %v5640, %v5639
    %v5680 = vpack.c.b16 %v5642, %v5641
    %v5681 = vpack.c.b16 %v5644, %v5643
    %v5682 = vpack.c.b16 %v5646, %v5645
    %v5683 = vpack.c.b16 %v5648, %v5647
    %v5684 = vpack.c.b16 %v5650, %v5649
    %v5685 = vpack.c.b16 %v5652, %v5651
    %v5686 = vpack.c.b16 %v5654, %v5653
    %v5687 = vpack.c.b16 %v5656, %v5655
    %v5688 = vpack.c.b16 %v5658, %v5657
    %v5689 = vpack.c.b16 %v5660, %v5659
    %v5690 = vpack.c.b16 %v5662, %v5661
    %v5691 = vpack.c.b16 %v5664, %v5663
    %v5692 = vpack.c.b16 %v5666, %v5665
    %v5693 = vpack.c.b16 %v5668, %v5667
    %v5694 = vpack.c.b16 %v5670, %v5669
    %5719 = vmatprep.subr.bf16.mxu0 0
    %5720 = vmatpush1.bf16.msra.mxu0 %v5671
    %5721 = vmatprep.subr.bf16.mxu0 0
    %5722 = vmatpush1.bf16.msra.mxu0 %v5672
    %5723 = vmatprep.subr.bf16.mxu0 0
    %5724 = vmatpush1.bf16.msra.mxu0 %v5673
    %5725 = vmatprep.subr.bf16.mxu0 0
    %5726 = vmatpush1.bf16.msra.mxu0 %v5674
    %5727 = vmatprep.subr.bf16.mxu0 0
    %5728 = vmatpush1.bf16.msra.mxu0 %v5675
    %5729 = vmatprep.subr.bf16.mxu0 0
    %5730 = vmatpush1.bf16.msra.mxu0 %v5676
    %5731 = vmatprep.subr.bf16.mxu0 0
    %5732 = vmatpush1.bf16.msra.mxu0 %v5677
    %5733 = vmatprep.subr.bf16.mxu0 0
    %5734 = vmatpush1.bf16.msra.mxu0 %v5678
    %5735 = vmatprep.subr.bf16.mxu0 0
    %5736 = vmatpush1.bf16.msra.mxu0 %v5679
    %5737 = vmatprep.subr.bf16.mxu0 0
    %5738 = vmatpush1.bf16.msra.mxu0 %v5680
    %5739 = vmatprep.subr.bf16.mxu0 0
    %5740 = vmatpush1.bf16.msra.mxu0 %v5681
    %5741 = vmatprep.subr.bf16.mxu0 0
    %5742 = vmatpush1.bf16.msra.mxu0 %v5682
    %5743 = vmatprep.subr.bf16.mxu0 0
    %5744 = vmatpush1.bf16.msra.mxu0 %v5683
    %5745 = vmatprep.subr.bf16.mxu0 0
    %5746 = vmatpush1.bf16.msra.mxu0 %v5684
    %5747 = vmatprep.subr.bf16.mxu0 0
    %5748 = vmatpush1.bf16.msra.mxu0 %v5685
    %5749 = vmatprep.subr.bf16.mxu0 0
    %5750 = vmatpush1.bf16.msra.mxu0 %v5686
    %5751 = vmatprep.mubr.bf16.mxu0 %v5498
    %5752 = vmatmul.mubr.bf16.gmra.mrb[0].mxu0 %v5467
    %v5753 = vpop.f32.mrb[0].mxu0
    %v5754 = vadd.f32 0.0, %v5753
    %v5755 = vpop.f32.mrb[0].mxu0
    %v5756 = vpop.f32.mrb[0].mxu0
    %v5757 = vadd.f32 0.0, %v5756
    %v5758 = vpop.f32.mrb[0].mxu0
    %5759 = vmatprep.mubr.bf16.mxu0 %v5510
    %5760 = vmatmul.mubr.bf16.gmra.mrb[0].mxu0 %v5468
    %v5761 = vpop.f32.mrb[0].mxu0
    %v5762 = vadd.f32 0.0, %v5761
    %v5763 = vpop.f32.mrb[0].mxu0
    %v5764 = vpop.f32.mrb[0].mxu0
    %v5765 = vadd.f32 0.0, %v5764
    %v5766 = vpop.f32.mrb[0].mxu0
    %5767 = vdwg.mxu0
    %5768 = vmatprep.subr.bf16.mxu0 0
    %5769 = vmatpush1.bf16.msra.mxu0 %v5687
    %5770 = vmatprep.subr.bf16.mxu0 0
    %5771 = vmatpush1.bf16.msra.mxu0 %v5688
    %5772 = vmatprep.subr.bf16.mxu0 0
    %5773 = vmatpush1.bf16.msra.mxu0 %v5689
    %5774 = vmatprep.subr.bf16.mxu0 0
    %5775 = vmatpush1.bf16.msra.mxu0 %v5690
    %5776 = vmatprep.subr.bf16.mxu0 0
    %5777 = vmatpush1.bf16.msra.mxu0 %v5691
    %5778 = vmatprep.subr.bf16.mxu0 0
    %5779 = vmatpush1.bf16.msra.mxu0 %v5692
    %5780 = vmatprep.subr.bf16.mxu0 0
    %5781 = vmatpush1.bf16.msra.mxu0 %v5693
    %5782 = vmatprep.subr.bf16.mxu0 0
    %5783 = vmatpush1.bf16.msra.mxu0 %v5694
    %5784 = vmatprep.subr.bf16.mxu0 0
    %5785 = vmatpush1.bf16.msra.mxu0 0
    %5786 = vmatprep.subr.bf16.mxu0 0
    %5787 = vmatpush1.bf16.msra.mxu0 0
    %5788 = vmatprep.subr.bf16.mxu0 0
    %5789 = vmatpush1.bf16.msra.mxu0 0
    %5790 = vmatprep.subr.bf16.mxu0 0
    %5791 = vmatpush1.bf16.msra.mxu0 0
    %5792 = vmatprep.subr.bf16.mxu0 0
    %5793 = vmatpush1.bf16.msra.mxu0 0
    %5794 = vmatprep.subr.bf16.mxu0 0
    %5795 = vmatpush1.bf16.msra.mxu0 0
    %5796 = vmatprep.subr.bf16.mxu0 0
    %5797 = vmatpush1.bf16.msra.mxu0 0
    %5798 = vmatprep.subr.bf16.mxu0 0
    %5799 = vmatpush1.bf16.msra.mxu0 0
    %5800 = vmatprep.mubr.bf16.mxu0 0
    %5801 = vmatmul.mubr.bf16.gmra.mrb[0].mxu0 %v5521
    %v5802 = vpop.f32.mrb[0].mxu0
    %v5803 = vadd.f32 %v5754, %v5802
    %v5804 = vpop.f32.mrb[0].mxu0
    %v5805 = vpop.f32.mrb[0].mxu0
    %v5806 = vadd.f32 %v5757, %v5805
    %v5807 = vpop.f32.mrb[0].mxu0
    %5808 = vmatprep.mubr.bf16.mxu0 0
    %5809 = vmatmul.mubr.bf16.gmra.mrb[0].mxu0 %v5524
    %v5810 = vpop.f32.mrb[0].mxu0
    %v5811 = vadd.f32 %v5762, %v5810
    %v5812 = vpop.f32.mrb[0].mxu0
    %v5813 = vpop.f32.mrb[0].mxu0
    %v5814 = vadd.f32 %v5765, %v5813
    %v5815 = vpop.f32.mrb[0].mxu0
    %5816 = vdwg.mxu0
    %v5817 = vld [vmem:[%s22] sm:$0x1]
    %v5819 = vlaneseq
    %v5820 = vshrl.u32 %v5819, 7
    %v5821 = vsub.s32 0, %v5820
    %v5822 = vrot.slane %v5817, %v5821
    %v5824 = vadd.f32 %v5803, %v5822
    %v5825 = vadd.f32 %v5806, %v5822
    %v5826 = vadd.f32 %v5811, %v5822
    %v5827 = vadd.f32 %v5814, %v5822
    %v5828 = vadd.f32 %v5824, %v3763
    %v5829 = vadd.f32 %v5825, %v3764
    %v5830 = vadd.f32 %v5826, %v3765
    %v5831 = vadd.f32 %v5827, %v3766
    %v5832 = vmax.f32 %v5828, 0.0
    %v5833 = vmax.f32 %v5829, 0.0
    %v5834 = vmax.f32 %v5830, 0.0
    %v5835 = vmax.f32 %v5831, 0.0
    %v5836 = vadd.f32 %v5832, %v5833
    %v5837 = vrot.slane %v5836, 4
    %v5838 = vadd.f32 %v5836, %v5837
    %v5839 = vrot.slane %v5838, 2
    %v5840 = vadd.f32 %v5838, %v5839
    %v5841 = vrot.slane %v5840, 1
    %v5842 = vadd.f32 %v5840, %v5841
    %v5843 = vadd.f32 %v5834, %v5835
    %v5844 = vrot.slane %v5843, 4
    %v5845 = vadd.f32 %v5843, %v5844
    %v5846 = vrot.slane %v5845, 2
    %v5847 = vadd.f32 %v5845, %v5846
    %v5848 = vrot.slane %v5847, 1
    %v5849 = vadd.f32 %v5847, %v5848
    %v5850 = vrcp.pop 16.0
    %v5851 = vmul.f32 %v5842, %v5850
    %v5852 = vmul.f32 %v5849, %v5850
    %5853 = vst [vmem:[#allocation25] sm:$0x1] %v5851
    %5854 = vst [vmem:[#allocation25 + $0x1] sm:$0x1] %v5852
    // Predicated region
    $region134: #{resnet_body_fwd.1} parent=1 // pred_check
      _
    $region135: #{resnet_body_fwd.1} parent=1 // pred_check_branch
      %5856 = sbr.rel (0) target = $region137
    $region136: #{resnet_body_fwd.1} parent=1 // pred_region
      %s5858 = ssub.s32 32, 32
      %5859 = vsyncadd [#allocation13], %s5858
      %s5860 = sshll.u32 [#allocation25], 4
      %s5861 = int_to_ptr.vmem [resolvable:$true] %s5860
      %5866 = dma.vmem_to_hbm [thread:$0]  %s5861, 32, %s25, [#allocation13], 16, 16, 1
    $region137: #{resnet_body_fwd.1} parent=1 // pred_fallthru
      _
    // Predicated region
    $region138: #{resnet_body_fwd.1} parent=1 // pred_check
      _
    $region139: #{resnet_body_fwd.1} parent=1 // pred_check_branch
      %5868 = sbr.rel (0) target = $region141
    $region140: #{resnet_body_fwd.1} parent=1 // pred_region
      %5869 = dma.done [#allocation13], 32
    $region141: #{resnet_body_fwd.1} parent=1 // pred_fallthru
      _
    %5870 = vsyncpa [#allocation12], 1
    %5871 = vsyncpa [#allocation15], 1
    %5872 = vsyncpa [#allocation18], 1
    %5873 = vsyncpa [#allocation21], 1
    %5874 = vsyncpa [#allocation24], 1
    %5875 = vsyncpa [#allocation13], 1

</llo_original>
